<compile_context>
chip_gen: v5e
topology: v5e:2x2
jax: 0.10.0
libtpu: 0.0.40
codegen_flags: <defaults>
</compile_context>

<pallas_src>
from functools import partial
from math import sqrt

import jax
import jax.numpy as jnp
from jax.experimental import pallas as pl
from jax.experimental.pallas import tpu as pltpu

EMBED_DIM = 32
NUM_HEADS = 4
NUM_BLOCKS = 2
HEAD_DIM = EMBED_DIM // NUM_HEADS
CVE_HID = int(sqrt(EMBED_DIM))          # 5
FF_HID = 2 * EMBED_DIM
LN_EPS = 1e-5
NEG_INF = -1e30
SLAB_LANES = 128                        # lane width of the parameter slabs

# Set to jnp.bfloat16 for native MXU input rate / halved vreg footprint at
# large batch (f32 accumulation is kept either way).  Default f32 preserves
# bit-parity with the f32 PyTorch reference.
MATMUL_DTYPE = jnp.float32


def _round8(n):
    return ((n + 7) // 8) * 8


def _build_layouts():
    """Static packing layout for the two parameter slabs."""
    # --- weight (matrix) slab: each entry occupies rows [off, off+r), cols [0, c)
    w_entries = [("cve_w2", 2 * CVE_HID, EMBED_DIM)]          # [w2_time; w2_value]
    for b in range(NUM_BLOCKS):
        w_entries += [
            (f"wqkv{b}", EMBED_DIM, 3 * EMBED_DIM),           # fused q|k|v projection
            (f"wo{b}", EMBED_DIM, EMBED_DIM),
            (f"fw1{b}", EMBED_DIM, FF_HID),
            (f"fw2{b}", FF_HID, EMBED_DIM),
        ]
    w_entries += [("fu_w1", EMBED_DIM, EMBED_DIM),
                  ("cls_w", EMBED_DIM, SLAB_LANES)]           # lane-dense classifier

    w_off, off = {}, 0
    for name, r, c in w_entries:
        w_off[name] = (off, r, c)
        off += _round8(r)                # keep every matrix sublane-aligned
    w_rows = _round8(off)

    # --- vector slab: one padded row per vector
    v_entries = [("cve_t_w1", CVE_HID), ("cve_t_b1", CVE_HID),
                 ("cve_v_w1", CVE_HID), ("cve_v_b1", CVE_HID)]
    for b in range(NUM_BLOCKS):
        v_entries += [(f"bqkv{b}", 3 * EMBED_DIM), (f"bo{b}", EMBED_DIM),
                      (f"fb1{b}", FF_HID), (f"fb2{b}", EMBED_DIM),
                      (f"ln1w{b}", EMBED_DIM), (f"ln1b{b}", EMBED_DIM),
                      (f"ln2w{b}", EMBED_DIM), (f"ln2b{b}", EMBED_DIM)]
    v_entries += [("fu_b1", EMBED_DIM), ("fu_w2", EMBED_DIM),
                  ("cls_b", SLAB_LANES)]                       # lane-dense bias
    v_row = {name: (i, c) for i, (name, c) in enumerate(v_entries)}
    v_rows = _round8(len(v_entries))
    return w_off, w_rows, v_row, v_rows


W_OFF, W_ROWS, V_ROW, V_ROWS = _build_layouts()


def _layernorm(x, w, b):
    mu = jnp.mean(x, axis=-1, keepdims=True)
    var = jnp.mean((x - mu) ** 2, axis=-1, keepdims=True)
    return (x - mu) * jax.lax.rsqrt(var + LN_EPS) * w + b


def _mm(a, b):
    return jnp.dot(a.astype(MATMUL_DTYPE), b.astype(MATMUL_DTYPE),
                   preferred_element_type=jnp.float32)


def strats_kernel(data_ref, mask_ref, w_ref, v_ref, out_ref):
    Bt = data_ref.shape[0]                        # per-step batch tile
    T = data_ref.shape[2]
    BT = Bt * T

    data = data_ref[...]                          # (Bt, 2, T)
    mask = mask_ref[:, 0, :]                      # (Bt, T) 1 = observed, 0 = pad

    time = data[:, 0, :]
    value = data[:, 1, :]

    def wmat(name):
        off, r, c = W_OFF[name]
        return w_ref[off:off + r, :c]             # static slice of weight slab

    def vrow(name):
        row, c = V_ROW[name]
        return v_ref[row:row + 1, :c]             # (1, c) broadcastable bias

    # --- Continuous value embeddings (vectorized) ---------------------------
    # Linear(1,5) -> tanh -> Linear(5,32, no bias), for time and value, fused:
    # one tanh over (Bt,T,10) and one (BT,10)@(10,32) matmul with stacked W2.
    w1t = vrow("cve_t_w1").reshape(1, 1, CVE_HID)
    b1t = vrow("cve_t_b1").reshape(1, 1, CVE_HID)
    w1v = vrow("cve_v_w1").reshape(1, 1, CVE_HID)
    b1v = vrow("cve_v_b1").reshape(1, 1, CVE_HID)
    h_pre = jnp.concatenate([time[:, :, None] * w1t + b1t,
                             value[:, :, None] * w1v + b1v], axis=-1)  # (Bt,T,10)
    h = jnp.tanh(h_pre)
    E = _mm(h.reshape(BT, 2 * CVE_HID), wmat("cve_w2"))                # (BT, 32)

    X = E                                          # flattened (Bt*T, D) activations
    keep = mask[:, None, :] > 0.5                  # (Bt, 1, T) key-padding keep
    scale = float(HEAD_DIM) ** -0.5

    # --- Transformer encoder blocks (post-norm, ReLU FFN, no dropout) -------
    for b in range(NUM_BLOCKS):
        # Fused QKV projection: one (BT,32)@(32,96) matmul + one 96-lane bias.
        qkv = _mm(X, wmat(f"wqkv{b}")) + vrow(f"bqkv{b}")              # (BT, 96)
        q = qkv[:, 0 * EMBED_DIM:1 * EMBED_DIM]
        k = qkv[:, 1 * EMBED_DIM:2 * EMBED_DIM]
        v = qkv[:, 2 * EMBED_DIM:3 * EMBED_DIM]

        # Per-head attention core.  Head outputs are lane-concatenated and hit
        # the output projection with a single (BT,32)@(32,32) matmul.
        # TODO(synk): batching heads into one 'bhqd,bhkd->bhqk' einsum needs a
        # verified multi-batch-dim dot_general lowering (pl.lower_as_mlir);
        # kept single-batch-dim einsums per head, which lower cleanly.
        head_outs = []
        for hh in range(NUM_HEADS):
            hs = hh * HEAD_DIM
            qh = q[:, hs:hs + HEAD_DIM].reshape(Bt, T, HEAD_DIM)
            kh = k[:, hs:hs + HEAD_DIM].reshape(Bt, T, HEAD_DIM)
            vh = v[:, hs:hs + HEAD_DIM].reshape(Bt, T, HEAD_DIM)

            s = jnp.einsum('bqd,bkd->bqk',
                           qh.astype(MATMUL_DTYPE), kh.astype(MATMUL_DTYPE),
                           preferred_element_type=jnp.float32) * scale
            s = jnp.where(keep, s, NEG_INF)
            s = s - jnp.max(s, axis=-1, keepdims=True)
            p = jnp.exp(s)
            # NOTE: a fully-masked row yields a uniform distribution over padded
            # keys here (PyTorch's key_padding_mask would give NaN) — guard only.
            p = p / jnp.sum(p, axis=-1, keepdims=True)

            oh = jnp.einsum('bqk,bkd->bqd',
                            p.astype(MATMUL_DTYPE), vh.astype(MATMUL_DTYPE),
                            preferred_element_type=jnp.float32)        # (Bt,T,Hd)
            head_outs.append(oh)

        o = jnp.concatenate(head_outs, axis=-1).reshape(BT, EMBED_DIM)
        y = _mm(o, wmat(f"wo{b}")) + vrow(f"bo{b}")                    # out proj
        y = y + X                                                      # residual 1
        y = _layernorm(y, vrow(f"ln1w{b}"), vrow(f"ln1b{b}"))          # norm1

        f = _mm(y, wmat(f"fw1{b}")) + vrow(f"fb1{b}")
        f = jnp.maximum(f, 0.0)                                        # ReLU
        f = _mm(f, wmat(f"fw2{b}")) + vrow(f"fb2{b}")
        f = f + y                                                      # residual 2
        X = _layernorm(f, vrow(f"ln2w{b}"), vrow(f"ln2b{b}"))          # norm2

    # --- Fusion self-attention (max-stabilized, exact division) -------------
    a_hid = jnp.tanh(_mm(X, wmat("fu_w1")) + vrow("fu_b1"))            # (BT, 32)
    a = jnp.sum(a_hid * vrow("fu_w2"), axis=-1, keepdims=True)         # (BT, 1)
    a = a.reshape(Bt, T, 1)
    m3 = mask[:, :, None]                                              # (Bt, T, 1)
    a_msk = jnp.where(m3 > 0.5, a, NEG_INF)
    a_max = jnp.max(a_msk, axis=1, keepdims=True)                      # (Bt, 1, 1)
    a_max = jnp.where(a_max > 0.5 * NEG_INF, a_max, 0.0)               # all-masked guard
    alpha = jnp.exp(a - a_max) * m3                                    # (Bt, T, 1)
    denom = jnp.sum(alpha, axis=1, keepdims=True)                      # (Bt, 1, 1)
    denom = jnp.where(denom > 0.0, denom, 1.0)                         # NaN guard
    alpha = alpha / denom
    C = jnp.sum(alpha * X.reshape(Bt, T, EMBED_DIM), axis=1)           # (Bt, 32)

    # --- Classifier (lane-dense: real logits in lanes 0:2, rest exactly 0) --
    logits = _mm(C, wmat("cls_w")) + vrow("cls_b")                     # (Bt, 128)
    out_ref[...] = logits.reshape(Bt, 1, SLAB_LANES).astype(out_ref.dtype)


def init_params(key):
    """Deterministic synthetic parameters, packed into the kernel slabs."""
    keys = iter(jax.random.split(key, 64))

    def rnd(shape, scale=0.2):
        return jax.random.uniform(next(keys), shape, jnp.float32, -scale, scale)

    w_vals, v_vals = {}, {}

    # CVE: Linear(1,5) -> tanh -> Linear(5,32, bias=False), time & value.
    v_vals["cve_t_w1"] = rnd((CVE_HID,))
    v_vals["cve_t_b1"] = rnd((CVE_HID,))
    v_vals["cve_v_w1"] = rnd((CVE_HID,))
    v_vals["cve_v_b1"] = rnd((CVE_HID,))
    w_vals["cve_w2"] = jnp.concatenate(
        [rnd((CVE_HID, EMBED_DIM)), rnd((CVE_HID, EMBED_DIM))], axis=0)

    for b in range(NUM_BLOCKS):
        w_vals[f"wqkv{b}"] = rnd((EMBED_DIM, 3 * EMBED_DIM))   # fused in_proj (transposed)
        v_vals[f"bqkv{b}"] = rnd((3 * EMBED_DIM,))
        w_vals[f"wo{b}"] = rnd((EMBED_DIM, EMBED_DIM))         # out_proj (transposed)
        v_vals[f"bo{b}"] = rnd((EMBED_DIM,))
        w_vals[f"fw1{b}"] = rnd((EMBED_DIM, FF_HID))           # FFN linear1 (transposed)
        v_vals[f"fb1{b}"] = rnd((FF_HID,))
        w_vals[f"fw2{b}"] = rnd((FF_HID, EMBED_DIM))           # FFN linear2 (transposed)
        v_vals[f"fb2{b}"] = rnd((EMBED_DIM,))
        v_vals[f"ln1w{b}"] = jnp.ones((EMBED_DIM,), jnp.float32)
        v_vals[f"ln1b{b}"] = jnp.zeros((EMBED_DIM,), jnp.float32)
        v_vals[f"ln2w{b}"] = jnp.ones((EMBED_DIM,), jnp.float32)
        v_vals[f"ln2b{b}"] = jnp.zeros((EMBED_DIM,), jnp.float32)

    w_vals["fu_w1"] = rnd((EMBED_DIM, EMBED_DIM))
    v_vals["fu_b1"] = rnd((EMBED_DIM,))
    v_vals["fu_w2"] = rnd((EMBED_DIM,))                        # fuser linear2 (no bias)

    # Classifier padded to 128 lanes (lanes 2: are exactly zero).
    cls_w = jnp.zeros((EMBED_DIM, SLAB_LANES), jnp.float32).at[:, :2].set(rnd((EMBED_DIM, 2)))
    cls_b = jnp.zeros((SLAB_LANES,), jnp.float32).at[:2].set(rnd((2,)))
    w_vals["cls_w"] = cls_w
    v_vals["cls_b"] = cls_b

    w_slab = jnp.zeros((W_ROWS, SLAB_LANES), jnp.float32)
    for name, mat in w_vals.items():
        off, r, c = W_OFF[name]
        w_slab = w_slab.at[off:off + r, :c].set(mat)

    v_slab = jnp.zeros((V_ROWS, SLAB_LANES), jnp.float32)
    for name, vec in v_vals.items():
        row, c = V_ROW[name]
        v_slab = v_slab.at[row, :c].set(vec)

    return w_slab, v_slab


def _cost_estimate(B, T):
    BT = B * T
    D, H, Hd, F = EMBED_DIM, NUM_HEADS, HEAD_DIM, FF_HID
    mm2 = lambda m, k, n: 2 * m * k * n
    flops = mm2(BT, 2 * CVE_HID, D) + 4 * BT * CVE_HID             # fused CVE
    for _ in range(NUM_BLOCKS):
        flops += mm2(BT, D, 3 * D)                                 # fused qkv
        flops += H * (mm2(B * T, Hd, T) + mm2(B * T, T, Hd))       # scores + p@V
        flops += mm2(BT, D, D)                                     # out proj
        flops += mm2(BT, D, F) + mm2(BT, F, D)                     # FFN
        flops += 20 * BT * D                                       # residual / LN
    flops += mm2(BT, D, D) + 6 * BT * D + mm2(B, D, SLAB_LANES)    # fusion + classifier
    trans = 2 * BT * CVE_HID + NUM_BLOCKS * H * B * T * T + BT * D + BT
    bytes_accessed = 4 * (B * 2 * T + B * T + W_ROWS * SLAB_LANES
                          + V_ROWS * SLAB_LANES + B * SLAB_LANES)
    return pl.CostEstimate(flops=int(flops), transcendentals=int(trans),
                           bytes_accessed=int(bytes_accessed))


@partial(jax.jit, static_argnames=("batch_tile",))
def strats_forward(data, mask, w_slab, v_slab, batch_tile=None):
    B, _, T = data.shape
    bt = B if batch_tile is None else int(batch_tile)
    assert B % bt == 0, "batch must be divisible by batch_tile"
    grid = (B // bt,)

    data_f = data.astype(jnp.float32)
    mask_f = mask.astype(jnp.float32).reshape(B, 1, T)   # singleton keeps (8,128) rule happy

    out_full = pl.pallas_call(
        strats_kernel,
        out_shape=jax.ShapeDtypeStruct((B, 1, SLAB_LANES), jnp.float32),
        grid=grid,
        in_specs=[
            pl.BlockSpec((bt, 2, T), lambda i: (i, 0, 0)),            # data tile
            pl.BlockSpec((bt, 1, T), lambda i: (i, 0, 0)),            # mask tile
            pl.BlockSpec((W_ROWS, SLAB_LANES), lambda i: (0, 0)),     # resident weights
            pl.BlockSpec((V_ROWS, SLAB_LANES), lambda i: (0, 0)),     # resident vectors
        ],
        out_specs=pl.BlockSpec((bt, 1, SLAB_LANES), lambda i: (i, 0, 0)),
        compiler_params=pltpu.CompilerParams(dimension_semantics=("parallel",)),
        cost_estimate=_cost_estimate(B, T),
    )(data_f, mask_f, w_slab, v_slab)

    return out_full[:, 0, :2]                             # real logits live in lanes 0:2


if __name__ == "__main__":
    key = jax.random.PRNGKey(0)
    kd, km, kp = jax.random.split(key, 3)

    B, T = 4, 8
    data = jax.random.normal(kd, (B, 2, T), jnp.float32)     # (batch, {time, value}, seq)
    mask = jax.random.uniform(km, (B, T)) > 0.3               # bool observation mask
    mask = mask.at[:, 0].set(True)                            # avoid fully-masked rows

    w_slab, v_slab = init_params(kp)
    out = strats_forward(data, mask, w_slab, v_slab, batch_tile=2)   # grid=(2,), batch-parallel
    jax.block_until_ready(out)

    assert out.shape == (B, 2) and out.dtype == jnp.float32
    print("KERNEL_OK")
</pallas_src>

<mosaic_0001>
module attributes {stable_mosaic.version = 11 : i64} {
  func.func @strats_kernel(%arg0: i32, %arg1: memref<2x2x8xf32, #tpu.memory_space<vmem>>, %arg2: memref<2x1x8xf32, #tpu.memory_space<vmem>>, %arg3: memref<400x128xf32, #tpu.memory_space<vmem>>, %arg4: memref<24x128xf32, #tpu.memory_space<vmem>>, %arg5: memref<2x1x128xf32, #tpu.memory_space<vmem>>) attributes {dimension_semantics = [#tpu.dimension_semantics<parallel>], iteration_bounds = array<i64: 2>, scalar_prefetch = 0 : i64, scratch_operands = 0 : i64, tpu.core_type = #tpu.core_type<tc>, window_params = [{transform_indices = @transform_0, window_bounds = array<i64: 2, 2, 8>}, {transform_indices = @transform_1, window_bounds = array<i64: 2, 1, 8>}, {pipeline_mode = #tpu.pipeline_mode<synchronous>, transform_indices = @transform_2, window_bounds = array<i64: 400, 128>}, {pipeline_mode = #tpu.pipeline_mode<synchronous>, transform_indices = @transform_3, window_bounds = array<i64: 24, 128>}, {transform_indices = @transform_4, window_bounds = array<i64: 2, 1, 128>}]} {
    %c0 = arith.constant 0 : index
    %c0_0 = arith.constant 0 : index
    %c0_1 = arith.constant 0 : index
    %0 = vector.load %arg1[%c0, %c0_0, %c0_1] : memref<2x2x8xf32, #tpu.memory_space<vmem>>, vector<2x2x8xf32>
    %c0_2 = arith.constant 0 : index
    %c0_3 = arith.constant 0 : index
    %c0_4 = arith.constant 0 : index
    %1 = vector.load %arg2[%c0_2, %c0_3, %c0_4] : memref<2x1x8xf32, #tpu.memory_space<vmem>>, vector<2x1x8xf32>
    %2 = vector.shape_cast %1 : vector<2x1x8xf32> to vector<2x8xf32>
    %3 = vector.extract_strided_slice %0 {offsets = [0, 0, 0], sizes = [2, 1, 8], strides = [1, 1, 1]} : vector<2x2x8xf32> to vector<2x1x8xf32>
    %4 = vector.shape_cast %3 : vector<2x1x8xf32> to vector<2x8xf32>
    %5 = vector.extract_strided_slice %0 {offsets = [0, 1, 0], sizes = [2, 1, 8], strides = [1, 1, 1]} : vector<2x2x8xf32> to vector<2x1x8xf32>
    %6 = vector.shape_cast %5 : vector<2x1x8xf32> to vector<2x8xf32>
    %c0_5 = arith.constant 0 : index
    %c0_6 = arith.constant 0 : index
    %7 = vector.load %arg4[%c0_5, %c0_6] : memref<24x128xf32, #tpu.memory_space<vmem>>, vector<1x5xf32>
    %8 = vector.shape_cast %7 : vector<1x5xf32> to vector<1x1x5xf32>
    %c1 = arith.constant 1 : index
    %c0_7 = arith.constant 0 : index
    %9 = vector.load %arg4[%c1, %c0_7] : memref<24x128xf32, #tpu.memory_space<vmem>>, vector<1x5xf32>
    %10 = vector.shape_cast %9 : vector<1x5xf32> to vector<1x1x5xf32>
    %c2 = arith.constant 2 : index
    %c0_8 = arith.constant 0 : index
    %11 = vector.load %arg4[%c2, %c0_8] : memref<24x128xf32, #tpu.memory_space<vmem>>, vector<1x5xf32>
    %12 = vector.shape_cast %11 : vector<1x5xf32> to vector<1x1x5xf32>
    %c3 = arith.constant 3 : index
    %c0_9 = arith.constant 0 : index
    %13 = vector.load %arg4[%c3, %c0_9] : memref<24x128xf32, #tpu.memory_space<vmem>>, vector<1x5xf32>
    %14 = vector.shape_cast %13 : vector<1x5xf32> to vector<1x1x5xf32>
    %15 = vector.shape_cast %4 : vector<2x8xf32> to vector<2x8x1xf32>
    %16 = vector.broadcast %15 : vector<2x8x1xf32> to vector<2x8x5xf32>
    %17 = vector.broadcast %8 : vector<1x1x5xf32> to vector<2x8x5xf32>
    %18 = arith.mulf %16, %17 : vector<2x8x5xf32>
    %19 = vector.broadcast %10 : vector<1x1x5xf32> to vector<2x8x5xf32>
    %20 = arith.addf %18, %19 : vector<2x8x5xf32>
    %21 = vector.shape_cast %6 : vector<2x8xf32> to vector<2x8x1xf32>
    %22 = vector.broadcast %21 : vector<2x8x1xf32> to vector<2x8x5xf32>
    %23 = vector.broadcast %12 : vector<1x1x5xf32> to vector<2x8x5xf32>
    %24 = arith.mulf %22, %23 : vector<2x8x5xf32>
    %25 = vector.broadcast %14 : vector<1x1x5xf32> to vector<2x8x5xf32>
    %26 = arith.addf %24, %25 : vector<2x8x5xf32>
    %27 = tpu.concatenate %20, %26 in 2 : vector<2x8x5xf32>, vector<2x8x5xf32> -> vector<2x8x10xf32>
    %28 = math.tanh %27 : vector<2x8x10xf32>
    %29 = vector.shape_cast %28 : vector<2x8x10xf32> to vector<16x10xf32>
    %c0_10 = arith.constant 0 : index
    %c0_11 = arith.constant 0 : index
    %30 = vector.load %arg3[%c0_10, %c0_11] : memref<400x128xf32, #tpu.memory_space<vmem>>, vector<10x32xf32>
    %cst = arith.constant dense<0.000000e+00> : vector<16x32xf32>
    %31 = tpu.matmul %29, %30, %cst {dimension_numbers = #tpu.dot_dimension_numbers<[1], [0], [0], [1], [0, 0, 1, 1], [], []>} : vector<16x10xf32>, vector<10x32xf32>, vector<16x32xf32> -> vector<16x32xf32>
    %32 = vector.shape_cast %2 : vector<2x8xf32> to vector<2x1x8xf32>
    %cst_12 = arith.constant 5.000000e-01 : f32
    %33 = vector.broadcast %cst_12 : f32 to vector<2x1x8xf32>
    %34 = arith.cmpf ogt, %32, %33 : vector<2x1x8xf32>
    %c16 = arith.constant 16 : index
    %c0_13 = arith.constant 0 : index
    %35 = vector.load %arg3[%c16, %c0_13] : memref<400x128xf32, #tpu.memory_space<vmem>>, vector<32x96xf32>
    %cst_14 = arith.constant dense<0.000000e+00> : vector<16x96xf32>
    %36 = tpu.matmul %31, %35, %cst_14 {dimension_numbers = #tpu.dot_dimension_numbers<[1], [0], [0], [1], [0, 0, 1, 1], [], []>} : vector<16x32xf32>, vector<32x96xf32>, vector<16x96xf32> -> vector<16x96xf32>
    %c4 = arith.constant 4 : index
    %c0_15 = arith.constant 0 : index
    %37 = vector.load %arg4[%c4, %c0_15] : memref<24x128xf32, #tpu.memory_space<vmem>>, vector<1x96xf32>
    %38 = vector.broadcast %37 : vector<1x96xf32> to vector<16x96xf32>
    %39 = arith.addf %36, %38 : vector<16x96xf32>
    %40 = vector.extract_strided_slice %39 {offsets = [0, 0], sizes = [16, 32], strides = [1, 1]} : vector<16x96xf32> to vector<16x32xf32>
    %41 = vector.extract_strided_slice %39 {offsets = [0, 32], sizes = [16, 32], strides = [1, 1]} : vector<16x96xf32> to vector<16x32xf32>
    %42 = vector.extract_strided_slice %39 {offsets = [0, 64], sizes = [16, 32], strides = [1, 1]} : vector<16x96xf32> to vector<16x32xf32>
    %43 = vector.extract_strided_slice %40 {offsets = [0, 0], sizes = [16, 8], strides = [1, 1]} : vector<16x32xf32> to vector<16x8xf32>
    %44 = vector.shape_cast %43 : vector<16x8xf32> to vector<2x8x8xf32>
    %45 = vector.extract_strided_slice %41 {offsets = [0, 0], sizes = [16, 8], strides = [1, 1]} : vector<16x32xf32> to vector<16x8xf32>
    %46 = vector.shape_cast %45 : vector<16x8xf32> to vector<2x8x8xf32>
    %47 = vector.extract_strided_slice %42 {offsets = [0, 0], sizes = [16, 8], strides = [1, 1]} : vector<16x32xf32> to vector<16x8xf32>
    %48 = vector.shape_cast %47 : vector<16x8xf32> to vector<2x8x8xf32>
    "tpu.trace_start"() <{level = 10 : i32, message = "bqd,bkd->bqk"}> : () -> ()
    %cst_16 = arith.constant dense<0.000000e+00> : vector<2x8x8xf32>
    %49 = tpu.matmul %44, %46, %cst_16 {dimension_numbers = #tpu.dot_dimension_numbers<[2], [2], [1], [1], [0, 0, 0, 1, 1, 1], [0], [0]>} : vector<2x8x8xf32>, vector<2x8x8xf32>, vector<2x8x8xf32> -> vector<2x8x8xf32>
    "tpu.trace_stop"() : () -> ()
    %cst_17 = arith.constant 0.353553385 : f32
    %50 = vector.broadcast %cst_17 : f32 to vector<2x8x8xf32>
    %51 = arith.mulf %49, %50 : vector<2x8x8xf32>
    %cst_18 = arith.constant -1.000000e+30 : f32
    %52 = vector.shape_cast %34 : vector<2x1x8xi1> to vector<2x1x8xi1>
    %53 = vector.broadcast %52 : vector<2x1x8xi1> to vector<2x8x8xi1>
    %54 = vector.broadcast %cst_18 : f32 to vector<2x8x8xf32>
    %55 = arith.select %53, %51, %54 : vector<2x8x8xi1>, vector<2x8x8xf32>
    %cst_19 = arith.constant dense<0xFF800000> : vector<2x8xf32>
    %56 = vector.multi_reduction <maximumf>, %55, %cst_19 [2] : vector<2x8x8xf32> to vector<2x8xf32>
    %57 = vector.shape_cast %56 : vector<2x8xf32> to vector<2x8x1xf32>
    %58 = vector.broadcast %57 : vector<2x8x1xf32> to vector<2x8x8xf32>
    %59 = arith.subf %55, %58 : vector<2x8x8xf32>
    %60 = math.exp %59 : vector<2x8x8xf32>
    %cst_20 = arith.constant dense<0.000000e+00> : vector<2x8xf32>
    %61 = vector.multi_reduction <add>, %60, %cst_20 [2] : vector<2x8x8xf32> to vector<2x8xf32>
    %62 = vector.shape_cast %61 : vector<2x8xf32> to vector<2x8x1xf32>
    %63 = vector.broadcast %62 : vector<2x8x1xf32> to vector<2x8x8xf32>
    %64 = arith.divf %60, %63 : vector<2x8x8xf32>
    "tpu.trace_start"() <{level = 10 : i32, message = "bqk,bkd->bqd"}> : () -> ()
    %cst_21 = arith.constant dense<0.000000e+00> : vector<2x8x8xf32>
    %65 = tpu.matmul %64, %48, %cst_21 {dimension_numbers = #tpu.dot_dimension_numbers<[2], [1], [1], [2], [0, 0, 0, 1, 1, 2], [0], [0]>} : vector<2x8x8xf32>, vector<2x8x8xf32>, vector<2x8x8xf32> -> vector<2x8x8xf32>
    "tpu.trace_stop"() : () -> ()
    %66 = vector.extract_strided_slice %40 {offsets = [0, 8], sizes = [16, 8], strides = [1, 1]} : vector<16x32xf32> to vector<16x8xf32>
    %67 = vector.shape_cast %66 : vector<16x8xf32> to vector<2x8x8xf32>
    %68 = vector.extract_strided_slice %41 {offsets = [0, 8], sizes = [16, 8], strides = [1, 1]} : vector<16x32xf32> to vector<16x8xf32>
    %69 = vector.shape_cast %68 : vector<16x8xf32> to vector<2x8x8xf32>
    %70 = vector.extract_strided_slice %42 {offsets = [0, 8], sizes = [16, 8], strides = [1, 1]} : vector<16x32xf32> to vector<16x8xf32>
    %71 = vector.shape_cast %70 : vector<16x8xf32> to vector<2x8x8xf32>
    "tpu.trace_start"() <{level = 10 : i32, message = "bqd,bkd->bqk"}> : () -> ()
    %cst_22 = arith.constant dense<0.000000e+00> : vector<2x8x8xf32>
    %72 = tpu.matmul %67, %69, %cst_22 {dimension_numbers = #tpu.dot_dimension_numbers<[2], [2], [1], [1], [0, 0, 0, 1, 1, 1], [0], [0]>} : vector<2x8x8xf32>, vector<2x8x8xf32>, vector<2x8x8xf32> -> vector<2x8x8xf32>
    "tpu.trace_stop"() : () -> ()
    %cst_23 = arith.constant 0.353553385 : f32
    %73 = vector.broadcast %cst_23 : f32 to vector<2x8x8xf32>
    %74 = arith.mulf %72, %73 : vector<2x8x8xf32>
    %cst_24 = arith.constant -1.000000e+30 : f32
    %75 = vector.shape_cast %34 : vector<2x1x8xi1> to vector<2x1x8xi1>
    %76 = vector.broadcast %75 : vector<2x1x8xi1> to vector<2x8x8xi1>
    %77 = vector.broadcast %cst_24 : f32 to vector<2x8x8xf32>
    %78 = arith.select %76, %74, %77 : vector<2x8x8xi1>, vector<2x8x8xf32>
    %cst_25 = arith.constant dense<0xFF800000> : vector<2x8xf32>
    %79 = vector.multi_reduction <maximumf>, %78, %cst_25 [2] : vector<2x8x8xf32> to vector<2x8xf32>
    %80 = vector.shape_cast %79 : vector<2x8xf32> to vector<2x8x1xf32>
    %81 = vector.broadcast %80 : vector<2x8x1xf32> to vector<2x8x8xf32>
    %82 = arith.subf %78, %81 : vector<2x8x8xf32>
    %83 = math.exp %82 : vector<2x8x8xf32>
    %cst_26 = arith.constant dense<0.000000e+00> : vector<2x8xf32>
    %84 = vector.multi_reduction <add>, %83, %cst_26 [2] : vector<2x8x8xf32> to vector<2x8xf32>
    %85 = vector.shape_cast %84 : vector<2x8xf32> to vector<2x8x1xf32>
    %86 = vector.broadcast %85 : vector<2x8x1xf32> to vector<2x8x8xf32>
    %87 = arith.divf %83, %86 : vector<2x8x8xf32>
    "tpu.trace_start"() <{level = 10 : i32, message = "bqk,bkd->bqd"}> : () -> ()
    %cst_27 = arith.constant dense<0.000000e+00> : vector<2x8x8xf32>
    %88 = tpu.matmul %87, %71, %cst_27 {dimension_numbers = #tpu.dot_dimension_numbers<[2], [1], [1], [2], [0, 0, 0, 1, 1, 2], [0], [0]>} : vector<2x8x8xf32>, vector<2x8x8xf32>, vector<2x8x8xf32> -> vector<2x8x8xf32>
    "tpu.trace_stop"() : () -> ()
    %89 = vector.extract_strided_slice %40 {offsets = [0, 16], sizes = [16, 8], strides = [1, 1]} : vector<16x32xf32> to vector<16x8xf32>
    %90 = vector.shape_cast %89 : vector<16x8xf32> to vector<2x8x8xf32>
    %91 = vector.extract_strided_slice %41 {offsets = [0, 16], sizes = [16, 8], strides = [1, 1]} : vector<16x32xf32> to vector<16x8xf32>
    %92 = vector.shape_cast %91 : vector<16x8xf32> to vector<2x8x8xf32>
    %93 = vector.extract_strided_slice %42 {offsets = [0, 16], sizes = [16, 8], strides = [1, 1]} : vector<16x32xf32> to vector<16x8xf32>
    %94 = vector.shape_cast %93 : vector<16x8xf32> to vector<2x8x8xf32>
    "tpu.trace_start"() <{level = 10 : i32, message = "bqd,bkd->bqk"}> : () -> ()
    %cst_28 = arith.constant dense<0.000000e+00> : vector<2x8x8xf32>
    %95 = tpu.matmul %90, %92, %cst_28 {dimension_numbers = #tpu.dot_dimension_numbers<[2], [2], [1], [1], [0, 0, 0, 1, 1, 1], [0], [0]>} : vector<2x8x8xf32>, vector<2x8x8xf32>, vector<2x8x8xf32> -> vector<2x8x8xf32>
    "tpu.trace_stop"() : () -> ()
    %cst_29 = arith.constant 0.353553385 : f32
    %96 = vector.broadcast %cst_29 : f32 to vector<2x8x8xf32>
    %97 = arith.mulf %95, %96 : vector<2x8x8xf32>
    %cst_30 = arith.constant -1.000000e+30 : f32
    %98 = vector.shape_cast %34 : vector<2x1x8xi1> to vector<2x1x8xi1>
    %99 = vector.broadcast %98 : vector<2x1x8xi1> to vector<2x8x8xi1>
    %100 = vector.broadcast %cst_30 : f32 to vector<2x8x8xf32>
    %101 = arith.select %99, %97, %100 : vector<2x8x8xi1>, vector<2x8x8xf32>
    %cst_31 = arith.constant dense<0xFF800000> : vector<2x8xf32>
    %102 = vector.multi_reduction <maximumf>, %101, %cst_31 [2] : vector<2x8x8xf32> to vector<2x8xf32>
    %103 = vector.shape_cast %102 : vector<2x8xf32> to vector<2x8x1xf32>
    %104 = vector.broadcast %103 : vector<2x8x1xf32> to vector<2x8x8xf32>
    %105 = arith.subf %101, %104 : vector<2x8x8xf32>
    %106 = math.exp %105 : vector<2x8x8xf32>
    %cst_32 = arith.constant dense<0.000000e+00> : vector<2x8xf32>
    %107 = vector.multi_reduction <add>, %106, %cst_32 [2] : vector<2x8x8xf32> to vector<2x8xf32>
    %108 = vector.shape_cast %107 : vector<2x8xf32> to vector<2x8x1xf32>
    %109 = vector.broadcast %108 : vector<2x8x1xf32> to vector<2x8x8xf32>
    %110 = arith.divf %106, %109 : vector<2x8x8xf32>
    "tpu.trace_start"() <{level = 10 : i32, message = "bqk,bkd->bqd"}> : () -> ()
    %cst_33 = arith.constant dense<0.000000e+00> : vector<2x8x8xf32>
    %111 = tpu.matmul %110, %94, %cst_33 {dimension_numbers = #tpu.dot_dimension_numbers<[2], [1], [1], [2], [0, 0, 0, 1, 1, 2], [0], [0]>} : vector<2x8x8xf32>, vector<2x8x8xf32>, vector<2x8x8xf32> -> vector<2x8x8xf32>
    "tpu.trace_stop"() : () -> ()
    %112 = vector.extract_strided_slice %40 {offsets = [0, 24], sizes = [16, 8], strides = [1, 1]} : vector<16x32xf32> to vector<16x8xf32>
    %113 = vector.shape_cast %112 : vector<16x8xf32> to vector<2x8x8xf32>
    %114 = vector.extract_strided_slice %41 {offsets = [0, 24], sizes = [16, 8], strides = [1, 1]} : vector<16x32xf32> to vector<16x8xf32>
    %115 = vector.shape_cast %114 : vector<16x8xf32> to vector<2x8x8xf32>
    %116 = vector.extract_strided_slice %42 {offsets = [0, 24], sizes = [16, 8], strides = [1, 1]} : vector<16x32xf32> to vector<16x8xf32>
    %117 = vector.shape_cast %116 : vector<16x8xf32> to vector<2x8x8xf32>
    "tpu.trace_start"() <{level = 10 : i32, message = "bqd,bkd->bqk"}> : () -> ()
    %cst_34 = arith.constant dense<0.000000e+00> : vector<2x8x8xf32>
    %118 = tpu.matmul %113, %115, %cst_34 {dimension_numbers = #tpu.dot_dimension_numbers<[2], [2], [1], [1], [0, 0, 0, 1, 1, 1], [0], [0]>} : vector<2x8x8xf32>, vector<2x8x8xf32>, vector<2x8x8xf32> -> vector<2x8x8xf32>
    "tpu.trace_stop"() : () -> ()
    %cst_35 = arith.constant 0.353553385 : f32
    %119 = vector.broadcast %cst_35 : f32 to vector<2x8x8xf32>
    %120 = arith.mulf %118, %119 : vector<2x8x8xf32>
    %cst_36 = arith.constant -1.000000e+30 : f32
    %121 = vector.shape_cast %34 : vector<2x1x8xi1> to vector<2x1x8xi1>
    %122 = vector.broadcast %121 : vector<2x1x8xi1> to vector<2x8x8xi1>
    %123 = vector.broadcast %cst_36 : f32 to vector<2x8x8xf32>
    %124 = arith.select %122, %120, %123 : vector<2x8x8xi1>, vector<2x8x8xf32>
    %cst_37 = arith.constant dense<0xFF800000> : vector<2x8xf32>
    %125 = vector.multi_reduction <maximumf>, %124, %cst_37 [2] : vector<2x8x8xf32> to vector<2x8xf32>
    %126 = vector.shape_cast %125 : vector<2x8xf32> to vector<2x8x1xf32>
    %127 = vector.broadcast %126 : vector<2x8x1xf32> to vector<2x8x8xf32>
    %128 = arith.subf %124, %127 : vector<2x8x8xf32>
    %129 = math.exp %128 : vector<2x8x8xf32>
    %cst_38 = arith.constant dense<0.000000e+00> : vector<2x8xf32>
    %130 = vector.multi_reduction <add>, %129, %cst_38 [2] : vector<2x8x8xf32> to vector<2x8xf32>
    %131 = vector.shape_cast %130 : vector<2x8xf32> to vector<2x8x1xf32>
    %132 = vector.broadcast %131 : vector<2x8x1xf32> to vector<2x8x8xf32>
    %133 = arith.divf %129, %132 : vector<2x8x8xf32>
    "tpu.trace_start"() <{level = 10 : i32, message = "bqk,bkd->bqd"}> : () -> ()
    %cst_39 = arith.constant dense<0.000000e+00> : vector<2x8x8xf32>
    %134 = tpu.matmul %133, %117, %cst_39 {dimension_numbers = #tpu.dot_dimension_numbers<[2], [1], [1], [2], [0, 0, 0, 1, 1, 2], [0], [0]>} : vector<2x8x8xf32>, vector<2x8x8xf32>, vector<2x8x8xf32> -> vector<2x8x8xf32>
    "tpu.trace_stop"() : () -> ()
    %135 = tpu.concatenate %65, %88, %111, %134 in 2 : vector<2x8x8xf32>, vector<2x8x8xf32>, vector<2x8x8xf32>, vector<2x8x8xf32> -> vector<2x8x32xf32>
    %136 = vector.shape_cast %135 : vector<2x8x32xf32> to vector<16x32xf32>
    %c48 = arith.constant 48 : index
    %c0_40 = arith.constant 0 : index
    %137 = vector.load %arg3[%c48, %c0_40] : memref<400x128xf32, #tpu.memory_space<vmem>>, vector<32x32xf32>
    %cst_41 = arith.constant dense<0.000000e+00> : vector<16x32xf32>
    %138 = tpu.matmul %136, %137, %cst_41 {dimension_numbers = #tpu.dot_dimension_numbers<[1], [0], [0], [1], [0, 0, 1, 1], [], []>} : vector<16x32xf32>, vector<32x32xf32>, vector<16x32xf32> -> vector<16x32xf32>
    %c5 = arith.constant 5 : index
    %c0_42 = arith.constant 0 : index
    %139 = vector.load %arg4[%c5, %c0_42] : memref<24x128xf32, #tpu.memory_space<vmem>>, vector<1x32xf32>
    %140 = vector.broadcast %139 : vector<1x32xf32> to vector<16x32xf32>
    %141 = arith.addf %138, %140 : vector<16x32xf32>
    %142 = arith.addf %141, %31 : vector<16x32xf32>
    %c8 = arith.constant 8 : index
    %c0_43 = arith.constant 0 : index
    %143 = vector.load %arg4[%c8, %c0_43] : memref<24x128xf32, #tpu.memory_space<vmem>>, vector<1x32xf32>
    %c9 = arith.constant 9 : index
    %c0_44 = arith.constant 0 : index
    %144 = vector.load %arg4[%c9, %c0_44] : memref<24x128xf32, #tpu.memory_space<vmem>>, vector<1x32xf32>
    %cst_45 = arith.constant dense<0.000000e+00> : vector<16xf32>
    %145 = vector.multi_reduction <add>, %142, %cst_45 [1] : vector<16x32xf32> to vector<16xf32>
    %146 = vector.shape_cast %145 : vector<16xf32> to vector<16x1xf32>
    %cst_46 = arith.constant 3.200000e+01 : f32
    %147 = vector.broadcast %cst_46 : f32 to vector<16x1xf32>
    %148 = arith.divf %146, %147 : vector<16x1xf32>
    %149 = vector.broadcast %148 : vector<16x1xf32> to vector<16x32xf32>
    %150 = arith.subf %142, %149 : vector<16x32xf32>
    %151 = arith.mulf %150, %150 : vector<16x32xf32>
    %cst_47 = arith.constant dense<0.000000e+00> : vector<16xf32>
    %152 = vector.multi_reduction <add>, %151, %cst_47 [1] : vector<16x32xf32> to vector<16xf32>
    %153 = vector.shape_cast %152 : vector<16xf32> to vector<16x1xf32>
    %cst_48 = arith.constant 3.200000e+01 : f32
    %154 = vector.broadcast %cst_48 : f32 to vector<16x1xf32>
    %155 = arith.divf %153, %154 : vector<16x1xf32>
    %156 = vector.broadcast %148 : vector<16x1xf32> to vector<16x32xf32>
    %157 = arith.subf %142, %156 : vector<16x32xf32>
    %cst_49 = arith.constant 9.99999974E-6 : f32
    %158 = vector.broadcast %cst_49 : f32 to vector<16x1xf32>
    %159 = arith.addf %155, %158 : vector<16x1xf32>
    %160 = math.rsqrt %159 : vector<16x1xf32>
    %161 = vector.broadcast %160 : vector<16x1xf32> to vector<16x32xf32>
    %162 = arith.mulf %157, %161 : vector<16x32xf32>
    %163 = vector.broadcast %143 : vector<1x32xf32> to vector<16x32xf32>
    %164 = arith.mulf %162, %163 : vector<16x32xf32>
    %165 = vector.broadcast %144 : vector<1x32xf32> to vector<16x32xf32>
    %166 = arith.addf %164, %165 : vector<16x32xf32>
    %c80 = arith.constant 80 : index
    %c0_50 = arith.constant 0 : index
    %167 = vector.load %arg3[%c80, %c0_50] : memref<400x128xf32, #tpu.memory_space<vmem>>, vector<32x64xf32>
    %cst_51 = arith.constant dense<0.000000e+00> : vector<16x64xf32>
    %168 = tpu.matmul %166, %167, %cst_51 {dimension_numbers = #tpu.dot_dimension_numbers<[1], [0], [0], [1], [0, 0, 1, 1], [], []>} : vector<16x32xf32>, vector<32x64xf32>, vector<16x64xf32> -> vector<16x64xf32>
    %c6 = arith.constant 6 : index
    %c0_52 = arith.constant 0 : index
    %169 = vector.load %arg4[%c6, %c0_52] : memref<24x128xf32, #tpu.memory_space<vmem>>, vector<1x64xf32>
    %170 = vector.broadcast %169 : vector<1x64xf32> to vector<16x64xf32>
    %171 = arith.addf %168, %170 : vector<16x64xf32>
    %cst_53 = arith.constant 0.000000e+00 : f32
    %172 = vector.broadcast %cst_53 : f32 to vector<16x64xf32>
    %173 = arith.maximumf %171, %172 : vector<16x64xf32>
    %c112 = arith.constant 112 : index
    %c0_54 = arith.constant 0 : index
    %174 = vector.load %arg3[%c112, %c0_54] : memref<400x128xf32, #tpu.memory_space<vmem>>, vector<64x32xf32>
    %cst_55 = arith.constant dense<0.000000e+00> : vector<16x32xf32>
    %175 = tpu.matmul %173, %174, %cst_55 {dimension_numbers = #tpu.dot_dimension_numbers<[1], [0], [0], [1], [0, 0, 1, 1], [], []>} : vector<16x64xf32>, vector<64x32xf32>, vector<16x32xf32> -> vector<16x32xf32>
    %c7 = arith.constant 7 : index
    %c0_56 = arith.constant 0 : index
    %176 = vector.load %arg4[%c7, %c0_56] : memref<24x128xf32, #tpu.memory_space<vmem>>, vector<1x32xf32>
    %177 = vector.broadcast %176 : vector<1x32xf32> to vector<16x32xf32>
    %178 = arith.addf %175, %177 : vector<16x32xf32>
    %179 = arith.addf %178, %166 : vector<16x32xf32>
    %c10 = arith.constant 10 : index
    %c0_57 = arith.constant 0 : index
    %180 = vector.load %arg4[%c10, %c0_57] : memref<24x128xf32, #tpu.memory_space<vmem>>, vector<1x32xf32>
    %c11 = arith.constant 11 : index
    %c0_58 = arith.constant 0 : index
    %181 = vector.load %arg4[%c11, %c0_58] : memref<24x128xf32, #tpu.memory_space<vmem>>, vector<1x32xf32>
    %cst_59 = arith.constant dense<0.000000e+00> : vector<16xf32>
    %182 = vector.multi_reduction <add>, %179, %cst_59 [1] : vector<16x32xf32> to vector<16xf32>
    %183 = vector.shape_cast %182 : vector<16xf32> to vector<16x1xf32>
    %cst_60 = arith.constant 3.200000e+01 : f32
    %184 = vector.broadcast %cst_60 : f32 to vector<16x1xf32>
    %185 = arith.divf %183, %184 : vector<16x1xf32>
    %186 = vector.broadcast %185 : vector<16x1xf32> to vector<16x32xf32>
    %187 = arith.subf %179, %186 : vector<16x32xf32>
    %188 = arith.mulf %187, %187 : vector<16x32xf32>
    %cst_61 = arith.constant dense<0.000000e+00> : vector<16xf32>
    %189 = vector.multi_reduction <add>, %188, %cst_61 [1] : vector<16x32xf32> to vector<16xf32>
    %190 = vector.shape_cast %189 : vector<16xf32> to vector<16x1xf32>
    %cst_62 = arith.constant 3.200000e+01 : f32
    %191 = vector.broadcast %cst_62 : f32 to vector<16x1xf32>
    %192 = arith.divf %190, %191 : vector<16x1xf32>
    %193 = vector.broadcast %185 : vector<16x1xf32> to vector<16x32xf32>
    %194 = arith.subf %179, %193 : vector<16x32xf32>
    %cst_63 = arith.constant 9.99999974E-6 : f32
    %195 = vector.broadcast %cst_63 : f32 to vector<16x1xf32>
    %196 = arith.addf %192, %195 : vector<16x1xf32>
    %197 = math.rsqrt %196 : vector<16x1xf32>
    %198 = vector.broadcast %197 : vector<16x1xf32> to vector<16x32xf32>
    %199 = arith.mulf %194, %198 : vector<16x32xf32>
    %200 = vector.broadcast %180 : vector<1x32xf32> to vector<16x32xf32>
    %201 = arith.mulf %199, %200 : vector<16x32xf32>
    %202 = vector.broadcast %181 : vector<1x32xf32> to vector<16x32xf32>
    %203 = arith.addf %201, %202 : vector<16x32xf32>
    %c176 = arith.constant 176 : index
    %c0_64 = arith.constant 0 : index
    %204 = vector.load %arg3[%c176, %c0_64] : memref<400x128xf32, #tpu.memory_space<vmem>>, vector<32x96xf32>
    %cst_65 = arith.constant dense<0.000000e+00> : vector<16x96xf32>
    %205 = tpu.matmul %203, %204, %cst_65 {dimension_numbers = #tpu.dot_dimension_numbers<[1], [0], [0], [1], [0, 0, 1, 1], [], []>} : vector<16x32xf32>, vector<32x96xf32>, vector<16x96xf32> -> vector<16x96xf32>
    %c12 = arith.constant 12 : index
    %c0_66 = arith.constant 0 : index
    %206 = vector.load %arg4[%c12, %c0_66] : memref<24x128xf32, #tpu.memory_space<vmem>>, vector<1x96xf32>
    %207 = vector.broadcast %206 : vector<1x96xf32> to vector<16x96xf32>
    %208 = arith.addf %205, %207 : vector<16x96xf32>
    %209 = vector.extract_strided_slice %208 {offsets = [0, 0], sizes = [16, 32], strides = [1, 1]} : vector<16x96xf32> to vector<16x32xf32>
    %210 = vector.extract_strided_slice %208 {offsets = [0, 32], sizes = [16, 32], strides = [1, 1]} : vector<16x96xf32> to vector<16x32xf32>
    %211 = vector.extract_strided_slice %208 {offsets = [0, 64], sizes = [16, 32], strides = [1, 1]} : vector<16x96xf32> to vector<16x32xf32>
    %212 = vector.extract_strided_slice %209 {offsets = [0, 0], sizes = [16, 8], strides = [1, 1]} : vector<16x32xf32> to vector<16x8xf32>
    %213 = vector.shape_cast %212 : vector<16x8xf32> to vector<2x8x8xf32>
    %214 = vector.extract_strided_slice %210 {offsets = [0, 0], sizes = [16, 8], strides = [1, 1]} : vector<16x32xf32> to vector<16x8xf32>
    %215 = vector.shape_cast %214 : vector<16x8xf32> to vector<2x8x8xf32>
    %216 = vector.extract_strided_slice %211 {offsets = [0, 0], sizes = [16, 8], strides = [1, 1]} : vector<16x32xf32> to vector<16x8xf32>
    %217 = vector.shape_cast %216 : vector<16x8xf32> to vector<2x8x8xf32>
    "tpu.trace_start"() <{level = 10 : i32, message = "bqd,bkd->bqk"}> : () -> ()
    %cst_67 = arith.constant dense<0.000000e+00> : vector<2x8x8xf32>
    %218 = tpu.matmul %213, %215, %cst_67 {dimension_numbers = #tpu.dot_dimension_numbers<[2], [2], [1], [1], [0, 0, 0, 1, 1, 1], [0], [0]>} : vector<2x8x8xf32>, vector<2x8x8xf32>, vector<2x8x8xf32> -> vector<2x8x8xf32>
    "tpu.trace_stop"() : () -> ()
    %cst_68 = arith.constant 0.353553385 : f32
    %219 = vector.broadcast %cst_68 : f32 to vector<2x8x8xf32>
    %220 = arith.mulf %218, %219 : vector<2x8x8xf32>
    %cst_69 = arith.constant -1.000000e+30 : f32
    %221 = vector.shape_cast %34 : vector<2x1x8xi1> to vector<2x1x8xi1>
    %222 = vector.broadcast %221 : vector<2x1x8xi1> to vector<2x8x8xi1>
    %223 = vector.broadcast %cst_69 : f32 to vector<2x8x8xf32>
    %224 = arith.select %222, %220, %223 : vector<2x8x8xi1>, vector<2x8x8xf32>
    %cst_70 = arith.constant dense<0xFF800000> : vector<2x8xf32>
    %225 = vector.multi_reduction <maximumf>, %224, %cst_70 [2] : vector<2x8x8xf32> to vector<2x8xf32>
    %226 = vector.shape_cast %225 : vector<2x8xf32> to vector<2x8x1xf32>
    %227 = vector.broadcast %226 : vector<2x8x1xf32> to vector<2x8x8xf32>
    %228 = arith.subf %224, %227 : vector<2x8x8xf32>
    %229 = math.exp %228 : vector<2x8x8xf32>
    %cst_71 = arith.constant dense<0.000000e+00> : vector<2x8xf32>
    %230 = vector.multi_reduction <add>, %229, %cst_71 [2] : vector<2x8x8xf32> to vector<2x8xf32>
    %231 = vector.shape_cast %230 : vector<2x8xf32> to vector<2x8x1xf32>
    %232 = vector.broadcast %231 : vector<2x8x1xf32> to vector<2x8x8xf32>
    %233 = arith.divf %229, %232 : vector<2x8x8xf32>
    "tpu.trace_start"() <{level = 10 : i32, message = "bqk,bkd->bqd"}> : () -> ()
    %cst_72 = arith.constant dense<0.000000e+00> : vector<2x8x8xf32>
    %234 = tpu.matmul %233, %217, %cst_72 {dimension_numbers = #tpu.dot_dimension_numbers<[2], [1], [1], [2], [0, 0, 0, 1, 1, 2], [0], [0]>} : vector<2x8x8xf32>, vector<2x8x8xf32>, vector<2x8x8xf32> -> vector<2x8x8xf32>
    "tpu.trace_stop"() : () -> ()
    %235 = vector.extract_strided_slice %209 {offsets = [0, 8], sizes = [16, 8], strides = [1, 1]} : vector<16x32xf32> to vector<16x8xf32>
    %236 = vector.shape_cast %235 : vector<16x8xf32> to vector<2x8x8xf32>
    %237 = vector.extract_strided_slice %210 {offsets = [0, 8], sizes = [16, 8], strides = [1, 1]} : vector<16x32xf32> to vector<16x8xf32>
    %238 = vector.shape_cast %237 : vector<16x8xf32> to vector<2x8x8xf32>
    %239 = vector.extract_strided_slice %211 {offsets = [0, 8], sizes = [16, 8], strides = [1, 1]} : vector<16x32xf32> to vector<16x8xf32>
    %240 = vector.shape_cast %239 : vector<16x8xf32> to vector<2x8x8xf32>
    "tpu.trace_start"() <{level = 10 : i32, message = "bqd,bkd->bqk"}> : () -> ()
    %cst_73 = arith.constant dense<0.000000e+00> : vector<2x8x8xf32>
    %241 = tpu.matmul %236, %238, %cst_73 {dimension_numbers = #tpu.dot_dimension_numbers<[2], [2], [1], [1], [0, 0, 0, 1, 1, 1], [0], [0]>} : vector<2x8x8xf32>, vector<2x8x8xf32>, vector<2x8x8xf32> -> vector<2x8x8xf32>
    "tpu.trace_stop"() : () -> ()
    %cst_74 = arith.constant 0.353553385 : f32
    %242 = vector.broadcast %cst_74 : f32 to vector<2x8x8xf32>
    %243 = arith.mulf %241, %242 : vector<2x8x8xf32>
    %cst_75 = arith.constant -1.000000e+30 : f32
    %244 = vector.shape_cast %34 : vector<2x1x8xi1> to vector<2x1x8xi1>
    %245 = vector.broadcast %244 : vector<2x1x8xi1> to vector<2x8x8xi1>
    %246 = vector.broadcast %cst_75 : f32 to vector<2x8x8xf32>
    %247 = arith.select %245, %243, %246 : vector<2x8x8xi1>, vector<2x8x8xf32>
    %cst_76 = arith.constant dense<0xFF800000> : vector<2x8xf32>
    %248 = vector.multi_reduction <maximumf>, %247, %cst_76 [2] : vector<2x8x8xf32> to vector<2x8xf32>
    %249 = vector.shape_cast %248 : vector<2x8xf32> to vector<2x8x1xf32>
    %250 = vector.broadcast %249 : vector<2x8x1xf32> to vector<2x8x8xf32>
    %251 = arith.subf %247, %250 : vector<2x8x8xf32>
    %252 = math.exp %251 : vector<2x8x8xf32>
    %cst_77 = arith.constant dense<0.000000e+00> : vector<2x8xf32>
    %253 = vector.multi_reduction <add>, %252, %cst_77 [2] : vector<2x8x8xf32> to vector<2x8xf32>
    %254 = vector.shape_cast %253 : vector<2x8xf32> to vector<2x8x1xf32>
    %255 = vector.broadcast %254 : vector<2x8x1xf32> to vector<2x8x8xf32>
    %256 = arith.divf %252, %255 : vector<2x8x8xf32>
    "tpu.trace_start"() <{level = 10 : i32, message = "bqk,bkd->bqd"}> : () -> ()
    %cst_78 = arith.constant dense<0.000000e+00> : vector<2x8x8xf32>
    %257 = tpu.matmul %256, %240, %cst_78 {dimension_numbers = #tpu.dot_dimension_numbers<[2], [1], [1], [2], [0, 0, 0, 1, 1, 2], [0], [0]>} : vector<2x8x8xf32>, vector<2x8x8xf32>, vector<2x8x8xf32> -> vector<2x8x8xf32>
    "tpu.trace_stop"() : () -> ()
    %258 = vector.extract_strided_slice %209 {offsets = [0, 16], sizes = [16, 8], strides = [1, 1]} : vector<16x32xf32> to vector<16x8xf32>
    %259 = vector.shape_cast %258 : vector<16x8xf32> to vector<2x8x8xf32>
    %260 = vector.extract_strided_slice %210 {offsets = [0, 16], sizes = [16, 8], strides = [1, 1]} : vector<16x32xf32> to vector<16x8xf32>
    %261 = vector.shape_cast %260 : vector<16x8xf32> to vector<2x8x8xf32>
    %262 = vector.extract_strided_slice %211 {offsets = [0, 16], sizes = [16, 8], strides = [1, 1]} : vector<16x32xf32> to vector<16x8xf32>
    %263 = vector.shape_cast %262 : vector<16x8xf32> to vector<2x8x8xf32>
    "tpu.trace_start"() <{level = 10 : i32, message = "bqd,bkd->bqk"}> : () -> ()
    %cst_79 = arith.constant dense<0.000000e+00> : vector<2x8x8xf32>
    %264 = tpu.matmul %259, %261, %cst_79 {dimension_numbers = #tpu.dot_dimension_numbers<[2], [2], [1], [1], [0, 0, 0, 1, 1, 1], [0], [0]>} : vector<2x8x8xf32>, vector<2x8x8xf32>, vector<2x8x8xf32> -> vector<2x8x8xf32>
    "tpu.trace_stop"() : () -> ()
    %cst_80 = arith.constant 0.353553385 : f32
    %265 = vector.broadcast %cst_80 : f32 to vector<2x8x8xf32>
    %266 = arith.mulf %264, %265 : vector<2x8x8xf32>
    %cst_81 = arith.constant -1.000000e+30 : f32
    %267 = vector.shape_cast %34 : vector<2x1x8xi1> to vector<2x1x8xi1>
    %268 = vector.broadcast %267 : vector<2x1x8xi1> to vector<2x8x8xi1>
    %269 = vector.broadcast %cst_81 : f32 to vector<2x8x8xf32>
    %270 = arith.select %268, %266, %269 : vector<2x8x8xi1>, vector<2x8x8xf32>
    %cst_82 = arith.constant dense<0xFF800000> : vector<2x8xf32>
    %271 = vector.multi_reduction <maximumf>, %270, %cst_82 [2] : vector<2x8x8xf32> to vector<2x8xf32>
    %272 = vector.shape_cast %271 : vector<2x8xf32> to vector<2x8x1xf32>
    %273 = vector.broadcast %272 : vector<2x8x1xf32> to vector<2x8x8xf32>
    %274 = arith.subf %270, %273 : vector<2x8x8xf32>
    %275 = math.exp %274 : vector<2x8x8xf32>
    %cst_83 = arith.constant dense<0.000000e+00> : vector<2x8xf32>
    %276 = vector.multi_reduction <add>, %275, %cst_83 [2] : vector<2x8x8xf32> to vector<2x8xf32>
    %277 = vector.shape_cast %276 : vector<2x8xf32> to vector<2x8x1xf32>
    %278 = vector.broadcast %277 : vector<2x8x1xf32> to vector<2x8x8xf32>
    %279 = arith.divf %275, %278 : vector<2x8x8xf32>
    "tpu.trace_start"() <{level = 10 : i32, message = "bqk,bkd->bqd"}> : () -> ()
    %cst_84 = arith.constant dense<0.000000e+00> : vector<2x8x8xf32>
    %280 = tpu.matmul %279, %263, %cst_84 {dimension_numbers = #tpu.dot_dimension_numbers<[2], [1], [1], [2], [0, 0, 0, 1, 1, 2], [0], [0]>} : vector<2x8x8xf32>, vector<2x8x8xf32>, vector<2x8x8xf32> -> vector<2x8x8xf32>
    "tpu.trace_stop"() : () -> ()
    %281 = vector.extract_strided_slice %209 {offsets = [0, 24], sizes = [16, 8], strides = [1, 1]} : vector<16x32xf32> to vector<16x8xf32>
    %282 = vector.shape_cast %281 : vector<16x8xf32> to vector<2x8x8xf32>
    %283 = vector.extract_strided_slice %210 {offsets = [0, 24], sizes = [16, 8], strides = [1, 1]} : vector<16x32xf32> to vector<16x8xf32>
    %284 = vector.shape_cast %283 : vector<16x8xf32> to vector<2x8x8xf32>
    %285 = vector.extract_strided_slice %211 {offsets = [0, 24], sizes = [16, 8], strides = [1, 1]} : vector<16x32xf32> to vector<16x8xf32>
    %286 = vector.shape_cast %285 : vector<16x8xf32> to vector<2x8x8xf32>
    "tpu.trace_start"() <{level = 10 : i32, message = "bqd,bkd->bqk"}> : () -> ()
    %cst_85 = arith.constant dense<0.000000e+00> : vector<2x8x8xf32>
    %287 = tpu.matmul %282, %284, %cst_85 {dimension_numbers = #tpu.dot_dimension_numbers<[2], [2], [1], [1], [0, 0, 0, 1, 1, 1], [0], [0]>} : vector<2x8x8xf32>, vector<2x8x8xf32>, vector<2x8x8xf32> -> vector<2x8x8xf32>
    "tpu.trace_stop"() : () -> ()
    %cst_86 = arith.constant 0.353553385 : f32
    %288 = vector.broadcast %cst_86 : f32 to vector<2x8x8xf32>
    %289 = arith.mulf %287, %288 : vector<2x8x8xf32>
    %cst_87 = arith.constant -1.000000e+30 : f32
    %290 = vector.shape_cast %34 : vector<2x1x8xi1> to vector<2x1x8xi1>
    %291 = vector.broadcast %290 : vector<2x1x8xi1> to vector<2x8x8xi1>
    %292 = vector.broadcast %cst_87 : f32 to vector<2x8x8xf32>
    %293 = arith.select %291, %289, %292 : vector<2x8x8xi1>, vector<2x8x8xf32>
    %cst_88 = arith.constant dense<0xFF800000> : vector<2x8xf32>
    %294 = vector.multi_reduction <maximumf>, %293, %cst_88 [2] : vector<2x8x8xf32> to vector<2x8xf32>
    %295 = vector.shape_cast %294 : vector<2x8xf32> to vector<2x8x1xf32>
    %296 = vector.broadcast %295 : vector<2x8x1xf32> to vector<2x8x8xf32>
    %297 = arith.subf %293, %296 : vector<2x8x8xf32>
    %298 = math.exp %297 : vector<2x8x8xf32>
    %cst_89 = arith.constant dense<0.000000e+00> : vector<2x8xf32>
    %299 = vector.multi_reduction <add>, %298, %cst_89 [2] : vector<2x8x8xf32> to vector<2x8xf32>
    %300 = vector.shape_cast %299 : vector<2x8xf32> to vector<2x8x1xf32>
    %301 = vector.broadcast %300 : vector<2x8x1xf32> to vector<2x8x8xf32>
    %302 = arith.divf %298, %301 : vector<2x8x8xf32>
    "tpu.trace_start"() <{level = 10 : i32, message = "bqk,bkd->bqd"}> : () -> ()
    %cst_90 = arith.constant dense<0.000000e+00> : vector<2x8x8xf32>
    %303 = tpu.matmul %302, %286, %cst_90 {dimension_numbers = #tpu.dot_dimension_numbers<[2], [1], [1], [2], [0, 0, 0, 1, 1, 2], [0], [0]>} : vector<2x8x8xf32>, vector<2x8x8xf32>, vector<2x8x8xf32> -> vector<2x8x8xf32>
    "tpu.trace_stop"() : () -> ()
    %304 = tpu.concatenate %234, %257, %280, %303 in 2 : vector<2x8x8xf32>, vector<2x8x8xf32>, vector<2x8x8xf32>, vector<2x8x8xf32> -> vector<2x8x32xf32>
    %305 = vector.shape_cast %304 : vector<2x8x32xf32> to vector<16x32xf32>
    %c208 = arith.constant 208 : index
    %c0_91 = arith.constant 0 : index
    %306 = vector.load %arg3[%c208, %c0_91] : memref<400x128xf32, #tpu.memory_space<vmem>>, vector<32x32xf32>
    %cst_92 = arith.constant dense<0.000000e+00> : vector<16x32xf32>
    %307 = tpu.matmul %305, %306, %cst_92 {dimension_numbers = #tpu.dot_dimension_numbers<[1], [0], [0], [1], [0, 0, 1, 1], [], []>} : vector<16x32xf32>, vector<32x32xf32>, vector<16x32xf32> -> vector<16x32xf32>
    %c13 = arith.constant 13 : index
    %c0_93 = arith.constant 0 : index
    %308 = vector.load %arg4[%c13, %c0_93] : memref<24x128xf32, #tpu.memory_space<vmem>>, vector<1x32xf32>
    %309 = vector.broadcast %308 : vector<1x32xf32> to vector<16x32xf32>
    %310 = arith.addf %307, %309 : vector<16x32xf32>
    %311 = arith.addf %310, %203 : vector<16x32xf32>
    %c16_94 = arith.constant 16 : index
    %c0_95 = arith.constant 0 : index
    %312 = vector.load %arg4[%c16_94, %c0_95] : memref<24x128xf32, #tpu.memory_space<vmem>>, vector<1x32xf32>
    %c17 = arith.constant 17 : index
    %c0_96 = arith.constant 0 : index
    %313 = vector.load %arg4[%c17, %c0_96] : memref<24x128xf32, #tpu.memory_space<vmem>>, vector<1x32xf32>
    %cst_97 = arith.constant dense<0.000000e+00> : vector<16xf32>
    %314 = vector.multi_reduction <add>, %311, %cst_97 [1] : vector<16x32xf32> to vector<16xf32>
    %315 = vector.shape_cast %314 : vector<16xf32> to vector<16x1xf32>
    %cst_98 = arith.constant 3.200000e+01 : f32
    %316 = vector.broadcast %cst_98 : f32 to vector<16x1xf32>
    %317 = arith.divf %315, %316 : vector<16x1xf32>
    %318 = vector.broadcast %317 : vector<16x1xf32> to vector<16x32xf32>
    %319 = arith.subf %311, %318 : vector<16x32xf32>
    %320 = arith.mulf %319, %319 : vector<16x32xf32>
    %cst_99 = arith.constant dense<0.000000e+00> : vector<16xf32>
    %321 = vector.multi_reduction <add>, %320, %cst_99 [1] : vector<16x32xf32> to vector<16xf32>
    %322 = vector.shape_cast %321 : vector<16xf32> to vector<16x1xf32>
    %cst_100 = arith.constant 3.200000e+01 : f32
    %323 = vector.broadcast %cst_100 : f32 to vector<16x1xf32>
    %324 = arith.divf %322, %323 : vector<16x1xf32>
    %325 = vector.broadcast %317 : vector<16x1xf32> to vector<16x32xf32>
    %326 = arith.subf %311, %325 : vector<16x32xf32>
    %cst_101 = arith.constant 9.99999974E-6 : f32
    %327 = vector.broadcast %cst_101 : f32 to vector<16x1xf32>
    %328 = arith.addf %324, %327 : vector<16x1xf32>
    %329 = math.rsqrt %328 : vector<16x1xf32>
    %330 = vector.broadcast %329 : vector<16x1xf32> to vector<16x32xf32>
    %331 = arith.mulf %326, %330 : vector<16x32xf32>
    %332 = vector.broadcast %312 : vector<1x32xf32> to vector<16x32xf32>
    %333 = arith.mulf %331, %332 : vector<16x32xf32>
    %334 = vector.broadcast %313 : vector<1x32xf32> to vector<16x32xf32>
    %335 = arith.addf %333, %334 : vector<16x32xf32>
    %c240 = arith.constant 240 : index
    %c0_102 = arith.constant 0 : index
    %336 = vector.load %arg3[%c240, %c0_102] : memref<400x128xf32, #tpu.memory_space<vmem>>, vector<32x64xf32>
    %cst_103 = arith.constant dense<0.000000e+00> : vector<16x64xf32>
    %337 = tpu.matmul %335, %336, %cst_103 {dimension_numbers = #tpu.dot_dimension_numbers<[1], [0], [0], [1], [0, 0, 1, 1], [], []>} : vector<16x32xf32>, vector<32x64xf32>, vector<16x64xf32> -> vector<16x64xf32>
    %c14 = arith.constant 14 : index
    %c0_104 = arith.constant 0 : index
    %338 = vector.load %arg4[%c14, %c0_104] : memref<24x128xf32, #tpu.memory_space<vmem>>, vector<1x64xf32>
    %339 = vector.broadcast %338 : vector<1x64xf32> to vector<16x64xf32>
    %340 = arith.addf %337, %339 : vector<16x64xf32>
    %cst_105 = arith.constant 0.000000e+00 : f32
    %341 = vector.broadcast %cst_105 : f32 to vector<16x64xf32>
    %342 = arith.maximumf %340, %341 : vector<16x64xf32>
    %c272 = arith.constant 272 : index
    %c0_106 = arith.constant 0 : index
    %343 = vector.load %arg3[%c272, %c0_106] : memref<400x128xf32, #tpu.memory_space<vmem>>, vector<64x32xf32>
    %cst_107 = arith.constant dense<0.000000e+00> : vector<16x32xf32>
    %344 = tpu.matmul %342, %343, %cst_107 {dimension_numbers = #tpu.dot_dimension_numbers<[1], [0], [0], [1], [0, 0, 1, 1], [], []>} : vector<16x64xf32>, vector<64x32xf32>, vector<16x32xf32> -> vector<16x32xf32>
    %c15 = arith.constant 15 : index
    %c0_108 = arith.constant 0 : index
    %345 = vector.load %arg4[%c15, %c0_108] : memref<24x128xf32, #tpu.memory_space<vmem>>, vector<1x32xf32>
    %346 = vector.broadcast %345 : vector<1x32xf32> to vector<16x32xf32>
    %347 = arith.addf %344, %346 : vector<16x32xf32>
    %348 = arith.addf %347, %335 : vector<16x32xf32>
    %c18 = arith.constant 18 : index
    %c0_109 = arith.constant 0 : index
    %349 = vector.load %arg4[%c18, %c0_109] : memref<24x128xf32, #tpu.memory_space<vmem>>, vector<1x32xf32>
    %c19 = arith.constant 19 : index
    %c0_110 = arith.constant 0 : index
    %350 = vector.load %arg4[%c19, %c0_110] : memref<24x128xf32, #tpu.memory_space<vmem>>, vector<1x32xf32>
    %cst_111 = arith.constant dense<0.000000e+00> : vector<16xf32>
    %351 = vector.multi_reduction <add>, %348, %cst_111 [1] : vector<16x32xf32> to vector<16xf32>
    %352 = vector.shape_cast %351 : vector<16xf32> to vector<16x1xf32>
    %cst_112 = arith.constant 3.200000e+01 : f32
    %353 = vector.broadcast %cst_112 : f32 to vector<16x1xf32>
    %354 = arith.divf %352, %353 : vector<16x1xf32>
    %355 = vector.broadcast %354 : vector<16x1xf32> to vector<16x32xf32>
    %356 = arith.subf %348, %355 : vector<16x32xf32>
    %357 = arith.mulf %356, %356 : vector<16x32xf32>
    %cst_113 = arith.constant dense<0.000000e+00> : vector<16xf32>
    %358 = vector.multi_reduction <add>, %357, %cst_113 [1] : vector<16x32xf32> to vector<16xf32>
    %359 = vector.shape_cast %358 : vector<16xf32> to vector<16x1xf32>
    %cst_114 = arith.constant 3.200000e+01 : f32
    %360 = vector.broadcast %cst_114 : f32 to vector<16x1xf32>
    %361 = arith.divf %359, %360 : vector<16x1xf32>
    %362 = vector.broadcast %354 : vector<16x1xf32> to vector<16x32xf32>
    %363 = arith.subf %348, %362 : vector<16x32xf32>
    %cst_115 = arith.constant 9.99999974E-6 : f32
    %364 = vector.broadcast %cst_115 : f32 to vector<16x1xf32>
    %365 = arith.addf %361, %364 : vector<16x1xf32>
    %366 = math.rsqrt %365 : vector<16x1xf32>
    %367 = vector.broadcast %366 : vector<16x1xf32> to vector<16x32xf32>
    %368 = arith.mulf %363, %367 : vector<16x32xf32>
    %369 = vector.broadcast %349 : vector<1x32xf32> to vector<16x32xf32>
    %370 = arith.mulf %368, %369 : vector<16x32xf32>
    %371 = vector.broadcast %350 : vector<1x32xf32> to vector<16x32xf32>
    %372 = arith.addf %370, %371 : vector<16x32xf32>
    %c336 = arith.constant 336 : index
    %c0_116 = arith.constant 0 : index
    %373 = vector.load %arg3[%c336, %c0_116] : memref<400x128xf32, #tpu.memory_space<vmem>>, vector<32x32xf32>
    %cst_117 = arith.constant dense<0.000000e+00> : vector<16x32xf32>
    %374 = tpu.matmul %372, %373, %cst_117 {dimension_numbers = #tpu.dot_dimension_numbers<[1], [0], [0], [1], [0, 0, 1, 1], [], []>} : vector<16x32xf32>, vector<32x32xf32>, vector<16x32xf32> -> vector<16x32xf32>
    %c20 = arith.constant 20 : index
    %c0_118 = arith.constant 0 : index
    %375 = vector.load %arg4[%c20, %c0_118] : memref<24x128xf32, #tpu.memory_space<vmem>>, vector<1x32xf32>
    %376 = vector.broadcast %375 : vector<1x32xf32> to vector<16x32xf32>
    %377 = arith.addf %374, %376 : vector<16x32xf32>
    %378 = math.tanh %377 : vector<16x32xf32>
    %c21 = arith.constant 21 : index
    %c0_119 = arith.constant 0 : index
    %379 = vector.load %arg4[%c21, %c0_119] : memref<24x128xf32, #tpu.memory_space<vmem>>, vector<1x32xf32>
    %380 = vector.broadcast %379 : vector<1x32xf32> to vector<16x32xf32>
    %381 = arith.mulf %378, %380 : vector<16x32xf32>
    %cst_120 = arith.constant dense<0.000000e+00> : vector<16xf32>
    %382 = vector.multi_reduction <add>, %381, %cst_120 [1] : vector<16x32xf32> to vector<16xf32>
    %383 = vector.shape_cast %382 : vector<16xf32> to vector<16x1xf32>
    %384 = vector.shape_cast %383 : vector<16x1xf32> to vector<2x8x1xf32>
    %385 = vector.shape_cast %2 : vector<2x8xf32> to vector<2x8x1xf32>
    %cst_121 = arith.constant 5.000000e-01 : f32
    %386 = vector.broadcast %cst_121 : f32 to vector<2x8x1xf32>
    %387 = arith.cmpf ogt, %385, %386 : vector<2x8x1xf32>
    %cst_122 = arith.constant -1.000000e+30 : f32
    %388 = vector.broadcast %cst_122 : f32 to vector<2x8x1xf32>
    %389 = arith.select %387, %384, %388 : vector<2x8x1xi1>, vector<2x8x1xf32>
    %cst_123 = arith.constant dense<0xFF800000> : vector<2x1xf32>
    %390 = vector.multi_reduction <maximumf>, %389, %cst_123 [1] : vector<2x8x1xf32> to vector<2x1xf32>
    %391 = vector.shape_cast %390 : vector<2x1xf32> to vector<2x1x1xf32>
    %cst_124 = arith.constant -5.000000e+29 : f32
    %392 = vector.broadcast %cst_124 : f32 to vector<2x1x1xf32>
    %393 = arith.cmpf ogt, %391, %392 : vector<2x1x1xf32>
    %cst_125 = arith.constant 0.000000e+00 : f32
    %394 = vector.broadcast %cst_125 : f32 to vector<2x1x1xf32>
    %395 = arith.select %393, %391, %394 : vector<2x1x1xi1>, vector<2x1x1xf32>
    %396 = vector.broadcast %395 : vector<2x1x1xf32> to vector<2x8x1xf32>
    %397 = arith.subf %384, %396 : vector<2x8x1xf32>
    %398 = math.exp %397 : vector<2x8x1xf32>
    %399 = arith.mulf %398, %385 : vector<2x8x1xf32>
    %cst_126 = arith.constant dense<0.000000e+00> : vector<2x1xf32>
    %400 = vector.multi_reduction <add>, %399, %cst_126 [1] : vector<2x8x1xf32> to vector<2x1xf32>
    %401 = vector.shape_cast %400 : vector<2x1xf32> to vector<2x1x1xf32>
    %cst_127 = arith.constant 0.000000e+00 : f32
    %402 = vector.broadcast %cst_127 : f32 to vector<2x1x1xf32>
    %403 = arith.cmpf ogt, %401, %402 : vector<2x1x1xf32>
    %cst_128 = arith.constant 1.000000e+00 : f32
    %404 = vector.broadcast %cst_128 : f32 to vector<2x1x1xf32>
    %405 = arith.select %403, %401, %404 : vector<2x1x1xi1>, vector<2x1x1xf32>
    %406 = vector.broadcast %405 : vector<2x1x1xf32> to vector<2x8x1xf32>
    %407 = arith.divf %399, %406 : vector<2x8x1xf32>
    %408 = vector.shape_cast %372 : vector<16x32xf32> to vector<2x8x32xf32>
    %409 = vector.broadcast %407 : vector<2x8x1xf32> to vector<2x8x32xf32>
    %410 = arith.mulf %409, %408 : vector<2x8x32xf32>
    %cst_129 = arith.constant dense<0.000000e+00> : vector<2x32xf32>
    %411 = vector.multi_reduction <add>, %410, %cst_129 [1] : vector<2x8x32xf32> to vector<2x32xf32>
    %c368 = arith.constant 368 : index
    %c0_130 = arith.constant 0 : index
    %412 = vector.load %arg3[%c368, %c0_130] : memref<400x128xf32, #tpu.memory_space<vmem>>, vector<32x128xf32>
    %cst_131 = arith.constant dense<0.000000e+00> : vector<2x128xf32>
    %413 = tpu.matmul %411, %412, %cst_131 {dimension_numbers = #tpu.dot_dimension_numbers<[1], [0], [0], [1], [0, 0, 1, 1], [], []>} : vector<2x32xf32>, vector<32x128xf32>, vector<2x128xf32> -> vector<2x128xf32>
    %c22 = arith.constant 22 : index
    %c0_132 = arith.constant 0 : index
    %414 = vector.load %arg4[%c22, %c0_132] : memref<24x128xf32, #tpu.memory_space<vmem>>, vector<1x128xf32>
    %415 = vector.broadcast %414 : vector<1x128xf32> to vector<2x128xf32>
    %416 = arith.addf %413, %415 : vector<2x128xf32>
    %417 = vector.shape_cast %416 : vector<2x128xf32> to vector<2x1x128xf32>
    %c0_133 = arith.constant 0 : index
    %c0_134 = arith.constant 0 : index
    %c0_135 = arith.constant 0 : index
    %418 = vector.load %arg5[%c0_133, %c0_134, %c0_135] : memref<2x1x128xf32, #tpu.memory_space<vmem>>, vector<2x1x128xf32>
    tpu.vector_store %arg5[%c0_133, %c0_134, %c0_135], %417 {strides = array<i32>} : memref<2x1x128xf32, #tpu.memory_space<vmem>>, vector<2x1x128xf32>,
    return
  }
  func.func @transform_0(%arg0: i32) -> (i32, i32, i32) {
    %c0_i32 = arith.constant 0 : i32
    %c0_i32_0 = arith.constant 0 : i32
    %c0_i32_1 = arith.constant 0 : i32
    return %arg0, %c0_i32, %c0_i32_0 : i32, i32, i32
  }
  func.func @transform_1(%arg0: i32) -> (i32, i32, i32) {
    %c0_i32 = arith.constant 0 : i32
    %c0_i32_0 = arith.constant 0 : i32
    %c0_i32_1 = arith.constant 0 : i32
    return %arg0, %c0_i32, %c0_i32_0 : i32, i32, i32
  }
  func.func @transform_2(%arg0: i32) -> (i32, i32) {
    %c0_i32 = arith.constant 0 : i32
    %c0_i32_0 = arith.constant 0 : i32
    %c0_i32_1 = arith.constant 0 : i32
    return %c0_i32, %c0_i32_0 : i32, i32
  }
  func.func @transform_3(%arg0: i32) -> (i32, i32) {
    %c0_i32 = arith.constant 0 : i32
    %c0_i32_0 = arith.constant 0 : i32
    %c0_i32_1 = arith.constant 0 : i32
    return %c0_i32, %c0_i32_0 : i32, i32
  }
  func.func @transform_4(%arg0: i32) -> (i32, i32, i32) {
    %c0_i32 = arith.constant 0 : i32
    %c0_i32_0 = arith.constant 0 : i32
    %c0_i32_1 = arith.constant 0 : i32
    return %arg0, %c0_i32, %c0_i32_0 : i32, i32, i32
  }
}

</mosaic_0001>

<llo_original>
// kernel: strats_forward.1
$region0: #{strats_forward.1}
  #allocation0 [shape = 'u32[]', space=smem, size = 0x4, offset = 0x4, fixed_abs, tag = 'smem constant byte address 0x4 - core index']
  #allocation1 [shape = 'u32[72,128]{1,0:T(1,128)}', space=vmem, size = 0x9000, scoped, tag = 'internal scratch']
  %s0 = inlined_call_operand.hbm [shape: f32[4,2,8], index: 0, kind: input, shape index: {}]
  %s1 = inlined_call_operand.vmem [shape: f32[4,1,8], index: 1, kind: input, shape index: {}]
  %s2 = inlined_call_operand.hbm [shape: f32[400,128], index: 2, kind: input, shape index: {}]
  %s3 = inlined_call_operand.hbm [shape: f32[24,128], index: 3, kind: input, shape index: {}]
  %s4 = inlined_call_operand.vmem [shape: f32[4,1,128], index: 4, kind: output, shape index: {}]
  %s5 = sld [smem:[#allocation0]]
  $region61: #{strats_forward.1} parent=0
    _
  %s7 = ssub.s32 1, %s5
  %s8 = scalar_select 0, %s7, %s5
  $region1: #{strats_forward.1} parent=0
    #allocation2 [shape = 'u8[4096]{0}', space=vmem, size = 0x1000, scoped, tag = 'input window, operand 0']
    #allocation3 [shape = 's32[2]{0}', space=sflag, size = 0x8, scoped, tag = 'scoped memory for strats_forward.1']
    #allocation4 [shape = 'u8[204800]{0}', space=vmem, size = 0x32000, scoped, tag = 'input window, operand 2, single buffered']
    #allocation5 [shape = 's32[1]{0}', space=sflag, size = 0x4, scoped, tag = 'scoped memory for strats_forward.1']
    #allocation6 [shape = 'u8[12288]{0}', space=vmem, size = 0x3000, scoped, tag = 'input window, operand 3, single buffered']
    %9 = vsyncpa [#allocation3], 0
    %s10 = scalar_lea.sflag [#allocation3], 1
    %11 = vsyncpa %s10, 0
    %12 = vsyncpa [#allocation5], 0
    loop: start=0, step=1, limit=4
    $region2: #{strats_forward.1} parent=1 // loop_pre_header
      _
    $region3: #{strats_forward.1} parent=1 // loop_header
      %s14 = sphi 0, %s18
      %p15 = scmp.ge.s32.totalorder %s14, 4
      %s24 = sphi 0, %s26
      %s27 = sphi 0, %s24
      %s28 = sphi 0, %s27
      %s44 = sphi 0, %s28
      %s50 = sphi 0, %s52
      %s53 = sphi 0, %s50
      %s54 = sphi 0, %s53
      %s70 = sphi 0, %s54
      %s74 = sphi 0, %s74
      %s76 = sphi 0, %s74
      %s77 = sphi 0, %s76
      %s91 = sphi 0, %s77
      %s95 = sphi 0, %s95
      %s97 = sphi 0, %s95
      %s98 = sphi 0, %s97
      %s112 = sphi 0, %s98
      %s118 = sphi 0, %s120
      %s121 = sphi 0, %s118
      %s122 = sphi 0, %s121
      %s138 = sphi 0, %s122
    $region4: #{strats_forward.1} parent=1 // loop_header_branch
      %17 = sbr.rel (%p15) target = $region8
    $region5: #{strats_forward.1} parent=1 // loop_body
      %s19 = ssub.s32 %s14, 1
      %s20 = ssub.s32 %s14, 2
      %s21 = sadd.s32 %s14, 1
      %s22 = ssub.s32 %s14, %s21
      %p23 = scmp.eq.s32.totalorder %s22, 0
      %s25 = sadd.s32 %s24, 1
      %s26 = scalar_select %p23, %s24, %s25
      %p29 = pneg %p23
      %p30 = scmp.eq.s32.totalorder %s14, 1
      %p31 = por %p29, %p30
      %p32 = scmp.ne.s32.totalorder %s24, %s27
      %p33 = scmp.eq.s32.totalorder %s14, 0
      %p34 = por %p32, %p33
      %p35 = scmp.ne.s32.totalorder %s24, %s27
      %p36 = scmp.eq.s32.totalorder %s19, 1
      %p37 = por %p35, %p36
      %p38 = scmp.ne.s32.totalorder %s27, %s28
      %p39 = scmp.eq.s32.totalorder %s19, 0
      %p40 = por %p38, %p39
      %p41 = scmp.ne.s32.totalorder %s27, %s28
      %p42 = scmp.eq.s32.totalorder %s20, 1
      %p43 = por %p41, %p42
      %p45 = scmp.ne.s32.totalorder %s28, %s44
      %p46 = scmp.eq.s32.totalorder %s20, 0
      %p47 = por %p45, %p46
      %s48 = ssub.s32 %s14, %s21
      %p49 = scmp.eq.s32.totalorder %s48, 0
      %s51 = sadd.s32 %s50, 1
      %s52 = scalar_select %p49, %s50, %s51
      %p55 = pneg %p49
      %p56 = scmp.eq.s32.totalorder %s14, 1
      %p57 = por %p55, %p56
      %p58 = scmp.ne.s32.totalorder %s50, %s53
      %p59 = scmp.eq.s32.totalorder %s14, 0
      %p60 = por %p58, %p59
      %p61 = scmp.ne.s32.totalorder %s50, %s53
      %p62 = scmp.eq.s32.totalorder %s19, 1
      %p63 = por %p61, %p62
      %p64 = scmp.ne.s32.totalorder %s53, %s54
      %p65 = scmp.eq.s32.totalorder %s19, 0
      %p66 = por %p64, %p65
      %p67 = scmp.ne.s32.totalorder %s53, %s54
      %p68 = scmp.eq.s32.totalorder %s20, 1
      %p69 = por %p67, %p68
      %p71 = scmp.ne.s32.totalorder %s54, %s70
      %p72 = scmp.eq.s32.totalorder %s20, 0
      %p73 = por %p71, %p72
      %s75 = sadd.s32 %s74, 1
      %p78 = scmp.eq.s32.totalorder %s14, 1
      %p79 = scmp.ne.s32.totalorder %s74, %s76
      %p80 = scmp.eq.s32.totalorder %s14, 0
      %p81 = por %p79, %p80
      %p82 = scmp.ne.s32.totalorder %s74, %s76
      %p83 = scmp.eq.s32.totalorder %s19, 1
      %p84 = por %p82, %p83
      %p85 = scmp.ne.s32.totalorder %s76, %s77
      %p86 = scmp.eq.s32.totalorder %s19, 0
      %p87 = por %p85, %p86
      %p88 = scmp.ne.s32.totalorder %s76, %s77
      %p89 = scmp.eq.s32.totalorder %s20, 1
      %p90 = por %p88, %p89
      %p92 = scmp.ne.s32.totalorder %s77, %s91
      %p93 = scmp.eq.s32.totalorder %s20, 0
      %p94 = por %p92, %p93
      %s96 = sadd.s32 %s95, 1
      %p99 = scmp.eq.s32.totalorder %s14, 1
      %p100 = scmp.ne.s32.totalorder %s95, %s97
      %p101 = scmp.eq.s32.totalorder %s14, 0
      %p102 = por %p100, %p101
      %p103 = scmp.ne.s32.totalorder %s95, %s97
      %p104 = scmp.eq.s32.totalorder %s19, 1
      %p105 = por %p103, %p104
      %p106 = scmp.ne.s32.totalorder %s97, %s98
      %p107 = scmp.eq.s32.totalorder %s19, 0
      %p108 = por %p106, %p107
      %p109 = scmp.ne.s32.totalorder %s97, %s98
      %p110 = scmp.eq.s32.totalorder %s20, 1
      %p111 = por %p109, %p110
      %p113 = scmp.ne.s32.totalorder %s98, %s112
      %p114 = scmp.eq.s32.totalorder %s20, 0
      %p115 = por %p113, %p114
      %s116 = ssub.s32 %s14, %s21
      %p117 = scmp.eq.s32.totalorder %s116, 0
      %s119 = sadd.s32 %s118, 1
      %s120 = scalar_select %p117, %s118, %s119
      %p123 = pneg %p117
      %p124 = scmp.eq.s32.totalorder %s14, 1
      %p125 = por %p123, %p124
      %p126 = scmp.ne.s32.totalorder %s118, %s121
      %p127 = scmp.eq.s32.totalorder %s14, 0
      %p128 = por %p126, %p127
      %p129 = scmp.ne.s32.totalorder %s118, %s121
      %p130 = scmp.eq.s32.totalorder %s19, 1
      %p131 = por %p129, %p130
      %p132 = scmp.ne.s32.totalorder %s121, %s122
      %p133 = scmp.eq.s32.totalorder %s19, 0
      %p134 = por %p132, %p133
      %p135 = scmp.ne.s32.totalorder %s121, %s122
      %p136 = scmp.eq.s32.totalorder %s20, 1
      %p137 = por %p135, %p136
      %p139 = scmp.ne.s32.totalorder %s122, %s138
      %p140 = scmp.eq.s32.totalorder %s20, 0
      %p141 = por %p139, %p140
      %p142 = scmp.le.s32.totalorder 1, %s14
      %p143 = scmp.lt.s32.totalorder %s14, 3
      %p144 = pnand %p142, %p143
      %p145 = pneg %p144
      // Predicated region
      $region9: #{strats_forward.1} parent=5 // pred_check
        _
      $region10: #{strats_forward.1} parent=5 // pred_check_branch
        %147 = sbr.rel (%p144) target = $region12
      $region11: #{strats_forward.1} parent=5 // pred_region
        %s148 = ssub.s32 %s14, 1
        // Predicated region
        $region13: #{strats_forward.1} parent=11 // pred_check
          %p149 = pneg %p87
        $region14: #{strats_forward.1} parent=11 // pred_check_branch
          %151 = sbr.rel (%p149) target = $region16
        $region15: #{strats_forward.1} parent=11 // pred_region
          %153 = vsyncadd [#allocation5], 0
          %s154 = sshll.u32 %s2, 4
          %s155 = int_to_ptr.hbm [resolvable:$true] %s154
          %s156 = sshll.u32 [#allocation4], 4
          %s157 = int_to_ptr.vmem [resolvable:$true] %s156
          %162 = dma.hbm_to_vmem [thread:$0]  %s155, 6400, %s157, [#allocation5], 128, 128, 8
        $region16: #{strats_forward.1} parent=11 // pred_fallthru
          _
        // Predicated region
        $region17: #{strats_forward.1} parent=11 // pred_check
          %p163 = pneg %p108
        $region18: #{strats_forward.1} parent=11 // pred_check_branch
          %165 = sbr.rel (%p163) target = $region20
        $region19: #{strats_forward.1} parent=11 // pred_region
          %167 = vsyncadd [#allocation5], 0
          %s168 = sshll.u32 %s3, 4
          %s169 = int_to_ptr.hbm [resolvable:$true] %s168
          %s170 = sshll.u32 [#allocation6], 4
          %s171 = int_to_ptr.vmem [resolvable:$true] %s170
          %176 = dma.hbm_to_vmem [thread:$0]  %s169, 384, %s171, [#allocation5], 128, 128, 8
        $region20: #{strats_forward.1} parent=11 // pred_fallthru
          _
      $region12: #{strats_forward.1} parent=5 // pred_fallthru
        _
      %p177 = scmp.lt.s32.totalorder %s14, 2
      // Predicated region
      $region21: #{strats_forward.1} parent=5 // pred_check
        %p178 = pneg %p177
      $region22: #{strats_forward.1} parent=5 // pred_check_branch
        %180 = sbr.rel (%p178) target = $region24
      $region23: #{strats_forward.1} parent=5 // pred_region
        // Predicated region
        $region25: #{strats_forward.1} parent=23 // pred_check
          %p181 = pneg %p34
        $region26: #{strats_forward.1} parent=23 // pred_check_branch
          %183 = sbr.rel (%p181) target = $region28
        $region27: #{strats_forward.1} parent=23 // pred_region
          %s184 = sand.u32 %s24, 1
          %s185 = scalar_lea.sflag [#allocation3], %s184
          %s186 = sand.u32 %s24, 1
          %s187 = smul.addr %s186, 4
          %s188 = scalar_lea.vmem [#allocation2], %s187
          %s189 = smul.u32 2, %s14
          %191 = vsyncadd %s185, 0
          %s192 = smul.addr %s189, 2
          %s193 = scalar_lea.hbm %s0, %s192
          %s194 = sshll.u32 %s193, 4
          %s195 = int_to_ptr.hbm [resolvable:$true] %s194
          %s196 = sshll.u32 %s188, 4
          %s197 = int_to_ptr.vmem [resolvable:$true] %s196
          %202 = dma.hbm_to_vmem [thread:$0]  %s195, 64, %s197, %s185, 32, 32, 2
        $region28: #{strats_forward.1} parent=23 // pred_fallthru
          _
        // Predicated region
        $region29: #{strats_forward.1} parent=23 // pred_check
          %p203 = pneg %p60
        $region30: #{strats_forward.1} parent=23 // pred_check_branch
          %205 = sbr.rel (%p203) target = $region32
        $region31: #{strats_forward.1} parent=23 // pred_region
          %s206 = smul.u32 2, %s14
          %p207 = scmp.lt.s32.totalorder %s206, 3
          %s208 = scalar_select %p207, %s206, 3
          %s209 = scalar_lea.vmem %s1, %s208
          %s210 = smul.u32 2, %s14
        $region32: #{strats_forward.1} parent=23 // pred_fallthru
          _
      $region24: #{strats_forward.1} parent=5 // pred_fallthru
        _
      %p211 = scmp.le.s32.totalorder 1, %s14
      %p212 = scmp.lt.s32.totalorder %s14, 3
      %p213 = pnand %p211, %p212
      %p214 = pneg %p213
      // Predicated region
      $region33: #{strats_forward.1} parent=5 // pred_check
        _
      $region34: #{strats_forward.1} parent=5 // pred_check_branch
        %216 = sbr.rel (%p213) target = $region36
      $region35: #{strats_forward.1} parent=5 // pred_region
        %s217 = ssub.s32 %s14, 1
        %s218 = sand.u32 %s27, 1
        %s219 = scalar_lea.sflag [#allocation3], %s218
        %s220 = sand.u32 %s27, 1
        %s221 = smul.addr %s220, 4
        %s222 = scalar_lea.vmem [#allocation2], %s221
        // Predicated region
        $region37: #{strats_forward.1} parent=35 // pred_check
          %p223 = pneg %p40
        $region38: #{strats_forward.1} parent=35 // pred_check_branch
          %225 = sbr.rel (%p223) target = $region40
        $region39: #{strats_forward.1} parent=35 // pred_region
          %227 = dma.done %s219, 64
        $region40: #{strats_forward.1} parent=35 // pred_fallthru
          _
        // Predicated region
        $region41: #{strats_forward.1} parent=35 // pred_check
          %p228 = pneg %p87
        $region42: #{strats_forward.1} parent=35 // pred_check_branch
          %230 = sbr.rel (%p228) target = $region44
        $region43: #{strats_forward.1} parent=35 // pred_region
          %232 = dma.done [#allocation5], 6400
        $region44: #{strats_forward.1} parent=35 // pred_fallthru
          _
        // Predicated region
        $region45: #{strats_forward.1} parent=35 // pred_check
          %p233 = pneg %p108
        $region46: #{strats_forward.1} parent=35 // pred_check_branch
          %235 = sbr.rel (%p233) target = $region48
        $region47: #{strats_forward.1} parent=35 // pred_region
          %237 = dma.done [#allocation5], 384
        $region48: #{strats_forward.1} parent=35 // pred_fallthru
          _
        %s238 = sand.u32 %s27, 1
        %s239 = scalar_lea.sflag [#allocation3], %s238
        %s240 = sand.u32 %s27, 1
        %s241 = smul.addr %s240, 4
        %s242 = scalar_lea.vmem [#allocation2], %s241
        %p243 = pneg %p40
        %p244 = pneg %p37
        %s245 = smul.u32 2, %s19
        %p246 = scmp.lt.s32.totalorder %s245, 3
        %s247 = scalar_select %p246, %s245, 3
        %s248 = scalar_lea.vmem %s1, %s247
        %p249 = pneg %p66
        %p250 = pneg %p63
        %p251 = pneg %p87
        %p252 = pneg %p84
        %p253 = pneg %p108
        %p254 = pneg %p105
        %p255 = pneg %p134
        %p256 = pneg %p131
        %s257 = smul.u32 2, %s19
        %p258 = scmp.lt.s32.totalorder %s257, 3
        %s259 = scalar_select %p258, %s257, 3
        %s260 = scalar_lea.vmem %s4, %s259
        %s261 = smul.u32 2, %s19
        %s262 = smul.u32 2, %s19
        %p263 = scmp.lt.s32.totalorder %s262, 3
        %s264 = scalar_select %p263, %s262, 3
        %s265 = scalar_lea.vmem %s1, %s264
        %s266 = smul.u32 2, %s19
        %s267 = smul.u32 2, %s19
        %p268 = scmp.lt.s32.totalorder %s267, 3
        %s269 = scalar_select %p268, %s267, 3
        %s270 = scalar_lea.vmem %s4, %s269
        %s271 = smul.u32 2, %s19
        %v272 = vld [vmem:[%s222] sm:$0x3]
        %v273 = vld [vmem:[%s222 + $0x2] sm:$0x3]
        %v274 = vld [vmem:[%s265] sm:$0x1]
        %v275 = vld [vmem:[%s265 + $0x1] sm:$0x1]
        %v276 = vld [vmem:[#allocation6] sm:$0x1]
        %v277 = vld [vmem:[#allocation6 + $0x1] sm:$0x1]
        %v278 = vld [vmem:[#allocation6 + $0x2] sm:$0x1]
        %v279 = vld [vmem:[#allocation6 + $0x3] sm:$0x1]
        %v280 = vperm.slane %v272, 0
        %v281 = vlaneseq
        %v282 = vshrl.u32 %v281, 7
        %284 = vset.pattern.permute.xlu0 %v282
        %285 = vperm.xlu0 %284, %v280
        %v286 = vpop.permute.xlu0 %285
        %v287 = vperm.slane %v273, 0
        %v288 = vlaneseq
        %v289 = vshrl.u32 %v288, 7
        %291 = vset.pattern.permute.xlu0 %v289
        %292 = vperm.xlu0 %291, %v287
        %v293 = vpop.permute.xlu0 %292
        %v294 = vperm.slane %v276, 0
        %v295 = vmul.f32 %v286, %v294
        %v296 = vmul.f32 %v293, %v294
        %v297 = vperm.slane %v277, 0
        %v298 = vadd.f32 %v295, %v297
        %v299 = vadd.f32 %v296, %v297
        %v300 = vperm.slane %v272, 1
        %v301 = vlaneseq
        %v302 = vshrl.u32 %v301, 7
        %304 = vset.pattern.permute.xlu0 %v302
        %305 = vperm.xlu0 %304, %v300
        %v306 = vpop.permute.xlu0 %305
        %v307 = vperm.slane %v273, 1
        %v308 = vlaneseq
        %v309 = vshrl.u32 %v308, 7
        %311 = vset.pattern.permute.xlu0 %v309
        %312 = vperm.xlu0 %311, %v307
        %v313 = vpop.permute.xlu0 %312
        %v314 = vperm.slane %v278, 0
        %v315 = vmul.f32 %v306, %v314
        %v316 = vmul.f32 %v313, %v314
        %v317 = vperm.slane %v279, 0
        %v318 = vadd.f32 %v315, %v317
        %v319 = vadd.f32 %v316, %v317
        %322 = vrot.lane.b32.xlu0 %v318, 5
        %v323 = vpop.permute.xlu0 %322
        %324 = vrot.lane.b32.xlu0 %v319, 5
        %v325 = vpop.permute.xlu0 %324
        %vm328 = vcmask 39936
        %v329 = vsel %vm328, %v298, %v323
        %v330 = vsel %vm328, %v299, %v325
        %v331 = vtanh.pop %v329
        %v332 = vtanh.pop %v330
        %v333 = vld [vmem:[#allocation4] sm:$0xff]
        %v334 = vld [vmem:[#allocation4 + $0x8] sm:$0x3]
        %vm335 = vcmask 80896
        %v337 = vsel %vm335, %v331, 0
        %v340 = vsel %vm335, %v332, 0
        %vm342 = vcmask 1041408
        %v344 = vsel %vm342, %v334, 0
        %346 = vmatpush.msra.mxu0 0.0
        %347 = vmatpush.msra.mxu0 0.0
        %348 = vmatpush.msra.mxu0 0.0
        %349 = vmatpush.msra.mxu0 0.0
        %350 = vmatpush.msra.mxu0 0.0
        %351 = vmatpush.msra.mxu0 0.0
        %352 = vmatpush.msra.mxu0 0.0
        %353 = vmatpush.msra.mxu0 0.0
        %354 = vmatpush.msra.mxu0 0.0
        %355 = vmatpush.msra.mxu0 0.0
        %356 = vmatpush.msra.mxu0 0.0
        %357 = vmatpush.msra.mxu0 0.0
        %358 = vmatpush.msra.mxu0 0.0
        %359 = vmatpush.msra.mxu0 0.0
        %360 = vmatpush.msra.mxu0 %v344
        %361 = vmatpush.msra.mxu0 %v333
        %362 = vmatmul.f32.gmra.mxu0 %v337
        %v363 = vpop.f32.mrf.mxu0
        %v364 = vadd.f32 0.0, %v363
        %365 = vmatmul.f32.gmra.mxu0 %v340
        %v366 = vpop.f32.mrf.mxu0
        %v367 = vadd.f32 0.0, %v366
        %368 = vdwg.mxu0
        %vm369 = vcmp.gt.f32.partialorder %v274, 0.5
        %vm370 = vcmp.gt.f32.partialorder %v275, 0.5
        %v371 = vld [vmem:[#allocation4 + $0x10] sm:$0xff]
        %v372 = vld [vmem:[#allocation4 + $0x18] sm:$0xff]
        %v373 = vld [vmem:[#allocation4 + $0x20] sm:$0xff]
        %v374 = vld [vmem:[#allocation4 + $0x28] sm:$0xff]
        %v375 = vld [vmem:[#allocation6 + $0x4] sm:$0x1]
        %v376 = vperm.slane %v375, 0
        %vm377 = vcmask 261120
        %v379 = vsel %vm377, %v364, 0
        %v382 = vsel %vm377, %v367, 0
        %384 = vmatpush.msra.mxu0 0.0
        %385 = vmatpush.msra.mxu0 0.0
        %386 = vmatpush.msra.mxu0 0.0
        %387 = vmatpush.msra.mxu0 0.0
        %388 = vmatpush.msra.mxu0 0.0
        %389 = vmatpush.msra.mxu0 0.0
        %390 = vmatpush.msra.mxu0 0.0
        %391 = vmatpush.msra.mxu0 0.0
        %392 = vmatpush.msra.mxu0 0.0
        %393 = vmatpush.msra.mxu0 0.0
        %394 = vmatpush.msra.mxu0 0.0
        %395 = vmatpush.msra.mxu0 0.0
        %396 = vmatpush.msra.mxu0 %v374
        %397 = vmatpush.msra.mxu0 %v373
        %398 = vmatpush.msra.mxu0 %v372
        %399 = vmatpush.msra.mxu0 %v371
        %400 = vmatmul.f32.gmra.mxu0 %v379
        %v401 = vpop.f32.mrf.mxu0
        %v402 = vadd.f32 %v376, %v401
        %403 = vmatmul.f32.gmra.mxu0 %v382
        %v404 = vpop.f32.mrf.mxu0
        %v405 = vadd.f32 %v376, %v404
        %406 = vdwg.mxu0
        %408 = vrot.lane.b32.xlu0 %v402, 96
        %v409 = vpop.permute.xlu0 %408
        %vm410 = vcmask 64512
        %v411 = vsel %vm410, %v402, 0
        %v413 = vsel %vm410, %v409, 0
        %415 = vmatpush.xpose.msra.mxu0 0.0
        %416 = vmatpush.xpose.msra.mxu0 0.0
        %417 = vmatpush.xpose.msra.mxu0 0.0
        %418 = vmatpush.xpose.msra.mxu0 0.0
        %419 = vmatpush.xpose.msra.mxu0 0.0
        %420 = vmatpush.xpose.msra.mxu0 0.0
        %421 = vmatpush.xpose.msra.mxu0 0.0
        %422 = vmatpush.xpose.msra.mxu0 0.0
        %423 = vmatpush.xpose.msra.mxu0 0.0
        %424 = vmatpush.xpose.msra.mxu0 0.0
        %425 = vmatpush.xpose.msra.mxu0 0.0
        %426 = vmatpush.xpose.msra.mxu0 0.0
        %427 = vmatpush.xpose.msra.mxu0 0.0
        %428 = vmatpush.xpose.msra.mxu0 0.0
        %429 = vmatpush.xpose.msra.mxu0 0.0
        %430 = vmatpush.xpose.msra.mxu0 %v413
        %431 = vmatmul.f32.gmra.mxu0 %v411
        %v432 = vpop.f32.mrf.mxu0
        %v433 = vadd.f32 0.0, %v432
        %434 = vdwg.mxu0
        %436 = vrot.lane.b32.xlu0 %v405, 96
        %v437 = vpop.permute.xlu0 %436
        %v438 = vsel %vm410, %v405, 0
        %v440 = vsel %vm410, %v437, 0
        %442 = vmatpush.xpose.msra.mxu0 0.0
        %443 = vmatpush.xpose.msra.mxu0 0.0
        %444 = vmatpush.xpose.msra.mxu0 0.0
        %445 = vmatpush.xpose.msra.mxu0 0.0
        %446 = vmatpush.xpose.msra.mxu0 0.0
        %447 = vmatpush.xpose.msra.mxu0 0.0
        %448 = vmatpush.xpose.msra.mxu0 0.0
        %449 = vmatpush.xpose.msra.mxu0 0.0
        %450 = vmatpush.xpose.msra.mxu0 0.0
        %451 = vmatpush.xpose.msra.mxu0 0.0
        %452 = vmatpush.xpose.msra.mxu0 0.0
        %453 = vmatpush.xpose.msra.mxu0 0.0
        %454 = vmatpush.xpose.msra.mxu0 0.0
        %455 = vmatpush.xpose.msra.mxu0 0.0
        %456 = vmatpush.xpose.msra.mxu0 0.0
        %457 = vmatpush.xpose.msra.mxu0 %v440
        %458 = vmatmul.f32.gmra.mxu0 %v438
        %v459 = vpop.f32.mrf.mxu0
        %v460 = vadd.f32 0.0, %v459
        %461 = vdwg.mxu0
        %v462 = vmul.f32 %v433, 0.35355338
        %v463 = vmul.f32 %v460, 0.35355338
        %v464 = vsel %vm369, 1, 0
        %v465 = vsel %vm370, 1, 0
        %v466 = vperm.slane %v464, 0
        %v467 = vperm.slane %v465, 0
        %vm468 = vcmp.eq.s32.totalorder %v466, 1
        %vm469 = vcmp.eq.s32.totalorder %v467, 1
        %v470 = vsel %vm468, %v462, -1e+30
        %v471 = vsel %vm469, %v463, -1e+30
        %v472 = vsel %vm410, %v470, -inf
        %473 = vmax.xlane.f32.xlu0 %v472
        %v474 = vpop.xlane.xlu0 %473
        %v475 = vsel %vm410, %v471, -inf
        %476 = vmax.xlane.f32.xlu0 %v475
        %v477 = vpop.xlane.xlu0 %476
        %v478 = vsub.f32 %v470, %v474
        %v479 = vsub.f32 %v471, %v477
        %v480 = vmul.f32 %v478, 1.442695
        %v481 = vpow.pop %v480
        %v482 = vmul.f32 %v479, 1.442695
        %v483 = vpow.pop %v482
        %v484 = vsel %vm410, %v481, 0.0
        %485 = vadd.xlane.f32.xlu0 %v484
        %v486 = vpop.xlane.xlu0 %485
        %v487 = vsel %vm410, %v483, 0.0
        %488 = vadd.xlane.f32.xlu0 %v487
        %v489 = vpop.xlane.xlu0 %488
        %v490 = vrcp.pop %v486
        %v491 = vmul.f32 %v486, %v490
        %v492 = vsub.f32 1.0, %v491
        %v493 = vmul.f32 %v490, %v492
        %v494 = vadd.f32 %v490, %v493
        %vm495 = vweird.f32 %v486
        %vm496 = vweird.f32 %v490
        %vm497 = vmor %vm495, %vm496
        %v498 = vsel %vm497, %v490, %v494
        %v499 = vand.u32 2147483647, %v486
        %vm500 = vcmp.eq.f32.partialorder %v499, 8.507059e+37
        %v501 = vand.u32 %v486, 2147483648
        %v502 = vor.u32 1.1754944e-38, %v501
        %v503 = vsel %vm500, %v502, %v498
        %v504 = vmul.f32 %v481, %v503
        %v505 = vrcp.pop %v489
        %v506 = vmul.f32 %v489, %v505
        %v507 = vsub.f32 1.0, %v506
        %v508 = vmul.f32 %v505, %v507
        %v509 = vadd.f32 %v505, %v508
        %vm510 = vweird.f32 %v489
        %vm511 = vweird.f32 %v505
        %vm512 = vmor %vm510, %vm511
        %v513 = vsel %vm512, %v505, %v509
        %v514 = vand.u32 2147483647, %v489
        %vm515 = vcmp.eq.f32.partialorder %v514, 8.507059e+37
        %v516 = vand.u32 %v489, 2147483648
        %v517 = vor.u32 1.1754944e-38, %v516
        %v518 = vsel %vm515, %v517, %v513
        %v519 = vmul.f32 %v483, %v518
        %520 = vrot.lane.b32.xlu0 %v402, 64
        %v521 = vpop.permute.xlu0 %520
        %v524 = vsel %vm410, %v504, 0
        %526 = vmatpush.msra.mxu0 0.0
        %527 = vmatpush.msra.mxu0 0.0
        %528 = vmatpush.msra.mxu0 0.0
        %529 = vmatpush.msra.mxu0 0.0
        %530 = vmatpush.msra.mxu0 0.0
        %531 = vmatpush.msra.mxu0 0.0
        %532 = vmatpush.msra.mxu0 0.0
        %533 = vmatpush.msra.mxu0 0.0
        %534 = vmatpush.msra.mxu0 0.0
        %535 = vmatpush.msra.mxu0 0.0
        %536 = vmatpush.msra.mxu0 0.0
        %537 = vmatpush.msra.mxu0 0.0
        %538 = vmatpush.msra.mxu0 0.0
        %539 = vmatpush.msra.mxu0 0.0
        %540 = vmatpush.msra.mxu0 0.0
        %541 = vmatpush.msra.mxu0 %v521
        %542 = vmatmul.f32.gmra.mxu0 %v524
        %v543 = vpop.f32.mrf.mxu0
        %v544 = vadd.f32 0.0, %v543
        %545 = vdwg.mxu0
        %546 = vrot.lane.b32.xlu0 %v405, 64
        %v547 = vpop.permute.xlu0 %546
        %v550 = vsel %vm410, %v519, 0
        %552 = vmatpush.msra.mxu0 0.0
        %553 = vmatpush.msra.mxu0 0.0
        %554 = vmatpush.msra.mxu0 0.0
        %555 = vmatpush.msra.mxu0 0.0
        %556 = vmatpush.msra.mxu0 0.0
        %557 = vmatpush.msra.mxu0 0.0
        %558 = vmatpush.msra.mxu0 0.0
        %559 = vmatpush.msra.mxu0 0.0
        %560 = vmatpush.msra.mxu0 0.0
        %561 = vmatpush.msra.mxu0 0.0
        %562 = vmatpush.msra.mxu0 0.0
        %563 = vmatpush.msra.mxu0 0.0
        %564 = vmatpush.msra.mxu0 0.0
        %565 = vmatpush.msra.mxu0 0.0
        %566 = vmatpush.msra.mxu0 0.0
        %567 = vmatpush.msra.mxu0 %v547
        %568 = vmatmul.f32.gmra.mxu0 %v550
        %v569 = vpop.f32.mrf.mxu0
        %v570 = vadd.f32 0.0, %v569
        %571 = vdwg.mxu0
        %572 = vrot.lane.b32.xlu0 %v402, 120
        %v573 = vpop.permute.xlu0 %572
        %574 = vrot.lane.b32.xlu0 %v402, 88
        %v575 = vpop.permute.xlu0 %574
        %v576 = vsel %vm410, %v573, 0
        %v578 = vsel %vm410, %v575, 0
        %580 = vmatpush.xpose.msra.mxu0 0.0
        %581 = vmatpush.xpose.msra.mxu0 0.0
        %582 = vmatpush.xpose.msra.mxu0 0.0
        %583 = vmatpush.xpose.msra.mxu0 0.0
        %584 = vmatpush.xpose.msra.mxu0 0.0
        %585 = vmatpush.xpose.msra.mxu0 0.0
        %586 = vmatpush.xpose.msra.mxu0 0.0
        %587 = vmatpush.xpose.msra.mxu0 0.0
        %588 = vmatpush.xpose.msra.mxu0 0.0
        %589 = vmatpush.xpose.msra.mxu0 0.0
        %590 = vmatpush.xpose.msra.mxu0 0.0
        %591 = vmatpush.xpose.msra.mxu0 0.0
        %592 = vmatpush.xpose.msra.mxu0 0.0
        %593 = vmatpush.xpose.msra.mxu0 0.0
        %594 = vmatpush.xpose.msra.mxu0 0.0
        %595 = vmatpush.xpose.msra.mxu0 %v578
        %596 = vmatmul.f32.gmra.mxu0 %v576
        %v597 = vpop.f32.mrf.mxu0
        %v598 = vadd.f32 0.0, %v597
        %599 = vdwg.mxu0
        %600 = vrot.lane.b32.xlu0 %v405, 120
        %v601 = vpop.permute.xlu0 %600
        %602 = vrot.lane.b32.xlu0 %v405, 88
        %v603 = vpop.permute.xlu0 %602
        %v604 = vsel %vm410, %v601, 0
        %v606 = vsel %vm410, %v603, 0
        %608 = vmatpush.xpose.msra.mxu0 0.0
        %609 = vmatpush.xpose.msra.mxu0 0.0
        %610 = vmatpush.xpose.msra.mxu0 0.0
        %611 = vmatpush.xpose.msra.mxu0 0.0
        %612 = vmatpush.xpose.msra.mxu0 0.0
        %613 = vmatpush.xpose.msra.mxu0 0.0
        %614 = vmatpush.xpose.msra.mxu0 0.0
        %615 = vmatpush.xpose.msra.mxu0 0.0
        %616 = vmatpush.xpose.msra.mxu0 0.0
        %617 = vmatpush.xpose.msra.mxu0 0.0
        %618 = vmatpush.xpose.msra.mxu0 0.0
        %619 = vmatpush.xpose.msra.mxu0 0.0
        %620 = vmatpush.xpose.msra.mxu0 0.0
        %621 = vmatpush.xpose.msra.mxu0 0.0
        %622 = vmatpush.xpose.msra.mxu0 0.0
        %623 = vmatpush.xpose.msra.mxu0 %v606
        %624 = vmatmul.f32.gmra.mxu0 %v604
        %v625 = vpop.f32.mrf.mxu0
        %v626 = vadd.f32 0.0, %v625
        %627 = vdwg.mxu0
        %v628 = vmul.f32 %v598, 0.35355338
        %v629 = vmul.f32 %v626, 0.35355338
        %v630 = vsel %vm468, %v628, -1e+30
        %v631 = vsel %vm469, %v629, -1e+30
        %v632 = vsel %vm410, %v630, -inf
        %633 = vmax.xlane.f32.xlu0 %v632
        %v634 = vpop.xlane.xlu0 %633
        %v635 = vsel %vm410, %v631, -inf
        %636 = vmax.xlane.f32.xlu0 %v635
        %v637 = vpop.xlane.xlu0 %636
        %v638 = vsub.f32 %v630, %v634
        %v639 = vsub.f32 %v631, %v637
        %v640 = vmul.f32 %v638, 1.442695
        %v641 = vpow.pop %v640
        %v642 = vmul.f32 %v639, 1.442695
        %v643 = vpow.pop %v642
        %v644 = vsel %vm410, %v641, 0.0
        %645 = vadd.xlane.f32.xlu0 %v644
        %v646 = vpop.xlane.xlu0 %645
        %v647 = vsel %vm410, %v643, 0.0
        %648 = vadd.xlane.f32.xlu0 %v647
        %v649 = vpop.xlane.xlu0 %648
        %v650 = vrcp.pop %v646
        %v651 = vmul.f32 %v646, %v650
        %v652 = vsub.f32 1.0, %v651
        %v653 = vmul.f32 %v650, %v652
        %v654 = vadd.f32 %v650, %v653
        %vm655 = vweird.f32 %v646
        %vm656 = vweird.f32 %v650
        %vm657 = vmor %vm655, %vm656
        %v658 = vsel %vm657, %v650, %v654
        %v659 = vand.u32 2147483647, %v646
        %vm660 = vcmp.eq.f32.partialorder %v659, 8.507059e+37
        %v661 = vand.u32 %v646, 2147483648
        %v662 = vor.u32 1.1754944e-38, %v661
        %v663 = vsel %vm660, %v662, %v658
        %v664 = vmul.f32 %v641, %v663
        %v665 = vrcp.pop %v649
        %v666 = vmul.f32 %v649, %v665
        %v667 = vsub.f32 1.0, %v666
        %v668 = vmul.f32 %v665, %v667
        %v669 = vadd.f32 %v665, %v668
        %vm670 = vweird.f32 %v649
        %vm671 = vweird.f32 %v665
        %vm672 = vmor %vm670, %vm671
        %v673 = vsel %vm672, %v665, %v669
        %v674 = vand.u32 2147483647, %v649
        %vm675 = vcmp.eq.f32.partialorder %v674, 8.507059e+37
        %v676 = vand.u32 %v649, 2147483648
        %v677 = vor.u32 1.1754944e-38, %v676
        %v678 = vsel %vm675, %v677, %v673
        %v679 = vmul.f32 %v643, %v678
        %680 = vrot.lane.b32.xlu0 %v402, 56
        %v681 = vpop.permute.xlu0 %680
        %v684 = vsel %vm410, %v664, 0
        %686 = vmatpush.msra.mxu0 0.0
        %687 = vmatpush.msra.mxu0 0.0
        %688 = vmatpush.msra.mxu0 0.0
        %689 = vmatpush.msra.mxu0 0.0
        %690 = vmatpush.msra.mxu0 0.0
        %691 = vmatpush.msra.mxu0 0.0
        %692 = vmatpush.msra.mxu0 0.0
        %693 = vmatpush.msra.mxu0 0.0
        %694 = vmatpush.msra.mxu0 0.0
        %695 = vmatpush.msra.mxu0 0.0
        %696 = vmatpush.msra.mxu0 0.0
        %697 = vmatpush.msra.mxu0 0.0
        %698 = vmatpush.msra.mxu0 0.0
        %699 = vmatpush.msra.mxu0 0.0
        %700 = vmatpush.msra.mxu0 0.0
        %701 = vmatpush.msra.mxu0 %v681
        %702 = vmatmul.f32.gmra.mxu0 %v684
        %v703 = vpop.f32.mrf.mxu0
        %v704 = vadd.f32 0.0, %v703
        %705 = vdwg.mxu0
        %706 = vrot.lane.b32.xlu0 %v405, 56
        %v707 = vpop.permute.xlu0 %706
        %v710 = vsel %vm410, %v679, 0
        %712 = vmatpush.msra.mxu0 0.0
        %713 = vmatpush.msra.mxu0 0.0
        %714 = vmatpush.msra.mxu0 0.0
        %715 = vmatpush.msra.mxu0 0.0
        %716 = vmatpush.msra.mxu0 0.0
        %717 = vmatpush.msra.mxu0 0.0
        %718 = vmatpush.msra.mxu0 0.0
        %719 = vmatpush.msra.mxu0 0.0
        %720 = vmatpush.msra.mxu0 0.0
        %721 = vmatpush.msra.mxu0 0.0
        %722 = vmatpush.msra.mxu0 0.0
        %723 = vmatpush.msra.mxu0 0.0
        %724 = vmatpush.msra.mxu0 0.0
        %725 = vmatpush.msra.mxu0 0.0
        %726 = vmatpush.msra.mxu0 0.0
        %727 = vmatpush.msra.mxu0 %v707
        %728 = vmatmul.f32.gmra.mxu0 %v710
        %v729 = vpop.f32.mrf.mxu0
        %v730 = vadd.f32 0.0, %v729
        %731 = vdwg.mxu0
        %732 = vrot.lane.b32.xlu0 %v402, 112
        %v733 = vpop.permute.xlu0 %732
        %734 = vrot.lane.b32.xlu0 %v402, 80
        %v735 = vpop.permute.xlu0 %734
        %v736 = vsel %vm410, %v733, 0
        %v738 = vsel %vm410, %v735, 0
        %740 = vmatpush.xpose.msra.mxu0 0.0
        %741 = vmatpush.xpose.msra.mxu0 0.0
        %742 = vmatpush.xpose.msra.mxu0 0.0
        %743 = vmatpush.xpose.msra.mxu0 0.0
        %744 = vmatpush.xpose.msra.mxu0 0.0
        %745 = vmatpush.xpose.msra.mxu0 0.0
        %746 = vmatpush.xpose.msra.mxu0 0.0
        %747 = vmatpush.xpose.msra.mxu0 0.0
        %748 = vmatpush.xpose.msra.mxu0 0.0
        %749 = vmatpush.xpose.msra.mxu0 0.0
        %750 = vmatpush.xpose.msra.mxu0 0.0
        %751 = vmatpush.xpose.msra.mxu0 0.0
        %752 = vmatpush.xpose.msra.mxu0 0.0
        %753 = vmatpush.xpose.msra.mxu0 0.0
        %754 = vmatpush.xpose.msra.mxu0 0.0
        %755 = vmatpush.xpose.msra.mxu0 %v738
        %756 = vmatmul.f32.gmra.mxu0 %v736
        %v757 = vpop.f32.mrf.mxu0
        %v758 = vadd.f32 0.0, %v757
        %759 = vdwg.mxu0
        %760 = vrot.lane.b32.xlu0 %v405, 112
        %v761 = vpop.permute.xlu0 %760
        %762 = vrot.lane.b32.xlu0 %v405, 80
        %v763 = vpop.permute.xlu0 %762
        %v764 = vsel %vm410, %v761, 0
        %v766 = vsel %vm410, %v763, 0
        %768 = vmatpush.xpose.msra.mxu0 0.0
        %769 = vmatpush.xpose.msra.mxu0 0.0
        %770 = vmatpush.xpose.msra.mxu0 0.0
        %771 = vmatpush.xpose.msra.mxu0 0.0
        %772 = vmatpush.xpose.msra.mxu0 0.0
        %773 = vmatpush.xpose.msra.mxu0 0.0
        %774 = vmatpush.xpose.msra.mxu0 0.0
        %775 = vmatpush.xpose.msra.mxu0 0.0
        %776 = vmatpush.xpose.msra.mxu0 0.0
        %777 = vmatpush.xpose.msra.mxu0 0.0
        %778 = vmatpush.xpose.msra.mxu0 0.0
        %779 = vmatpush.xpose.msra.mxu0 0.0
        %780 = vmatpush.xpose.msra.mxu0 0.0
        %781 = vmatpush.xpose.msra.mxu0 0.0
        %782 = vmatpush.xpose.msra.mxu0 0.0
        %783 = vmatpush.xpose.msra.mxu0 %v766
        %784 = vmatmul.f32.gmra.mxu0 %v764
        %v785 = vpop.f32.mrf.mxu0
        %v786 = vadd.f32 0.0, %v785
        %787 = vdwg.mxu0
        %v788 = vmul.f32 %v758, 0.35355338
        %v789 = vmul.f32 %v786, 0.35355338
        %v790 = vsel %vm468, %v788, -1e+30
        %v791 = vsel %vm469, %v789, -1e+30
        %v792 = vsel %vm410, %v790, -inf
        %793 = vmax.xlane.f32.xlu0 %v792
        %v794 = vpop.xlane.xlu0 %793
        %v795 = vsel %vm410, %v791, -inf
        %796 = vmax.xlane.f32.xlu0 %v795
        %v797 = vpop.xlane.xlu0 %796
        %v798 = vsub.f32 %v790, %v794
        %v799 = vsub.f32 %v791, %v797
        %v800 = vmul.f32 %v798, 1.442695
        %v801 = vpow.pop %v800
        %v802 = vmul.f32 %v799, 1.442695
        %v803 = vpow.pop %v802
        %v804 = vsel %vm410, %v801, 0.0
        %805 = vadd.xlane.f32.xlu0 %v804
        %v806 = vpop.xlane.xlu0 %805
        %v807 = vsel %vm410, %v803, 0.0
        %808 = vadd.xlane.f32.xlu0 %v807
        %v809 = vpop.xlane.xlu0 %808
        %v810 = vrcp.pop %v806
        %v811 = vmul.f32 %v806, %v810
        %v812 = vsub.f32 1.0, %v811
        %v813 = vmul.f32 %v810, %v812
        %v814 = vadd.f32 %v810, %v813
        %vm815 = vweird.f32 %v806
        %vm816 = vweird.f32 %v810
        %vm817 = vmor %vm815, %vm816
        %v818 = vsel %vm817, %v810, %v814
        %v819 = vand.u32 2147483647, %v806
        %vm820 = vcmp.eq.f32.partialorder %v819, 8.507059e+37
        %v821 = vand.u32 %v806, 2147483648
        %v822 = vor.u32 1.1754944e-38, %v821
        %v823 = vsel %vm820, %v822, %v818
        %v824 = vmul.f32 %v801, %v823
        %v825 = vrcp.pop %v809
        %v826 = vmul.f32 %v809, %v825
        %v827 = vsub.f32 1.0, %v826
        %v828 = vmul.f32 %v825, %v827
        %v829 = vadd.f32 %v825, %v828
        %vm830 = vweird.f32 %v809
        %vm831 = vweird.f32 %v825
        %vm832 = vmor %vm830, %vm831
        %v833 = vsel %vm832, %v825, %v829
        %v834 = vand.u32 2147483647, %v809
        %vm835 = vcmp.eq.f32.partialorder %v834, 8.507059e+37
        %v836 = vand.u32 %v809, 2147483648
        %v837 = vor.u32 1.1754944e-38, %v836
        %v838 = vsel %vm835, %v837, %v833
        %v839 = vmul.f32 %v803, %v838
        %840 = vrot.lane.b32.xlu0 %v402, 48
        %v841 = vpop.permute.xlu0 %840
        %v844 = vsel %vm410, %v824, 0
        %846 = vmatpush.msra.mxu0 0.0
        %847 = vmatpush.msra.mxu0 0.0
        %848 = vmatpush.msra.mxu0 0.0
        %849 = vmatpush.msra.mxu0 0.0
        %850 = vmatpush.msra.mxu0 0.0
        %851 = vmatpush.msra.mxu0 0.0
        %852 = vmatpush.msra.mxu0 0.0
        %853 = vmatpush.msra.mxu0 0.0
        %854 = vmatpush.msra.mxu0 0.0
        %855 = vmatpush.msra.mxu0 0.0
        %856 = vmatpush.msra.mxu0 0.0
        %857 = vmatpush.msra.mxu0 0.0
        %858 = vmatpush.msra.mxu0 0.0
        %859 = vmatpush.msra.mxu0 0.0
        %860 = vmatpush.msra.mxu0 0.0
        %861 = vmatpush.msra.mxu0 %v841
        %862 = vmatmul.f32.gmra.mxu0 %v844
        %v863 = vpop.f32.mrf.mxu0
        %v864 = vadd.f32 0.0, %v863
        %865 = vdwg.mxu0
        %866 = vrot.lane.b32.xlu0 %v405, 48
        %v867 = vpop.permute.xlu0 %866
        %v870 = vsel %vm410, %v839, 0
        %872 = vmatpush.msra.mxu0 0.0
        %873 = vmatpush.msra.mxu0 0.0
        %874 = vmatpush.msra.mxu0 0.0
        %875 = vmatpush.msra.mxu0 0.0
        %876 = vmatpush.msra.mxu0 0.0
        %877 = vmatpush.msra.mxu0 0.0
        %878 = vmatpush.msra.mxu0 0.0
        %879 = vmatpush.msra.mxu0 0.0
        %880 = vmatpush.msra.mxu0 0.0
        %881 = vmatpush.msra.mxu0 0.0
        %882 = vmatpush.msra.mxu0 0.0
        %883 = vmatpush.msra.mxu0 0.0
        %884 = vmatpush.msra.mxu0 0.0
        %885 = vmatpush.msra.mxu0 0.0
        %886 = vmatpush.msra.mxu0 0.0
        %887 = vmatpush.msra.mxu0 %v867
        %888 = vmatmul.f32.gmra.mxu0 %v870
        %v889 = vpop.f32.mrf.mxu0
        %v890 = vadd.f32 0.0, %v889
        %891 = vdwg.mxu0
        %892 = vrot.lane.b32.xlu0 %v402, 104
        %v893 = vpop.permute.xlu0 %892
        %894 = vrot.lane.b32.xlu0 %v402, 72
        %v895 = vpop.permute.xlu0 %894
        %v896 = vsel %vm410, %v893, 0
        %v898 = vsel %vm410, %v895, 0
        %900 = vmatpush.xpose.msra.mxu0 0.0
        %901 = vmatpush.xpose.msra.mxu0 0.0
        %902 = vmatpush.xpose.msra.mxu0 0.0
        %903 = vmatpush.xpose.msra.mxu0 0.0
        %904 = vmatpush.xpose.msra.mxu0 0.0
        %905 = vmatpush.xpose.msra.mxu0 0.0
        %906 = vmatpush.xpose.msra.mxu0 0.0
        %907 = vmatpush.xpose.msra.mxu0 0.0
        %908 = vmatpush.xpose.msra.mxu0 0.0
        %909 = vmatpush.xpose.msra.mxu0 0.0
        %910 = vmatpush.xpose.msra.mxu0 0.0
        %911 = vmatpush.xpose.msra.mxu0 0.0
        %912 = vmatpush.xpose.msra.mxu0 0.0
        %913 = vmatpush.xpose.msra.mxu0 0.0
        %914 = vmatpush.xpose.msra.mxu0 0.0
        %915 = vmatpush.xpose.msra.mxu0 %v898
        %916 = vmatmul.f32.gmra.mxu0 %v896
        %v917 = vpop.f32.mrf.mxu0
        %v918 = vadd.f32 0.0, %v917
        %919 = vdwg.mxu0
        %920 = vrot.lane.b32.xlu0 %v405, 104
        %v921 = vpop.permute.xlu0 %920
        %922 = vrot.lane.b32.xlu0 %v405, 72
        %v923 = vpop.permute.xlu0 %922
        %v924 = vsel %vm410, %v921, 0
        %v926 = vsel %vm410, %v923, 0
        %928 = vmatpush.xpose.msra.mxu0 0.0
        %929 = vmatpush.xpose.msra.mxu0 0.0
        %930 = vmatpush.xpose.msra.mxu0 0.0
        %931 = vmatpush.xpose.msra.mxu0 0.0
        %932 = vmatpush.xpose.msra.mxu0 0.0
        %933 = vmatpush.xpose.msra.mxu0 0.0
        %934 = vmatpush.xpose.msra.mxu0 0.0
        %935 = vmatpush.xpose.msra.mxu0 0.0
        %936 = vmatpush.xpose.msra.mxu0 0.0
        %937 = vmatpush.xpose.msra.mxu0 0.0
        %938 = vmatpush.xpose.msra.mxu0 0.0
        %939 = vmatpush.xpose.msra.mxu0 0.0
        %940 = vmatpush.xpose.msra.mxu0 0.0
        %941 = vmatpush.xpose.msra.mxu0 0.0
        %942 = vmatpush.xpose.msra.mxu0 0.0
        %943 = vmatpush.xpose.msra.mxu0 %v926
        %944 = vmatmul.f32.gmra.mxu0 %v924
        %v945 = vpop.f32.mrf.mxu0
        %v946 = vadd.f32 0.0, %v945
        %947 = vdwg.mxu0
        %v948 = vmul.f32 %v918, 0.35355338
        %v949 = vmul.f32 %v946, 0.35355338
        %v950 = vsel %vm468, %v948, -1e+30
        %v951 = vsel %vm469, %v949, -1e+30
        %v952 = vsel %vm410, %v950, -inf
        %953 = vmax.xlane.f32.xlu0 %v952
        %v954 = vpop.xlane.xlu0 %953
        %v955 = vsel %vm410, %v951, -inf
        %956 = vmax.xlane.f32.xlu0 %v955
        %v957 = vpop.xlane.xlu0 %956
        %v958 = vsub.f32 %v950, %v954
        %v959 = vsub.f32 %v951, %v957
        %v960 = vmul.f32 %v958, 1.442695
        %v961 = vpow.pop %v960
        %v962 = vmul.f32 %v959, 1.442695
        %v963 = vpow.pop %v962
        %v964 = vsel %vm410, %v961, 0.0
        %965 = vadd.xlane.f32.xlu0 %v964
        %v966 = vpop.xlane.xlu0 %965
        %v967 = vsel %vm410, %v963, 0.0
        %968 = vadd.xlane.f32.xlu0 %v967
        %v969 = vpop.xlane.xlu0 %968
        %v970 = vrcp.pop %v966
        %v971 = vmul.f32 %v966, %v970
        %v972 = vsub.f32 1.0, %v971
        %v973 = vmul.f32 %v970, %v972
        %v974 = vadd.f32 %v970, %v973
        %vm975 = vweird.f32 %v966
        %vm976 = vweird.f32 %v970
        %vm977 = vmor %vm975, %vm976
        %v978 = vsel %vm977, %v970, %v974
        %v979 = vand.u32 2147483647, %v966
        %vm980 = vcmp.eq.f32.partialorder %v979, 8.507059e+37
        %v981 = vand.u32 %v966, 2147483648
        %v982 = vor.u32 1.1754944e-38, %v981
        %v983 = vsel %vm980, %v982, %v978
        %v984 = vmul.f32 %v961, %v983
        %v985 = vrcp.pop %v969
        %v986 = vmul.f32 %v969, %v985
        %v987 = vsub.f32 1.0, %v986
        %v988 = vmul.f32 %v985, %v987
        %v989 = vadd.f32 %v985, %v988
        %vm990 = vweird.f32 %v969
        %vm991 = vweird.f32 %v985
        %vm992 = vmor %vm990, %vm991
        %v993 = vsel %vm992, %v985, %v989
        %v994 = vand.u32 2147483647, %v969
        %vm995 = vcmp.eq.f32.partialorder %v994, 8.507059e+37
        %v996 = vand.u32 %v969, 2147483648
        %v997 = vor.u32 1.1754944e-38, %v996
        %v998 = vsel %vm995, %v997, %v993
        %v999 = vmul.f32 %v963, %v998
        %1000 = vrot.lane.b32.xlu0 %v402, 40
        %v1001 = vpop.permute.xlu0 %1000
        %v1004 = vsel %vm410, %v984, 0
        %1006 = vmatpush.msra.mxu0 0.0
        %1007 = vmatpush.msra.mxu0 0.0
        %1008 = vmatpush.msra.mxu0 0.0
        %1009 = vmatpush.msra.mxu0 0.0
        %1010 = vmatpush.msra.mxu0 0.0
        %1011 = vmatpush.msra.mxu0 0.0
        %1012 = vmatpush.msra.mxu0 0.0
        %1013 = vmatpush.msra.mxu0 0.0
        %1014 = vmatpush.msra.mxu0 0.0
        %1015 = vmatpush.msra.mxu0 0.0
        %1016 = vmatpush.msra.mxu0 0.0
        %1017 = vmatpush.msra.mxu0 0.0
        %1018 = vmatpush.msra.mxu0 0.0
        %1019 = vmatpush.msra.mxu0 0.0
        %1020 = vmatpush.msra.mxu0 0.0
        %1021 = vmatpush.msra.mxu0 %v1001
        %1022 = vmatmul.f32.gmra.mxu0 %v1004
        %v1023 = vpop.f32.mrf.mxu0
        %v1024 = vadd.f32 0.0, %v1023
        %1025 = vdwg.mxu0
        %1026 = vrot.lane.b32.xlu0 %v405, 40
        %v1027 = vpop.permute.xlu0 %1026
        %v1030 = vsel %vm410, %v999, 0
        %1032 = vmatpush.msra.mxu0 0.0
        %1033 = vmatpush.msra.mxu0 0.0
        %1034 = vmatpush.msra.mxu0 0.0
        %1035 = vmatpush.msra.mxu0 0.0
        %1036 = vmatpush.msra.mxu0 0.0
        %1037 = vmatpush.msra.mxu0 0.0
        %1038 = vmatpush.msra.mxu0 0.0
        %1039 = vmatpush.msra.mxu0 0.0
        %1040 = vmatpush.msra.mxu0 0.0
        %1041 = vmatpush.msra.mxu0 0.0
        %1042 = vmatpush.msra.mxu0 0.0
        %1043 = vmatpush.msra.mxu0 0.0
        %1044 = vmatpush.msra.mxu0 0.0
        %1045 = vmatpush.msra.mxu0 0.0
        %1046 = vmatpush.msra.mxu0 0.0
        %1047 = vmatpush.msra.mxu0 %v1027
        %1048 = vmatmul.f32.gmra.mxu0 %v1030
        %v1049 = vpop.f32.mrf.mxu0
        %v1050 = vadd.f32 0.0, %v1049
        %1051 = vdwg.mxu0
        %1054 = vrot.lane.b32.xlu0 %v704, 8
        %v1055 = vpop.permute.xlu0 %1054
        %1056 = vrot.lane.b32.xlu0 %v730, 8
        %v1057 = vpop.permute.xlu0 %1056
        %1062 = vrot.lane.b32.xlu0 %v864, 16
        %v1063 = vpop.permute.xlu0 %1062
        %1064 = vrot.lane.b32.xlu0 %v890, 16
        %v1065 = vpop.permute.xlu0 %1064
        %1070 = vrot.lane.b32.xlu0 %v1024, 24
        %v1071 = vpop.permute.xlu0 %1070
        %1072 = vrot.lane.b32.xlu0 %v1050, 24
        %v1073 = vpop.permute.xlu0 %1072
        %v1076 = vsel %vm410, %v544, %v1055
        %v1077 = vsel %vm410, %v570, %v1057
        %vm1078 = vcmask 130048
        %v1079 = vsel %vm1078, %v1076, %v1063
        %v1080 = vsel %vm1078, %v1077, %v1065
        %vm1081 = vcmask 195584
        %v1082 = vsel %vm1081, %v1079, %v1071
        %v1083 = vsel %vm1081, %v1080, %v1073
        %v1084 = vld [vmem:[#allocation4 + $0x30] sm:$0xff]
        %v1085 = vld [vmem:[#allocation4 + $0x38] sm:$0xff]
        %v1086 = vld [vmem:[#allocation4 + $0x40] sm:$0xff]
        %v1087 = vld [vmem:[#allocation4 + $0x48] sm:$0xff]
        %v1088 = vld [vmem:[#allocation6 + $0x5] sm:$0x1]
        %v1089 = vperm.slane %v1088, 0
        %v1091 = vsel %vm377, %v1082, 0
        %v1094 = vsel %vm377, %v1083, 0
        %1096 = vmatpush.msra.mxu0 0.0
        %1097 = vmatpush.msra.mxu0 0.0
        %1098 = vmatpush.msra.mxu0 0.0
        %1099 = vmatpush.msra.mxu0 0.0
        %1100 = vmatpush.msra.mxu0 0.0
        %1101 = vmatpush.msra.mxu0 0.0
        %1102 = vmatpush.msra.mxu0 0.0
        %1103 = vmatpush.msra.mxu0 0.0
        %1104 = vmatpush.msra.mxu0 0.0
        %1105 = vmatpush.msra.mxu0 0.0
        %1106 = vmatpush.msra.mxu0 0.0
        %1107 = vmatpush.msra.mxu0 0.0
        %1108 = vmatpush.msra.mxu0 %v1087
        %1109 = vmatpush.msra.mxu0 %v1086
        %1110 = vmatpush.msra.mxu0 %v1085
        %1111 = vmatpush.msra.mxu0 %v1084
        %1112 = vmatmul.f32.gmra.mxu0 %v1091
        %v1113 = vpop.f32.mrf.mxu0
        %v1114 = vadd.f32 %v1089, %v1113
        %1115 = vmatmul.f32.gmra.mxu0 %v1094
        %v1116 = vpop.f32.mrf.mxu0
        %v1117 = vadd.f32 %v1089, %v1116
        %1118 = vdwg.mxu0
        %v1119 = vadd.f32 %v1114, %v364
        %v1120 = vadd.f32 %v1117, %v367
        %v1121 = vld [vmem:[#allocation6 + $0x8] sm:$0x1]
        %v1122 = vld [vmem:[#allocation6 + $0x9] sm:$0x1]
        %v1123 = vsel %vm377, %v1119, 0.0
        %1124 = vadd.xlane.f32.xlu0 %v1123
        %v1125 = vpop.xlane.xlu0 %1124
        %v1126 = vsel %vm377, %v1120, 0.0
        %1127 = vadd.xlane.f32.xlu0 %v1126
        %v1128 = vpop.xlane.xlu0 %1127
        %v1129 = vrcp.pop 32.0
        %v1130 = vmul.f32 32.0, %v1129
        %v1131 = vsub.f32 1.0, %v1130
        %v1132 = vmul.f32 %v1129, %v1131
        %v1133 = vadd.f32 %v1129, %v1132
        %vm1134 = vweird.f32 %v1129
        %v1135 = vsel %vm1134, %v1129, %v1133
        %v1136 = vmul.f32 %v1125, %v1135
        %v1137 = vmul.f32 %v1128, %v1135
        %v1138 = vsub.f32 %v1119, %v1136
        %v1139 = vsub.f32 %v1120, %v1137
        %v1140 = vmul.f32 %v1138, %v1138
        %v1141 = vmul.f32 %v1139, %v1139
        %v1142 = vsel %vm377, %v1140, 0.0
        %1143 = vadd.xlane.f32.xlu0 %v1142
        %v1144 = vpop.xlane.xlu0 %1143
        %v1145 = vsel %vm377, %v1141, 0.0
        %1146 = vadd.xlane.f32.xlu0 %v1145
        %v1147 = vpop.xlane.xlu0 %1146
        %v1148 = vmul.f32 %v1144, %v1135
        %v1149 = vmul.f32 %v1147, %v1135
        %v1150 = vadd.f32 %v1148, 1e-05
        %v1151 = vadd.f32 %v1149, 1e-05
        %v1152 = vrsqrt.pop %v1150
        %v1153 = vmul.f32 %v1152, %v1150
        %v1154 = vmul.f32 %v1153, %v1152
        %v1155 = vmul.f32 0.5, %v1154
        %v1156 = vsub.f32 1.5, %v1155
        %v1157 = vmul.f32 %v1152, %v1156
        %vm1158 = vweird.f32 %v1150
        %vm1159 = vweird.f32 %v1152
        %vm1160 = vmor %vm1158, %vm1159
        %v1161 = vsel %vm1160, %v1152, %v1157
        %v1162 = vrsqrt.pop %v1151
        %v1163 = vmul.f32 %v1162, %v1151
        %v1164 = vmul.f32 %v1163, %v1162
        %v1165 = vmul.f32 0.5, %v1164
        %v1166 = vsub.f32 1.5, %v1165
        %v1167 = vmul.f32 %v1162, %v1166
        %vm1168 = vweird.f32 %v1151
        %vm1169 = vweird.f32 %v1162
        %vm1170 = vmor %vm1168, %vm1169
        %v1171 = vsel %vm1170, %v1162, %v1167
        %v1172 = vmul.f32 %v1138, %v1161
        %v1173 = vmul.f32 %v1139, %v1171
        %v1174 = vperm.slane %v1121, 0
        %v1175 = vmul.f32 %v1172, %v1174
        %v1176 = vmul.f32 %v1173, %v1174
        %v1177 = vperm.slane %v1122, 0
        %v1178 = vadd.f32 %v1175, %v1177
        %v1179 = vadd.f32 %v1176, %v1177
        %v1180 = vld [vmem:[#allocation4 + $0x50] sm:$0xff]
        %v1181 = vld [vmem:[#allocation4 + $0x58] sm:$0xff]
        %v1182 = vld [vmem:[#allocation4 + $0x60] sm:$0xff]
        %v1183 = vld [vmem:[#allocation4 + $0x68] sm:$0xff]
        %v1184 = vld [vmem:[#allocation6 + $0x6] sm:$0x1]
        %v1185 = vperm.slane %v1184, 0
        %v1187 = vsel %vm377, %v1178, 0
        %v1190 = vsel %vm377, %v1179, 0
        %1192 = vmatpush.msra.mxu0 0.0
        %1193 = vmatpush.msra.mxu0 0.0
        %1194 = vmatpush.msra.mxu0 0.0
        %1195 = vmatpush.msra.mxu0 0.0
        %1196 = vmatpush.msra.mxu0 0.0
        %1197 = vmatpush.msra.mxu0 0.0
        %1198 = vmatpush.msra.mxu0 0.0
        %1199 = vmatpush.msra.mxu0 0.0
        %1200 = vmatpush.msra.mxu0 0.0
        %1201 = vmatpush.msra.mxu0 0.0
        %1202 = vmatpush.msra.mxu0 0.0
        %1203 = vmatpush.msra.mxu0 0.0
        %1204 = vmatpush.msra.mxu0 %v1183
        %1205 = vmatpush.msra.mxu0 %v1182
        %1206 = vmatpush.msra.mxu0 %v1181
        %1207 = vmatpush.msra.mxu0 %v1180
        %1208 = vmatmul.f32.gmra.mxu0 %v1187
        %v1209 = vpop.f32.mrf.mxu0
        %v1210 = vadd.f32 %v1185, %v1209
        %1211 = vmatmul.f32.gmra.mxu0 %v1190
        %v1212 = vpop.f32.mrf.mxu0
        %v1213 = vadd.f32 %v1185, %v1212
        %1214 = vdwg.mxu0
        %v1215 = vmax.f32 %v1210, 0.0
        %v1216 = vmax.f32 %v1213, 0.0
        %v1217 = vld [vmem:[#allocation4 + $0x70] sm:$0xff]
        %v1218 = vld [vmem:[#allocation4 + $0x78] sm:$0xff]
        %v1219 = vld [vmem:[#allocation4 + $0x80] sm:$0xff]
        %v1220 = vld [vmem:[#allocation4 + $0x88] sm:$0xff]
        %v1221 = vld [vmem:[#allocation4 + $0x90] sm:$0xff]
        %v1222 = vld [vmem:[#allocation4 + $0x98] sm:$0xff]
        %v1223 = vld [vmem:[#allocation4 + $0xa0] sm:$0xff]
        %v1224 = vld [vmem:[#allocation4 + $0xa8] sm:$0xff]
        %v1225 = vld [vmem:[#allocation6 + $0x7] sm:$0x1]
        %v1226 = vperm.slane %v1225, 0
        %vm1227 = vcmask 523264
        %v1229 = vsel %vm1227, %v1215, 0
        %v1232 = vsel %vm1227, %v1216, 0
        %1234 = vmatpush.msra.mxu0 0.0
        %1235 = vmatpush.msra.mxu0 0.0
        %1236 = vmatpush.msra.mxu0 0.0
        %1237 = vmatpush.msra.mxu0 0.0
        %1238 = vmatpush.msra.mxu0 0.0
        %1239 = vmatpush.msra.mxu0 0.0
        %1240 = vmatpush.msra.mxu0 0.0
        %1241 = vmatpush.msra.mxu0 0.0
        %1242 = vmatpush.msra.mxu0 %v1224
        %1243 = vmatpush.msra.mxu0 %v1223
        %1244 = vmatpush.msra.mxu0 %v1222
        %1245 = vmatpush.msra.mxu0 %v1221
        %1246 = vmatpush.msra.mxu0 %v1220
        %1247 = vmatpush.msra.mxu0 %v1219
        %1248 = vmatpush.msra.mxu0 %v1218
        %1249 = vmatpush.msra.mxu0 %v1217
        %1250 = vmatmul.f32.gmra.mxu0 %v1229
        %v1251 = vpop.f32.mrf.mxu0
        %v1252 = vadd.f32 %v1226, %v1251
        %1253 = vmatmul.f32.gmra.mxu0 %v1232
        %v1254 = vpop.f32.mrf.mxu0
        %v1255 = vadd.f32 %v1226, %v1254
        %1256 = vdwg.mxu0
        %v1257 = vadd.f32 %v1252, %v1178
        %v1258 = vadd.f32 %v1255, %v1179
        %v1259 = vld [vmem:[#allocation6 + $0xa] sm:$0x1]
        %v1260 = vld [vmem:[#allocation6 + $0xb] sm:$0x1]
        %v1261 = vsel %vm377, %v1257, 0.0
        %1262 = vadd.xlane.f32.xlu0 %v1261
        %v1263 = vpop.xlane.xlu0 %1262
        %v1264 = vsel %vm377, %v1258, 0.0
        %1265 = vadd.xlane.f32.xlu0 %v1264
        %v1266 = vpop.xlane.xlu0 %1265
        %v1267 = vmul.f32 %v1263, %v1135
        %v1268 = vmul.f32 %v1266, %v1135
        %v1269 = vsub.f32 %v1257, %v1267
        %v1270 = vsub.f32 %v1258, %v1268
        %v1271 = vmul.f32 %v1269, %v1269
        %v1272 = vmul.f32 %v1270, %v1270
        %v1273 = vsel %vm377, %v1271, 0.0
        %1274 = vadd.xlane.f32.xlu0 %v1273
        %v1275 = vpop.xlane.xlu0 %1274
        %v1276 = vsel %vm377, %v1272, 0.0
        %1277 = vadd.xlane.f32.xlu0 %v1276
        %v1278 = vpop.xlane.xlu0 %1277
        %v1279 = vmul.f32 %v1275, %v1135
        %v1280 = vmul.f32 %v1278, %v1135
        %v1281 = vadd.f32 %v1279, 1e-05
        %v1282 = vadd.f32 %v1280, 1e-05
        %v1283 = vrsqrt.pop %v1281
        %v1284 = vmul.f32 %v1283, %v1281
        %v1285 = vmul.f32 %v1284, %v1283
        %v1286 = vmul.f32 0.5, %v1285
        %v1287 = vsub.f32 1.5, %v1286
        %v1288 = vmul.f32 %v1283, %v1287
        %vm1289 = vweird.f32 %v1281
        %vm1290 = vweird.f32 %v1283
        %vm1291 = vmor %vm1289, %vm1290
        %v1292 = vsel %vm1291, %v1283, %v1288
        %v1293 = vrsqrt.pop %v1282
        %v1294 = vmul.f32 %v1293, %v1282
        %v1295 = vmul.f32 %v1294, %v1293
        %v1296 = vmul.f32 0.5, %v1295
        %v1297 = vsub.f32 1.5, %v1296
        %v1298 = vmul.f32 %v1293, %v1297
        %vm1299 = vweird.f32 %v1282
        %vm1300 = vweird.f32 %v1293
        %vm1301 = vmor %vm1299, %vm1300
        %v1302 = vsel %vm1301, %v1293, %v1298
        %v1303 = vmul.f32 %v1269, %v1292
        %v1304 = vmul.f32 %v1270, %v1302
        %v1305 = vperm.slane %v1259, 0
        %v1306 = vmul.f32 %v1303, %v1305
        %v1307 = vmul.f32 %v1304, %v1305
        %v1308 = vperm.slane %v1260, 0
        %v1309 = vadd.f32 %v1306, %v1308
        %v1310 = vadd.f32 %v1307, %v1308
        %v1311 = vld [vmem:[#allocation4 + $0xb0] sm:$0xff]
        %v1312 = vld [vmem:[#allocation4 + $0xb8] sm:$0xff]
        %v1313 = vld [vmem:[#allocation4 + $0xc0] sm:$0xff]
        %v1314 = vld [vmem:[#allocation4 + $0xc8] sm:$0xff]
        %v1315 = vld [vmem:[#allocation6 + $0xc] sm:$0x1]
        %v1316 = vperm.slane %v1315, 0
        %v1318 = vsel %vm377, %v1309, 0
        %v1321 = vsel %vm377, %v1310, 0
        %1323 = vmatpush.msra.mxu0 0.0
        %1324 = vmatpush.msra.mxu0 0.0
        %1325 = vmatpush.msra.mxu0 0.0
        %1326 = vmatpush.msra.mxu0 0.0
        %1327 = vmatpush.msra.mxu0 0.0
        %1328 = vmatpush.msra.mxu0 0.0
        %1329 = vmatpush.msra.mxu0 0.0
        %1330 = vmatpush.msra.mxu0 0.0
        %1331 = vmatpush.msra.mxu0 0.0
        %1332 = vmatpush.msra.mxu0 0.0
        %1333 = vmatpush.msra.mxu0 0.0
        %1334 = vmatpush.msra.mxu0 0.0
        %1335 = vmatpush.msra.mxu0 %v1314
        %1336 = vmatpush.msra.mxu0 %v1313
        %1337 = vmatpush.msra.mxu0 %v1312
        %1338 = vmatpush.msra.mxu0 %v1311
        %1339 = vmatmul.f32.gmra.mxu0 %v1318
        %v1340 = vpop.f32.mrf.mxu0
        %v1341 = vadd.f32 %v1316, %v1340
        %1342 = vmatmul.f32.gmra.mxu0 %v1321
        %v1343 = vpop.f32.mrf.mxu0
        %v1344 = vadd.f32 %v1316, %v1343
        %1345 = vdwg.mxu0
        %1347 = vrot.lane.b32.xlu0 %v1341, 96
        %v1348 = vpop.permute.xlu0 %1347
        %v1349 = vsel %vm410, %v1341, 0
        %v1351 = vsel %vm410, %v1348, 0
        %1353 = vmatpush.xpose.msra.mxu0 0.0
        %1354 = vmatpush.xpose.msra.mxu0 0.0
        %1355 = vmatpush.xpose.msra.mxu0 0.0
        %1356 = vmatpush.xpose.msra.mxu0 0.0
        %1357 = vmatpush.xpose.msra.mxu0 0.0
        %1358 = vmatpush.xpose.msra.mxu0 0.0
        %1359 = vmatpush.xpose.msra.mxu0 0.0
        %1360 = vmatpush.xpose.msra.mxu0 0.0
        %1361 = vmatpush.xpose.msra.mxu0 0.0
        %1362 = vmatpush.xpose.msra.mxu0 0.0
        %1363 = vmatpush.xpose.msra.mxu0 0.0
        %1364 = vmatpush.xpose.msra.mxu0 0.0
        %1365 = vmatpush.xpose.msra.mxu0 0.0
        %1366 = vmatpush.xpose.msra.mxu0 0.0
        %1367 = vmatpush.xpose.msra.mxu0 0.0
        %1368 = vmatpush.xpose.msra.mxu0 %v1351
        %1369 = vmatmul.f32.gmra.mxu0 %v1349
        %v1370 = vpop.f32.mrf.mxu0
        %v1371 = vadd.f32 0.0, %v1370
        %1372 = vdwg.mxu0
        %1374 = vrot.lane.b32.xlu0 %v1344, 96
        %v1375 = vpop.permute.xlu0 %1374
        %v1376 = vsel %vm410, %v1344, 0
        %v1378 = vsel %vm410, %v1375, 0
        %1380 = vmatpush.xpose.msra.mxu0 0.0
        %1381 = vmatpush.xpose.msra.mxu0 0.0
        %1382 = vmatpush.xpose.msra.mxu0 0.0
        %1383 = vmatpush.xpose.msra.mxu0 0.0
        %1384 = vmatpush.xpose.msra.mxu0 0.0
        %1385 = vmatpush.xpose.msra.mxu0 0.0
        %1386 = vmatpush.xpose.msra.mxu0 0.0
        %1387 = vmatpush.xpose.msra.mxu0 0.0
        %1388 = vmatpush.xpose.msra.mxu0 0.0
        %1389 = vmatpush.xpose.msra.mxu0 0.0
        %1390 = vmatpush.xpose.msra.mxu0 0.0
        %1391 = vmatpush.xpose.msra.mxu0 0.0
        %1392 = vmatpush.xpose.msra.mxu0 0.0
        %1393 = vmatpush.xpose.msra.mxu0 0.0
        %1394 = vmatpush.xpose.msra.mxu0 0.0
        %1395 = vmatpush.xpose.msra.mxu0 %v1378
        %1396 = vmatmul.f32.gmra.mxu0 %v1376
        %v1397 = vpop.f32.mrf.mxu0
        %v1398 = vadd.f32 0.0, %v1397
        %1399 = vdwg.mxu0
        %v1400 = vmul.f32 %v1371, 0.35355338
        %v1401 = vmul.f32 %v1398, 0.35355338
        %v1402 = vsel %vm468, %v1400, -1e+30
        %v1403 = vsel %vm469, %v1401, -1e+30
        %v1404 = vsel %vm410, %v1402, -inf
        %1405 = vmax.xlane.f32.xlu0 %v1404
        %v1406 = vpop.xlane.xlu0 %1405
        %v1407 = vsel %vm410, %v1403, -inf
        %1408 = vmax.xlane.f32.xlu0 %v1407
        %v1409 = vpop.xlane.xlu0 %1408
        %v1410 = vsub.f32 %v1402, %v1406
        %v1411 = vsub.f32 %v1403, %v1409
        %v1412 = vmul.f32 %v1410, 1.442695
        %v1413 = vpow.pop %v1412
        %v1414 = vmul.f32 %v1411, 1.442695
        %v1415 = vpow.pop %v1414
        %v1416 = vsel %vm410, %v1413, 0.0
        %1417 = vadd.xlane.f32.xlu0 %v1416
        %v1418 = vpop.xlane.xlu0 %1417
        %v1419 = vsel %vm410, %v1415, 0.0
        %1420 = vadd.xlane.f32.xlu0 %v1419
        %v1421 = vpop.xlane.xlu0 %1420
        %v1422 = vrcp.pop %v1418
        %v1423 = vmul.f32 %v1418, %v1422
        %v1424 = vsub.f32 1.0, %v1423
        %v1425 = vmul.f32 %v1422, %v1424
        %v1426 = vadd.f32 %v1422, %v1425
        %vm1427 = vweird.f32 %v1418
        %vm1428 = vweird.f32 %v1422
        %vm1429 = vmor %vm1427, %vm1428
        %v1430 = vsel %vm1429, %v1422, %v1426
        %v1431 = vand.u32 2147483647, %v1418
        %vm1432 = vcmp.eq.f32.partialorder %v1431, 8.507059e+37
        %v1433 = vand.u32 %v1418, 2147483648
        %v1434 = vor.u32 1.1754944e-38, %v1433
        %v1435 = vsel %vm1432, %v1434, %v1430
        %v1436 = vmul.f32 %v1413, %v1435
        %v1437 = vrcp.pop %v1421
        %v1438 = vmul.f32 %v1421, %v1437
        %v1439 = vsub.f32 1.0, %v1438
        %v1440 = vmul.f32 %v1437, %v1439
        %v1441 = vadd.f32 %v1437, %v1440
        %vm1442 = vweird.f32 %v1421
        %vm1443 = vweird.f32 %v1437
        %vm1444 = vmor %vm1442, %vm1443
        %v1445 = vsel %vm1444, %v1437, %v1441
        %v1446 = vand.u32 2147483647, %v1421
        %vm1447 = vcmp.eq.f32.partialorder %v1446, 8.507059e+37
        %v1448 = vand.u32 %v1421, 2147483648
        %v1449 = vor.u32 1.1754944e-38, %v1448
        %v1450 = vsel %vm1447, %v1449, %v1445
        %v1451 = vmul.f32 %v1415, %v1450
        %1452 = vrot.lane.b32.xlu0 %v1341, 64
        %v1453 = vpop.permute.xlu0 %1452
        %v1456 = vsel %vm410, %v1436, 0
        %1458 = vmatpush.msra.mxu0 0.0
        %1459 = vmatpush.msra.mxu0 0.0
        %1460 = vmatpush.msra.mxu0 0.0
        %1461 = vmatpush.msra.mxu0 0.0
        %1462 = vmatpush.msra.mxu0 0.0
        %1463 = vmatpush.msra.mxu0 0.0
        %1464 = vmatpush.msra.mxu0 0.0
        %1465 = vmatpush.msra.mxu0 0.0
        %1466 = vmatpush.msra.mxu0 0.0
        %1467 = vmatpush.msra.mxu0 0.0
        %1468 = vmatpush.msra.mxu0 0.0
        %1469 = vmatpush.msra.mxu0 0.0
        %1470 = vmatpush.msra.mxu0 0.0
        %1471 = vmatpush.msra.mxu0 0.0
        %1472 = vmatpush.msra.mxu0 0.0
        %1473 = vmatpush.msra.mxu0 %v1453
        %1474 = vmatmul.f32.gmra.mxu0 %v1456
        %v1475 = vpop.f32.mrf.mxu0
        %v1476 = vadd.f32 0.0, %v1475
        %1477 = vdwg.mxu0
        %1478 = vrot.lane.b32.xlu0 %v1344, 64
        %v1479 = vpop.permute.xlu0 %1478
        %v1482 = vsel %vm410, %v1451, 0
        %1484 = vmatpush.msra.mxu0 0.0
        %1485 = vmatpush.msra.mxu0 0.0
        %1486 = vmatpush.msra.mxu0 0.0
        %1487 = vmatpush.msra.mxu0 0.0
        %1488 = vmatpush.msra.mxu0 0.0
        %1489 = vmatpush.msra.mxu0 0.0
        %1490 = vmatpush.msra.mxu0 0.0
        %1491 = vmatpush.msra.mxu0 0.0
        %1492 = vmatpush.msra.mxu0 0.0
        %1493 = vmatpush.msra.mxu0 0.0
        %1494 = vmatpush.msra.mxu0 0.0
        %1495 = vmatpush.msra.mxu0 0.0
        %1496 = vmatpush.msra.mxu0 0.0
        %1497 = vmatpush.msra.mxu0 0.0
        %1498 = vmatpush.msra.mxu0 0.0
        %1499 = vmatpush.msra.mxu0 %v1479
        %1500 = vmatmul.f32.gmra.mxu0 %v1482
        %v1501 = vpop.f32.mrf.mxu0
        %v1502 = vadd.f32 0.0, %v1501
        %1503 = vdwg.mxu0
        %1504 = vrot.lane.b32.xlu0 %v1341, 120
        %v1505 = vpop.permute.xlu0 %1504
        %1506 = vrot.lane.b32.xlu0 %v1341, 88
        %v1507 = vpop.permute.xlu0 %1506
        %v1508 = vsel %vm410, %v1505, 0
        %v1510 = vsel %vm410, %v1507, 0
        %1512 = vmatpush.xpose.msra.mxu0 0.0
        %1513 = vmatpush.xpose.msra.mxu0 0.0
        %1514 = vmatpush.xpose.msra.mxu0 0.0
        %1515 = vmatpush.xpose.msra.mxu0 0.0
        %1516 = vmatpush.xpose.msra.mxu0 0.0
        %1517 = vmatpush.xpose.msra.mxu0 0.0
        %1518 = vmatpush.xpose.msra.mxu0 0.0
        %1519 = vmatpush.xpose.msra.mxu0 0.0
        %1520 = vmatpush.xpose.msra.mxu0 0.0
        %1521 = vmatpush.xpose.msra.mxu0 0.0
        %1522 = vmatpush.xpose.msra.mxu0 0.0
        %1523 = vmatpush.xpose.msra.mxu0 0.0
        %1524 = vmatpush.xpose.msra.mxu0 0.0
        %1525 = vmatpush.xpose.msra.mxu0 0.0
        %1526 = vmatpush.xpose.msra.mxu0 0.0
        %1527 = vmatpush.xpose.msra.mxu0 %v1510
        %1528 = vmatmul.f32.gmra.mxu0 %v1508
        %v1529 = vpop.f32.mrf.mxu0
        %v1530 = vadd.f32 0.0, %v1529
        %1531 = vdwg.mxu0
        %1532 = vrot.lane.b32.xlu0 %v1344, 120
        %v1533 = vpop.permute.xlu0 %1532
        %1534 = vrot.lane.b32.xlu0 %v1344, 88
        %v1535 = vpop.permute.xlu0 %1534
        %v1536 = vsel %vm410, %v1533, 0
        %v1538 = vsel %vm410, %v1535, 0
        %1540 = vmatpush.xpose.msra.mxu0 0.0
        %1541 = vmatpush.xpose.msra.mxu0 0.0
        %1542 = vmatpush.xpose.msra.mxu0 0.0
        %1543 = vmatpush.xpose.msra.mxu0 0.0
        %1544 = vmatpush.xpose.msra.mxu0 0.0
        %1545 = vmatpush.xpose.msra.mxu0 0.0
        %1546 = vmatpush.xpose.msra.mxu0 0.0
        %1547 = vmatpush.xpose.msra.mxu0 0.0
        %1548 = vmatpush.xpose.msra.mxu0 0.0
        %1549 = vmatpush.xpose.msra.mxu0 0.0
        %1550 = vmatpush.xpose.msra.mxu0 0.0
        %1551 = vmatpush.xpose.msra.mxu0 0.0
        %1552 = vmatpush.xpose.msra.mxu0 0.0
        %1553 = vmatpush.xpose.msra.mxu0 0.0
        %1554 = vmatpush.xpose.msra.mxu0 0.0
        %1555 = vmatpush.xpose.msra.mxu0 %v1538
        %1556 = vmatmul.f32.gmra.mxu0 %v1536
        %v1557 = vpop.f32.mrf.mxu0
        %v1558 = vadd.f32 0.0, %v1557
        %1559 = vdwg.mxu0
        %v1560 = vmul.f32 %v1530, 0.35355338
        %v1561 = vmul.f32 %v1558, 0.35355338
        %v1562 = vsel %vm468, %v1560, -1e+30
        %v1563 = vsel %vm469, %v1561, -1e+30
        %v1564 = vsel %vm410, %v1562, -inf
        %1565 = vmax.xlane.f32.xlu0 %v1564
        %v1566 = vpop.xlane.xlu0 %1565
        %v1567 = vsel %vm410, %v1563, -inf
        %1568 = vmax.xlane.f32.xlu0 %v1567
        %v1569 = vpop.xlane.xlu0 %1568
        %v1570 = vsub.f32 %v1562, %v1566
        %v1571 = vsub.f32 %v1563, %v1569
        %v1572 = vmul.f32 %v1570, 1.442695
        %v1573 = vpow.pop %v1572
        %v1574 = vmul.f32 %v1571, 1.442695
        %v1575 = vpow.pop %v1574
        %v1576 = vsel %vm410, %v1573, 0.0
        %1577 = vadd.xlane.f32.xlu0 %v1576
        %v1578 = vpop.xlane.xlu0 %1577
        %v1579 = vsel %vm410, %v1575, 0.0
        %1580 = vadd.xlane.f32.xlu0 %v1579
        %v1581 = vpop.xlane.xlu0 %1580
        %v1582 = vrcp.pop %v1578
        %v1583 = vmul.f32 %v1578, %v1582
        %v1584 = vsub.f32 1.0, %v1583
        %v1585 = vmul.f32 %v1582, %v1584
        %v1586 = vadd.f32 %v1582, %v1585
        %vm1587 = vweird.f32 %v1578
        %vm1588 = vweird.f32 %v1582
        %vm1589 = vmor %vm1587, %vm1588
        %v1590 = vsel %vm1589, %v1582, %v1586
        %v1591 = vand.u32 2147483647, %v1578
        %vm1592 = vcmp.eq.f32.partialorder %v1591, 8.507059e+37
        %v1593 = vand.u32 %v1578, 2147483648
        %v1594 = vor.u32 1.1754944e-38, %v1593
        %v1595 = vsel %vm1592, %v1594, %v1590
        %v1596 = vmul.f32 %v1573, %v1595
        %v1597 = vrcp.pop %v1581
        %v1598 = vmul.f32 %v1581, %v1597
        %v1599 = vsub.f32 1.0, %v1598
        %v1600 = vmul.f32 %v1597, %v1599
        %v1601 = vadd.f32 %v1597, %v1600
        %vm1602 = vweird.f32 %v1581
        %vm1603 = vweird.f32 %v1597
        %vm1604 = vmor %vm1602, %vm1603
        %v1605 = vsel %vm1604, %v1597, %v1601
        %v1606 = vand.u32 2147483647, %v1581
        %vm1607 = vcmp.eq.f32.partialorder %v1606, 8.507059e+37
        %v1608 = vand.u32 %v1581, 2147483648
        %v1609 = vor.u32 1.1754944e-38, %v1608
        %v1610 = vsel %vm1607, %v1609, %v1605
        %v1611 = vmul.f32 %v1575, %v1610
        %1612 = vrot.lane.b32.xlu0 %v1341, 56
        %v1613 = vpop.permute.xlu0 %1612
        %v1616 = vsel %vm410, %v1596, 0
        %1618 = vmatpush.msra.mxu0 0.0
        %1619 = vmatpush.msra.mxu0 0.0
        %1620 = vmatpush.msra.mxu0 0.0
        %1621 = vmatpush.msra.mxu0 0.0
        %1622 = vmatpush.msra.mxu0 0.0
        %1623 = vmatpush.msra.mxu0 0.0
        %1624 = vmatpush.msra.mxu0 0.0
        %1625 = vmatpush.msra.mxu0 0.0
        %1626 = vmatpush.msra.mxu0 0.0
        %1627 = vmatpush.msra.mxu0 0.0
        %1628 = vmatpush.msra.mxu0 0.0
        %1629 = vmatpush.msra.mxu0 0.0
        %1630 = vmatpush.msra.mxu0 0.0
        %1631 = vmatpush.msra.mxu0 0.0
        %1632 = vmatpush.msra.mxu0 0.0
        %1633 = vmatpush.msra.mxu0 %v1613
        %1634 = vmatmul.f32.gmra.mxu0 %v1616
        %v1635 = vpop.f32.mrf.mxu0
        %v1636 = vadd.f32 0.0, %v1635
        %1637 = vdwg.mxu0
        %1638 = vrot.lane.b32.xlu0 %v1344, 56
        %v1639 = vpop.permute.xlu0 %1638
        %v1642 = vsel %vm410, %v1611, 0
        %1644 = vmatpush.msra.mxu0 0.0
        %1645 = vmatpush.msra.mxu0 0.0
        %1646 = vmatpush.msra.mxu0 0.0
        %1647 = vmatpush.msra.mxu0 0.0
        %1648 = vmatpush.msra.mxu0 0.0
        %1649 = vmatpush.msra.mxu0 0.0
        %1650 = vmatpush.msra.mxu0 0.0
        %1651 = vmatpush.msra.mxu0 0.0
        %1652 = vmatpush.msra.mxu0 0.0
        %1653 = vmatpush.msra.mxu0 0.0
        %1654 = vmatpush.msra.mxu0 0.0
        %1655 = vmatpush.msra.mxu0 0.0
        %1656 = vmatpush.msra.mxu0 0.0
        %1657 = vmatpush.msra.mxu0 0.0
        %1658 = vmatpush.msra.mxu0 0.0
        %1659 = vmatpush.msra.mxu0 %v1639
        %1660 = vmatmul.f32.gmra.mxu0 %v1642
        %v1661 = vpop.f32.mrf.mxu0
        %v1662 = vadd.f32 0.0, %v1661
        %1663 = vdwg.mxu0
        %1664 = vrot.lane.b32.xlu0 %v1341, 112
        %v1665 = vpop.permute.xlu0 %1664
        %1666 = vrot.lane.b32.xlu0 %v1341, 80
        %v1667 = vpop.permute.xlu0 %1666
        %v1668 = vsel %vm410, %v1665, 0
        %v1670 = vsel %vm410, %v1667, 0
        %1672 = vmatpush.xpose.msra.mxu0 0.0
        %1673 = vmatpush.xpose.msra.mxu0 0.0
        %1674 = vmatpush.xpose.msra.mxu0 0.0
        %1675 = vmatpush.xpose.msra.mxu0 0.0
        %1676 = vmatpush.xpose.msra.mxu0 0.0
        %1677 = vmatpush.xpose.msra.mxu0 0.0
        %1678 = vmatpush.xpose.msra.mxu0 0.0
        %1679 = vmatpush.xpose.msra.mxu0 0.0
        %1680 = vmatpush.xpose.msra.mxu0 0.0
        %1681 = vmatpush.xpose.msra.mxu0 0.0
        %1682 = vmatpush.xpose.msra.mxu0 0.0
        %1683 = vmatpush.xpose.msra.mxu0 0.0
        %1684 = vmatpush.xpose.msra.mxu0 0.0
        %1685 = vmatpush.xpose.msra.mxu0 0.0
        %1686 = vmatpush.xpose.msra.mxu0 0.0
        %1687 = vmatpush.xpose.msra.mxu0 %v1670
        %1688 = vmatmul.f32.gmra.mxu0 %v1668
        %v1689 = vpop.f32.mrf.mxu0
        %v1690 = vadd.f32 0.0, %v1689
        %1691 = vdwg.mxu0
        %1692 = vrot.lane.b32.xlu0 %v1344, 112
        %v1693 = vpop.permute.xlu0 %1692
        %1694 = vrot.lane.b32.xlu0 %v1344, 80
        %v1695 = vpop.permute.xlu0 %1694
        %v1696 = vsel %vm410, %v1693, 0
        %v1698 = vsel %vm410, %v1695, 0
        %1700 = vmatpush.xpose.msra.mxu0 0.0
        %1701 = vmatpush.xpose.msra.mxu0 0.0
        %1702 = vmatpush.xpose.msra.mxu0 0.0
        %1703 = vmatpush.xpose.msra.mxu0 0.0
        %1704 = vmatpush.xpose.msra.mxu0 0.0
        %1705 = vmatpush.xpose.msra.mxu0 0.0
        %1706 = vmatpush.xpose.msra.mxu0 0.0
        %1707 = vmatpush.xpose.msra.mxu0 0.0
        %1708 = vmatpush.xpose.msra.mxu0 0.0
        %1709 = vmatpush.xpose.msra.mxu0 0.0
        %1710 = vmatpush.xpose.msra.mxu0 0.0
        %1711 = vmatpush.xpose.msra.mxu0 0.0
        %1712 = vmatpush.xpose.msra.mxu0 0.0
        %1713 = vmatpush.xpose.msra.mxu0 0.0
        %1714 = vmatpush.xpose.msra.mxu0 0.0
        %1715 = vmatpush.xpose.msra.mxu0 %v1698
        %1716 = vmatmul.f32.gmra.mxu0 %v1696
        %v1717 = vpop.f32.mrf.mxu0
        %v1718 = vadd.f32 0.0, %v1717
        %1719 = vdwg.mxu0
        %v1720 = vmul.f32 %v1690, 0.35355338
        %v1721 = vmul.f32 %v1718, 0.35355338
        %v1722 = vsel %vm468, %v1720, -1e+30
        %v1723 = vsel %vm469, %v1721, -1e+30
        %v1724 = vsel %vm410, %v1722, -inf
        %1725 = vmax.xlane.f32.xlu0 %v1724
        %v1726 = vpop.xlane.xlu0 %1725
        %v1727 = vsel %vm410, %v1723, -inf
        %1728 = vmax.xlane.f32.xlu0 %v1727
        %v1729 = vpop.xlane.xlu0 %1728
        %v1730 = vsub.f32 %v1722, %v1726
        %v1731 = vsub.f32 %v1723, %v1729
        %v1732 = vmul.f32 %v1730, 1.442695
        %v1733 = vpow.pop %v1732
        %v1734 = vmul.f32 %v1731, 1.442695
        %v1735 = vpow.pop %v1734
        %v1736 = vsel %vm410, %v1733, 0.0
        %1737 = vadd.xlane.f32.xlu0 %v1736
        %v1738 = vpop.xlane.xlu0 %1737
        %v1739 = vsel %vm410, %v1735, 0.0
        %1740 = vadd.xlane.f32.xlu0 %v1739
        %v1741 = vpop.xlane.xlu0 %1740
        %v1742 = vrcp.pop %v1738
        %v1743 = vmul.f32 %v1738, %v1742
        %v1744 = vsub.f32 1.0, %v1743
        %v1745 = vmul.f32 %v1742, %v1744
        %v1746 = vadd.f32 %v1742, %v1745
        %vm1747 = vweird.f32 %v1738
        %vm1748 = vweird.f32 %v1742
        %vm1749 = vmor %vm1747, %vm1748
        %v1750 = vsel %vm1749, %v1742, %v1746
        %v1751 = vand.u32 2147483647, %v1738
        %vm1752 = vcmp.eq.f32.partialorder %v1751, 8.507059e+37
        %v1753 = vand.u32 %v1738, 2147483648
        %v1754 = vor.u32 1.1754944e-38, %v1753
        %v1755 = vsel %vm1752, %v1754, %v1750
        %v1756 = vmul.f32 %v1733, %v1755
        %v1757 = vrcp.pop %v1741
        %v1758 = vmul.f32 %v1741, %v1757
        %v1759 = vsub.f32 1.0, %v1758
        %v1760 = vmul.f32 %v1757, %v1759
        %v1761 = vadd.f32 %v1757, %v1760
        %vm1762 = vweird.f32 %v1741
        %vm1763 = vweird.f32 %v1757
        %vm1764 = vmor %vm1762, %vm1763
        %v1765 = vsel %vm1764, %v1757, %v1761
        %v1766 = vand.u32 2147483647, %v1741
        %vm1767 = vcmp.eq.f32.partialorder %v1766, 8.507059e+37
        %v1768 = vand.u32 %v1741, 2147483648
        %v1769 = vor.u32 1.1754944e-38, %v1768
        %v1770 = vsel %vm1767, %v1769, %v1765
        %v1771 = vmul.f32 %v1735, %v1770
        %1772 = vrot.lane.b32.xlu0 %v1341, 48
        %v1773 = vpop.permute.xlu0 %1772
        %v1776 = vsel %vm410, %v1756, 0
        %1778 = vmatpush.msra.mxu0 0.0
        %1779 = vmatpush.msra.mxu0 0.0
        %1780 = vmatpush.msra.mxu0 0.0
        %1781 = vmatpush.msra.mxu0 0.0
        %1782 = vmatpush.msra.mxu0 0.0
        %1783 = vmatpush.msra.mxu0 0.0
        %1784 = vmatpush.msra.mxu0 0.0
        %1785 = vmatpush.msra.mxu0 0.0
        %1786 = vmatpush.msra.mxu0 0.0
        %1787 = vmatpush.msra.mxu0 0.0
        %1788 = vmatpush.msra.mxu0 0.0
        %1789 = vmatpush.msra.mxu0 0.0
        %1790 = vmatpush.msra.mxu0 0.0
        %1791 = vmatpush.msra.mxu0 0.0
        %1792 = vmatpush.msra.mxu0 0.0
        %1793 = vmatpush.msra.mxu0 %v1773
        %1794 = vmatmul.f32.gmra.mxu0 %v1776
        %v1795 = vpop.f32.mrf.mxu0
        %v1796 = vadd.f32 0.0, %v1795
        %1797 = vdwg.mxu0
        %1798 = vrot.lane.b32.xlu0 %v1344, 48
        %v1799 = vpop.permute.xlu0 %1798
        %v1802 = vsel %vm410, %v1771, 0
        %1804 = vmatpush.msra.mxu0 0.0
        %1805 = vmatpush.msra.mxu0 0.0
        %1806 = vmatpush.msra.mxu0 0.0
        %1807 = vmatpush.msra.mxu0 0.0
        %1808 = vmatpush.msra.mxu0 0.0
        %1809 = vmatpush.msra.mxu0 0.0
        %1810 = vmatpush.msra.mxu0 0.0
        %1811 = vmatpush.msra.mxu0 0.0
        %1812 = vmatpush.msra.mxu0 0.0
        %1813 = vmatpush.msra.mxu0 0.0
        %1814 = vmatpush.msra.mxu0 0.0
        %1815 = vmatpush.msra.mxu0 0.0
        %1816 = vmatpush.msra.mxu0 0.0
        %1817 = vmatpush.msra.mxu0 0.0
        %1818 = vmatpush.msra.mxu0 0.0
        %1819 = vmatpush.msra.mxu0 %v1799
        %1820 = vmatmul.f32.gmra.mxu0 %v1802
        %v1821 = vpop.f32.mrf.mxu0
        %v1822 = vadd.f32 0.0, %v1821
        %1823 = vdwg.mxu0
        %1824 = vrot.lane.b32.xlu0 %v1341, 104
        %v1825 = vpop.permute.xlu0 %1824
        %1826 = vrot.lane.b32.xlu0 %v1341, 72
        %v1827 = vpop.permute.xlu0 %1826
        %v1828 = vsel %vm410, %v1825, 0
        %v1830 = vsel %vm410, %v1827, 0
        %1832 = vmatpush.xpose.msra.mxu0 0.0
        %1833 = vmatpush.xpose.msra.mxu0 0.0
        %1834 = vmatpush.xpose.msra.mxu0 0.0
        %1835 = vmatpush.xpose.msra.mxu0 0.0
        %1836 = vmatpush.xpose.msra.mxu0 0.0
        %1837 = vmatpush.xpose.msra.mxu0 0.0
        %1838 = vmatpush.xpose.msra.mxu0 0.0
        %1839 = vmatpush.xpose.msra.mxu0 0.0
        %1840 = vmatpush.xpose.msra.mxu0 0.0
        %1841 = vmatpush.xpose.msra.mxu0 0.0
        %1842 = vmatpush.xpose.msra.mxu0 0.0
        %1843 = vmatpush.xpose.msra.mxu0 0.0
        %1844 = vmatpush.xpose.msra.mxu0 0.0
        %1845 = vmatpush.xpose.msra.mxu0 0.0
        %1846 = vmatpush.xpose.msra.mxu0 0.0
        %1847 = vmatpush.xpose.msra.mxu0 %v1830
        %1848 = vmatmul.f32.gmra.mxu0 %v1828
        %v1849 = vpop.f32.mrf.mxu0
        %v1850 = vadd.f32 0.0, %v1849
        %1851 = vdwg.mxu0
        %1852 = vrot.lane.b32.xlu0 %v1344, 104
        %v1853 = vpop.permute.xlu0 %1852
        %1854 = vrot.lane.b32.xlu0 %v1344, 72
        %v1855 = vpop.permute.xlu0 %1854
        %v1856 = vsel %vm410, %v1853, 0
        %v1858 = vsel %vm410, %v1855, 0
        %1860 = vmatpush.xpose.msra.mxu0 0.0
        %1861 = vmatpush.xpose.msra.mxu0 0.0
        %1862 = vmatpush.xpose.msra.mxu0 0.0
        %1863 = vmatpush.xpose.msra.mxu0 0.0
        %1864 = vmatpush.xpose.msra.mxu0 0.0
        %1865 = vmatpush.xpose.msra.mxu0 0.0
        %1866 = vmatpush.xpose.msra.mxu0 0.0
        %1867 = vmatpush.xpose.msra.mxu0 0.0
        %1868 = vmatpush.xpose.msra.mxu0 0.0
        %1869 = vmatpush.xpose.msra.mxu0 0.0
        %1870 = vmatpush.xpose.msra.mxu0 0.0
        %1871 = vmatpush.xpose.msra.mxu0 0.0
        %1872 = vmatpush.xpose.msra.mxu0 0.0
        %1873 = vmatpush.xpose.msra.mxu0 0.0
        %1874 = vmatpush.xpose.msra.mxu0 0.0
        %1875 = vmatpush.xpose.msra.mxu0 %v1858
        %1876 = vmatmul.f32.gmra.mxu0 %v1856
        %v1877 = vpop.f32.mrf.mxu0
        %v1878 = vadd.f32 0.0, %v1877
        %1879 = vdwg.mxu0
        %v1880 = vmul.f32 %v1850, 0.35355338
        %v1881 = vmul.f32 %v1878, 0.35355338
        %v1882 = vsel %vm468, %v1880, -1e+30
        %v1883 = vsel %vm469, %v1881, -1e+30
        %v1884 = vsel %vm410, %v1882, -inf
        %1885 = vmax.xlane.f32.xlu0 %v1884
        %v1886 = vpop.xlane.xlu0 %1885
        %v1887 = vsel %vm410, %v1883, -inf
        %1888 = vmax.xlane.f32.xlu0 %v1887
        %v1889 = vpop.xlane.xlu0 %1888
        %v1890 = vsub.f32 %v1882, %v1886
        %v1891 = vsub.f32 %v1883, %v1889
        %v1892 = vmul.f32 %v1890, 1.442695
        %v1893 = vpow.pop %v1892
        %v1894 = vmul.f32 %v1891, 1.442695
        %v1895 = vpow.pop %v1894
        %v1896 = vsel %vm410, %v1893, 0.0
        %1897 = vadd.xlane.f32.xlu0 %v1896
        %v1898 = vpop.xlane.xlu0 %1897
        %v1899 = vsel %vm410, %v1895, 0.0
        %1900 = vadd.xlane.f32.xlu0 %v1899
        %v1901 = vpop.xlane.xlu0 %1900
        %v1902 = vrcp.pop %v1898
        %v1903 = vmul.f32 %v1898, %v1902
        %v1904 = vsub.f32 1.0, %v1903
        %v1905 = vmul.f32 %v1902, %v1904
        %v1906 = vadd.f32 %v1902, %v1905
        %vm1907 = vweird.f32 %v1898
        %vm1908 = vweird.f32 %v1902
        %vm1909 = vmor %vm1907, %vm1908
        %v1910 = vsel %vm1909, %v1902, %v1906
        %v1911 = vand.u32 2147483647, %v1898
        %vm1912 = vcmp.eq.f32.partialorder %v1911, 8.507059e+37
        %v1913 = vand.u32 %v1898, 2147483648
        %v1914 = vor.u32 1.1754944e-38, %v1913
        %v1915 = vsel %vm1912, %v1914, %v1910
        %v1916 = vmul.f32 %v1893, %v1915
        %v1917 = vrcp.pop %v1901
        %v1918 = vmul.f32 %v1901, %v1917
        %v1919 = vsub.f32 1.0, %v1918
        %v1920 = vmul.f32 %v1917, %v1919
        %v1921 = vadd.f32 %v1917, %v1920
        %vm1922 = vweird.f32 %v1901
        %vm1923 = vweird.f32 %v1917
        %vm1924 = vmor %vm1922, %vm1923
        %v1925 = vsel %vm1924, %v1917, %v1921
        %v1926 = vand.u32 2147483647, %v1901
        %vm1927 = vcmp.eq.f32.partialorder %v1926, 8.507059e+37
        %v1928 = vand.u32 %v1901, 2147483648
        %v1929 = vor.u32 1.1754944e-38, %v1928
        %v1930 = vsel %vm1927, %v1929, %v1925
        %v1931 = vmul.f32 %v1895, %v1930
        %1932 = vrot.lane.b32.xlu0 %v1341, 40
        %v1933 = vpop.permute.xlu0 %1932
        %v1936 = vsel %vm410, %v1916, 0
        %1938 = vmatpush.msra.mxu0 0.0
        %1939 = vmatpush.msra.mxu0 0.0
        %1940 = vmatpush.msra.mxu0 0.0
        %1941 = vmatpush.msra.mxu0 0.0
        %1942 = vmatpush.msra.mxu0 0.0
        %1943 = vmatpush.msra.mxu0 0.0
        %1944 = vmatpush.msra.mxu0 0.0
        %1945 = vmatpush.msra.mxu0 0.0
        %1946 = vmatpush.msra.mxu0 0.0
        %1947 = vmatpush.msra.mxu0 0.0
        %1948 = vmatpush.msra.mxu0 0.0
        %1949 = vmatpush.msra.mxu0 0.0
        %1950 = vmatpush.msra.mxu0 0.0
        %1951 = vmatpush.msra.mxu0 0.0
        %1952 = vmatpush.msra.mxu0 0.0
        %1953 = vmatpush.msra.mxu0 %v1933
        %1954 = vmatmul.f32.gmra.mxu0 %v1936
        %v1955 = vpop.f32.mrf.mxu0
        %v1956 = vadd.f32 0.0, %v1955
        %1957 = vdwg.mxu0
        %1958 = vrot.lane.b32.xlu0 %v1344, 40
        %v1959 = vpop.permute.xlu0 %1958
        %v1962 = vsel %vm410, %v1931, 0
        %1964 = vmatpush.msra.mxu0 0.0
        %1965 = vmatpush.msra.mxu0 0.0
        %1966 = vmatpush.msra.mxu0 0.0
        %1967 = vmatpush.msra.mxu0 0.0
        %1968 = vmatpush.msra.mxu0 0.0
        %1969 = vmatpush.msra.mxu0 0.0
        %1970 = vmatpush.msra.mxu0 0.0
        %1971 = vmatpush.msra.mxu0 0.0
        %1972 = vmatpush.msra.mxu0 0.0
        %1973 = vmatpush.msra.mxu0 0.0
        %1974 = vmatpush.msra.mxu0 0.0
        %1975 = vmatpush.msra.mxu0 0.0
        %1976 = vmatpush.msra.mxu0 0.0
        %1977 = vmatpush.msra.mxu0 0.0
        %1978 = vmatpush.msra.mxu0 0.0
        %1979 = vmatpush.msra.mxu0 %v1959
        %1980 = vmatmul.f32.gmra.mxu0 %v1962
        %v1981 = vpop.f32.mrf.mxu0
        %v1982 = vadd.f32 0.0, %v1981
        %1983 = vdwg.mxu0
        %1986 = vrot.lane.b32.xlu0 %v1636, 8
        %v1987 = vpop.permute.xlu0 %1986
        %1988 = vrot.lane.b32.xlu0 %v1662, 8
        %v1989 = vpop.permute.xlu0 %1988
        %1994 = vrot.lane.b32.xlu0 %v1796, 16
        %v1995 = vpop.permute.xlu0 %1994
        %1996 = vrot.lane.b32.xlu0 %v1822, 16
        %v1997 = vpop.permute.xlu0 %1996
        %2002 = vrot.lane.b32.xlu0 %v1956, 24
        %v2003 = vpop.permute.xlu0 %2002
        %2004 = vrot.lane.b32.xlu0 %v1982, 24
        %v2005 = vpop.permute.xlu0 %2004
        %v2008 = vsel %vm410, %v1476, %v1987
        %v2009 = vsel %vm410, %v1502, %v1989
        %v2010 = vsel %vm1078, %v2008, %v1995
        %v2011 = vsel %vm1078, %v2009, %v1997
        %v2012 = vsel %vm1081, %v2010, %v2003
        %v2013 = vsel %vm1081, %v2011, %v2005
        %v2014 = vld [vmem:[#allocation4 + $0xd0] sm:$0xff]
        %v2015 = vld [vmem:[#allocation4 + $0xd8] sm:$0xff]
        %v2016 = vld [vmem:[#allocation4 + $0xe0] sm:$0xff]
        %v2017 = vld [vmem:[#allocation4 + $0xe8] sm:$0xff]
        %v2018 = vld [vmem:[#allocation6 + $0xd] sm:$0x1]
        %v2019 = vperm.slane %v2018, 0
        %v2021 = vsel %vm377, %v2012, 0
        %v2024 = vsel %vm377, %v2013, 0
        %2026 = vmatpush.msra.mxu0 0.0
        %2027 = vmatpush.msra.mxu0 0.0
        %2028 = vmatpush.msra.mxu0 0.0
        %2029 = vmatpush.msra.mxu0 0.0
        %2030 = vmatpush.msra.mxu0 0.0
        %2031 = vmatpush.msra.mxu0 0.0
        %2032 = vmatpush.msra.mxu0 0.0
        %2033 = vmatpush.msra.mxu0 0.0
        %2034 = vmatpush.msra.mxu0 0.0
        %2035 = vmatpush.msra.mxu0 0.0
        %2036 = vmatpush.msra.mxu0 0.0
        %2037 = vmatpush.msra.mxu0 0.0
        %2038 = vmatpush.msra.mxu0 %v2017
        %2039 = vmatpush.msra.mxu0 %v2016
        %2040 = vmatpush.msra.mxu0 %v2015
        %2041 = vmatpush.msra.mxu0 %v2014
        %2042 = vmatmul.f32.gmra.mxu0 %v2021
        %v2043 = vpop.f32.mrf.mxu0
        %v2044 = vadd.f32 %v2019, %v2043
        %2045 = vmatmul.f32.gmra.mxu0 %v2024
        %v2046 = vpop.f32.mrf.mxu0
        %v2047 = vadd.f32 %v2019, %v2046
        %2048 = vdwg.mxu0
        %v2049 = vadd.f32 %v2044, %v1309
        %v2050 = vadd.f32 %v2047, %v1310
        %v2051 = vld [vmem:[#allocation6 + $0x10] sm:$0x1]
        %v2052 = vld [vmem:[#allocation6 + $0x11] sm:$0x1]
        %v2053 = vsel %vm377, %v2049, 0.0
        %2054 = vadd.xlane.f32.xlu0 %v2053
        %v2055 = vpop.xlane.xlu0 %2054
        %v2056 = vsel %vm377, %v2050, 0.0
        %2057 = vadd.xlane.f32.xlu0 %v2056
        %v2058 = vpop.xlane.xlu0 %2057
        %v2059 = vmul.f32 %v2055, %v1135
        %v2060 = vmul.f32 %v2058, %v1135
        %v2061 = vsub.f32 %v2049, %v2059
        %v2062 = vsub.f32 %v2050, %v2060
        %v2063 = vmul.f32 %v2061, %v2061
        %v2064 = vmul.f32 %v2062, %v2062
        %v2065 = vsel %vm377, %v2063, 0.0
        %2066 = vadd.xlane.f32.xlu0 %v2065
        %v2067 = vpop.xlane.xlu0 %2066
        %v2068 = vsel %vm377, %v2064, 0.0
        %2069 = vadd.xlane.f32.xlu0 %v2068
        %v2070 = vpop.xlane.xlu0 %2069
        %v2071 = vmul.f32 %v2067, %v1135
        %v2072 = vmul.f32 %v2070, %v1135
        %v2073 = vadd.f32 %v2071, 1e-05
        %v2074 = vadd.f32 %v2072, 1e-05
        %v2075 = vrsqrt.pop %v2073
        %v2076 = vmul.f32 %v2075, %v2073
        %v2077 = vmul.f32 %v2076, %v2075
        %v2078 = vmul.f32 0.5, %v2077
        %v2079 = vsub.f32 1.5, %v2078
        %v2080 = vmul.f32 %v2075, %v2079
        %vm2081 = vweird.f32 %v2073
        %vm2082 = vweird.f32 %v2075
        %vm2083 = vmor %vm2081, %vm2082
        %v2084 = vsel %vm2083, %v2075, %v2080
        %v2085 = vrsqrt.pop %v2074
        %v2086 = vmul.f32 %v2085, %v2074
        %v2087 = vmul.f32 %v2086, %v2085
        %v2088 = vmul.f32 0.5, %v2087
        %v2089 = vsub.f32 1.5, %v2088
        %v2090 = vmul.f32 %v2085, %v2089
        %vm2091 = vweird.f32 %v2074
        %vm2092 = vweird.f32 %v2085
        %vm2093 = vmor %vm2091, %vm2092
        %v2094 = vsel %vm2093, %v2085, %v2090
        %v2095 = vmul.f32 %v2061, %v2084
        %v2096 = vmul.f32 %v2062, %v2094
        %v2097 = vperm.slane %v2051, 0
        %v2098 = vmul.f32 %v2095, %v2097
        %v2099 = vmul.f32 %v2096, %v2097
        %v2100 = vperm.slane %v2052, 0
        %v2101 = vadd.f32 %v2098, %v2100
        %v2102 = vadd.f32 %v2099, %v2100
        %v2103 = vld [vmem:[#allocation4 + $0xf0] sm:$0xff]
        %v2104 = vld [vmem:[#allocation4 + $0xf8] sm:$0xff]
        %v2105 = vld [vmem:[#allocation4 + $0x100] sm:$0xff]
        %v2106 = vld [vmem:[#allocation4 + $0x108] sm:$0xff]
        %v2107 = vld [vmem:[#allocation6 + $0xe] sm:$0x1]
        %v2108 = vperm.slane %v2107, 0
        %v2110 = vsel %vm377, %v2101, 0
        %v2113 = vsel %vm377, %v2102, 0
        %2115 = vmatpush.msra.mxu0 0.0
        %2116 = vmatpush.msra.mxu0 0.0
        %2117 = vmatpush.msra.mxu0 0.0
        %2118 = vmatpush.msra.mxu0 0.0
        %2119 = vmatpush.msra.mxu0 0.0
        %2120 = vmatpush.msra.mxu0 0.0
        %2121 = vmatpush.msra.mxu0 0.0
        %2122 = vmatpush.msra.mxu0 0.0
        %2123 = vmatpush.msra.mxu0 0.0
        %2124 = vmatpush.msra.mxu0 0.0
        %2125 = vmatpush.msra.mxu0 0.0
        %2126 = vmatpush.msra.mxu0 0.0
        %2127 = vmatpush.msra.mxu0 %v2106
        %2128 = vmatpush.msra.mxu0 %v2105
        %2129 = vmatpush.msra.mxu0 %v2104
        %2130 = vmatpush.msra.mxu0 %v2103
        %2131 = vmatmul.f32.gmra.mxu0 %v2110
        %v2132 = vpop.f32.mrf.mxu0
        %v2133 = vadd.f32 %v2108, %v2132
        %2134 = vmatmul.f32.gmra.mxu0 %v2113
        %v2135 = vpop.f32.mrf.mxu0
        %v2136 = vadd.f32 %v2108, %v2135
        %2137 = vdwg.mxu0
        %v2138 = vmax.f32 %v2133, 0.0
        %v2139 = vmax.f32 %v2136, 0.0
        %v2140 = vld [vmem:[#allocation4 + $0x110] sm:$0xff]
        %v2141 = vld [vmem:[#allocation4 + $0x118] sm:$0xff]
        %v2142 = vld [vmem:[#allocation4 + $0x120] sm:$0xff]
        %v2143 = vld [vmem:[#allocation4 + $0x128] sm:$0xff]
        %v2144 = vld [vmem:[#allocation4 + $0x130] sm:$0xff]
        %v2145 = vld [vmem:[#allocation4 + $0x138] sm:$0xff]
        %v2146 = vld [vmem:[#allocation4 + $0x140] sm:$0xff]
        %v2147 = vld [vmem:[#allocation4 + $0x148] sm:$0xff]
        %v2148 = vld [vmem:[#allocation6 + $0xf] sm:$0x1]
        %v2149 = vperm.slane %v2148, 0
        %v2151 = vsel %vm1227, %v2138, 0
        %v2154 = vsel %vm1227, %v2139, 0
        %2156 = vmatpush.msra.mxu0 0.0
        %2157 = vmatpush.msra.mxu0 0.0
        %2158 = vmatpush.msra.mxu0 0.0
        %2159 = vmatpush.msra.mxu0 0.0
        %2160 = vmatpush.msra.mxu0 0.0
        %2161 = vmatpush.msra.mxu0 0.0
        %2162 = vmatpush.msra.mxu0 0.0
        %2163 = vmatpush.msra.mxu0 0.0
        %2164 = vmatpush.msra.mxu0 %v2147
        %2165 = vmatpush.msra.mxu0 %v2146
        %2166 = vmatpush.msra.mxu0 %v2145
        %2167 = vmatpush.msra.mxu0 %v2144
        %2168 = vmatpush.msra.mxu0 %v2143
        %2169 = vmatpush.msra.mxu0 %v2142
        %2170 = vmatpush.msra.mxu0 %v2141
        %2171 = vmatpush.msra.mxu0 %v2140
        %2172 = vmatmul.f32.gmra.mxu0 %v2151
        %v2173 = vpop.f32.mrf.mxu0
        %v2174 = vadd.f32 %v2149, %v2173
        %2175 = vmatmul.f32.gmra.mxu0 %v2154
        %v2176 = vpop.f32.mrf.mxu0
        %v2177 = vadd.f32 %v2149, %v2176
        %2178 = vdwg.mxu0
        %v2179 = vadd.f32 %v2174, %v2101
        %v2180 = vadd.f32 %v2177, %v2102
        %v2181 = vld [vmem:[#allocation6 + $0x12] sm:$0x1]
        %v2182 = vld [vmem:[#allocation6 + $0x13] sm:$0x1]
        %v2183 = vsel %vm377, %v2179, 0.0
        %2184 = vadd.xlane.f32.xlu0 %v2183
        %v2185 = vpop.xlane.xlu0 %2184
        %v2186 = vsel %vm377, %v2180, 0.0
        %2187 = vadd.xlane.f32.xlu0 %v2186
        %v2188 = vpop.xlane.xlu0 %2187
        %v2189 = vmul.f32 %v2185, %v1135
        %v2190 = vmul.f32 %v2188, %v1135
        %v2191 = vsub.f32 %v2179, %v2189
        %v2192 = vsub.f32 %v2180, %v2190
        %v2193 = vmul.f32 %v2191, %v2191
        %v2194 = vmul.f32 %v2192, %v2192
        %v2195 = vsel %vm377, %v2193, 0.0
        %2196 = vadd.xlane.f32.xlu0 %v2195
        %v2197 = vpop.xlane.xlu0 %2196
        %v2198 = vsel %vm377, %v2194, 0.0
        %2199 = vadd.xlane.f32.xlu0 %v2198
        %v2200 = vpop.xlane.xlu0 %2199
        %v2201 = vmul.f32 %v2197, %v1135
        %v2202 = vmul.f32 %v2200, %v1135
        %v2203 = vadd.f32 %v2201, 1e-05
        %v2204 = vadd.f32 %v2202, 1e-05
        %v2205 = vrsqrt.pop %v2203
        %v2206 = vmul.f32 %v2205, %v2203
        %v2207 = vmul.f32 %v2206, %v2205
        %v2208 = vmul.f32 0.5, %v2207
        %v2209 = vsub.f32 1.5, %v2208
        %v2210 = vmul.f32 %v2205, %v2209
        %vm2211 = vweird.f32 %v2203
        %vm2212 = vweird.f32 %v2205
        %vm2213 = vmor %vm2211, %vm2212
        %v2214 = vsel %vm2213, %v2205, %v2210
        %v2215 = vrsqrt.pop %v2204
        %v2216 = vmul.f32 %v2215, %v2204
        %v2217 = vmul.f32 %v2216, %v2215
        %v2218 = vmul.f32 0.5, %v2217
        %v2219 = vsub.f32 1.5, %v2218
        %v2220 = vmul.f32 %v2215, %v2219
        %vm2221 = vweird.f32 %v2204
        %vm2222 = vweird.f32 %v2215
        %vm2223 = vmor %vm2221, %vm2222
        %v2224 = vsel %vm2223, %v2215, %v2220
        %v2225 = vmul.f32 %v2191, %v2214
        %v2226 = vmul.f32 %v2192, %v2224
        %v2227 = vperm.slane %v2181, 0
        %v2228 = vmul.f32 %v2225, %v2227
        %v2229 = vmul.f32 %v2226, %v2227
        %v2230 = vperm.slane %v2182, 0
        %v2231 = vadd.f32 %v2228, %v2230
        %v2232 = vadd.f32 %v2229, %v2230
        %v2233 = vld [vmem:[#allocation4 + $0x150] sm:$0xff]
        %v2234 = vld [vmem:[#allocation4 + $0x158] sm:$0xff]
        %v2235 = vld [vmem:[#allocation4 + $0x160] sm:$0xff]
        %v2236 = vld [vmem:[#allocation4 + $0x168] sm:$0xff]
        %v2237 = vld [vmem:[#allocation6 + $0x14] sm:$0x1]
        %v2238 = vperm.slane %v2237, 0
        %v2240 = vsel %vm377, %v2231, 0
        %v2243 = vsel %vm377, %v2232, 0
        %2245 = vmatpush.msra.mxu0 0.0
        %2246 = vmatpush.msra.mxu0 0.0
        %2247 = vmatpush.msra.mxu0 0.0
        %2248 = vmatpush.msra.mxu0 0.0
        %2249 = vmatpush.msra.mxu0 0.0
        %2250 = vmatpush.msra.mxu0 0.0
        %2251 = vmatpush.msra.mxu0 0.0
        %2252 = vmatpush.msra.mxu0 0.0
        %2253 = vmatpush.msra.mxu0 0.0
        %2254 = vmatpush.msra.mxu0 0.0
        %2255 = vmatpush.msra.mxu0 0.0
        %2256 = vmatpush.msra.mxu0 0.0
        %2257 = vmatpush.msra.mxu0 %v2236
        %2258 = vmatpush.msra.mxu0 %v2235
        %2259 = vmatpush.msra.mxu0 %v2234
        %2260 = vmatpush.msra.mxu0 %v2233
        %2261 = vmatmul.f32.gmra.mxu0 %v2240
        %v2262 = vpop.f32.mrf.mxu0
        %v2263 = vadd.f32 %v2238, %v2262
        %2264 = vmatmul.f32.gmra.mxu0 %v2243
        %v2265 = vpop.f32.mrf.mxu0
        %v2266 = vadd.f32 %v2238, %v2265
        %2267 = vdwg.mxu0
        %v2268 = vtanh.pop %v2263
        %v2269 = vtanh.pop %v2266
        %v2270 = vld [vmem:[#allocation6 + $0x15] sm:$0x1]
        %v2271 = vperm.slane %v2270, 0
        %v2272 = vmul.f32 %v2268, %v2271
        %v2273 = vmul.f32 %v2269, %v2271
        %v2274 = vsel %vm377, %v2272, 0.0
        %2275 = vadd.xlane.f32.xlu0 %v2274
        %v2276 = vpop.xlane.xlu0 %2275
        %v2277 = vsel %vm377, %v2273, 0.0
        %2278 = vadd.xlane.f32.xlu0 %v2277
        %v2279 = vpop.xlane.xlu0 %2278
        %v2280 = vperm.slane %v274, 0
        %v2281 = vlaneseq
        %v2282 = vshrl.u32 %v2281, 7
        %2284 = vset.pattern.permute.xlu0 %v2282
        %2285 = vperm.xlu0 %2284, %v2280
        %v2286 = vpop.permute.xlu0 %2285
        %v2287 = vperm.slane %v275, 0
        %v2288 = vlaneseq
        %v2289 = vshrl.u32 %v2288, 7
        %2291 = vset.pattern.permute.xlu0 %v2289
        %2292 = vperm.xlu0 %2291, %v2287
        %v2293 = vpop.permute.xlu0 %2292
        %vm2294 = vcmp.gt.f32.partialorder %v2286, 0.5
        %vm2295 = vcmp.gt.f32.partialorder %v2293, 0.5
        %v2296 = vsel %vm2294, %v2276, -1e+30
        %v2297 = vsel %vm2295, %v2279, -1e+30
        %v2298 = vrot.slane %v2296, 4
        %v2299 = vmax.f32 %v2296, %v2298
        %v2300 = vrot.slane %v2299, 2
        %v2301 = vmax.f32 %v2299, %v2300
        %v2302 = vrot.slane %v2301, 1
        %v2303 = vmax.f32 %v2301, %v2302
        %v2304 = vrot.slane %v2297, 4
        %v2305 = vmax.f32 %v2297, %v2304
        %v2306 = vrot.slane %v2305, 2
        %v2307 = vmax.f32 %v2305, %v2306
        %v2308 = vrot.slane %v2307, 1
        %v2309 = vmax.f32 %v2307, %v2308
        %vm2310 = vcmp.gt.f32.partialorder %v2303, -5e+29
        %vm2311 = vcmp.gt.f32.partialorder %v2309, -5e+29
        %v2312 = vsel %vm2310, %v2303, 0.0
        %v2313 = vsel %vm2311, %v2309, 0.0
        %v2314 = vsub.f32 %v2276, %v2312
        %v2315 = vsub.f32 %v2279, %v2313
        %v2316 = vmul.f32 %v2314, 1.442695
        %v2317 = vpow.pop %v2316
        %v2318 = vmul.f32 %v2315, 1.442695
        %v2319 = vpow.pop %v2318
        %v2320 = vmul.f32 %v2317, %v2286
        %v2321 = vmul.f32 %v2319, %v2293
        %v2322 = vrot.slane %v2320, 4
        %v2323 = vadd.f32 %v2320, %v2322
        %v2324 = vrot.slane %v2323, 2
        %v2325 = vadd.f32 %v2323, %v2324
        %v2326 = vrot.slane %v2325, 1
        %v2327 = vadd.f32 %v2325, %v2326
        %v2328 = vrot.slane %v2321, 4
        %v2329 = vadd.f32 %v2321, %v2328
        %v2330 = vrot.slane %v2329, 2
        %v2331 = vadd.f32 %v2329, %v2330
        %v2332 = vrot.slane %v2331, 1
        %v2333 = vadd.f32 %v2331, %v2332
        %vm2334 = vcmp.gt.f32.partialorder %v2327, 0.0
        %vm2335 = vcmp.gt.f32.partialorder %v2333, 0.0
        %v2336 = vsel %vm2334, %v2327, 1.0
        %v2337 = vsel %vm2335, %v2333, 1.0
        %v2338 = vrcp.pop %v2336
        %v2339 = vmul.f32 %v2336, %v2338
        %v2340 = vsub.f32 1.0, %v2339
        %v2341 = vmul.f32 %v2338, %v2340
        %v2342 = vadd.f32 %v2338, %v2341
        %vm2343 = vweird.f32 %v2336
        %vm2344 = vweird.f32 %v2338
        %vm2345 = vmor %vm2343, %vm2344
        %v2346 = vsel %vm2345, %v2338, %v2342
        %v2347 = vand.u32 2147483647, %v2336
        %vm2348 = vcmp.eq.f32.partialorder %v2347, 8.507059e+37
        %v2349 = vand.u32 %v2336, 2147483648
        %v2350 = vor.u32 1.1754944e-38, %v2349
        %v2351 = vsel %vm2348, %v2350, %v2346
        %v2352 = vmul.f32 %v2320, %v2351
        %v2353 = vrcp.pop %v2337
        %v2354 = vmul.f32 %v2337, %v2353
        %v2355 = vsub.f32 1.0, %v2354
        %v2356 = vmul.f32 %v2353, %v2355
        %v2357 = vadd.f32 %v2353, %v2356
        %vm2358 = vweird.f32 %v2337
        %vm2359 = vweird.f32 %v2353
        %vm2360 = vmor %vm2358, %vm2359
        %v2361 = vsel %vm2360, %v2353, %v2357
        %v2362 = vand.u32 2147483647, %v2337
        %vm2363 = vcmp.eq.f32.partialorder %v2362, 8.507059e+37
        %v2364 = vand.u32 %v2337, 2147483648
        %v2365 = vor.u32 1.1754944e-38, %v2364
        %v2366 = vsel %vm2363, %v2365, %v2361
        %v2367 = vmul.f32 %v2321, %v2366
        %v2368 = vmul.f32 %v2352, %v2231
        %v2369 = vmul.f32 %v2367, %v2232
        %v2370 = vsel %vm377, %v2368, 0.0
        %v2371 = vrot.slane %v2370, 4
        %v2372 = vadd.f32 %v2370, %v2371
        %v2373 = vrot.slane %v2372, 2
        %v2374 = vadd.f32 %v2372, %v2373
        %v2375 = vrot.slane %v2374, 1
        %v2376 = vadd.f32 %v2374, %v2375
        %v2377 = vsel %vm377, %v2369, 0.0
        %v2378 = vrot.slane %v2377, 4
        %v2379 = vadd.f32 %v2377, %v2378
        %v2380 = vrot.slane %v2379, 2
        %v2381 = vadd.f32 %v2379, %v2380
        %v2382 = vrot.slane %v2381, 1
        %v2383 = vadd.f32 %v2381, %v2382
        %v2384 = vld [vmem:[#allocation4 + $0x170] sm:$0xff]
        %v2385 = vld [vmem:[#allocation4 + $0x178] sm:$0xff]
        %v2386 = vld [vmem:[#allocation4 + $0x180] sm:$0xff]
        %v2387 = vld [vmem:[#allocation4 + $0x188] sm:$0xff]
        %v2388 = vld [vmem:[#allocation6 + $0x16] sm:$0x1]
        %v2389 = vperm.slane %v2388, 0
        %vm2392 = vcmask 1041409
        %v2393 = vsel %vm2392, %v2383, %v2376
        %v2394 = vsel %vm377, %v2393, 0
        %2396 = vmatpush.msra.mxu0 0.0
        %2397 = vmatpush.msra.mxu0 0.0
        %2398 = vmatpush.msra.mxu0 0.0
        %2399 = vmatpush.msra.mxu0 0.0
        %2400 = vmatpush.msra.mxu0 0.0
        %2401 = vmatpush.msra.mxu0 0.0
        %2402 = vmatpush.msra.mxu0 0.0
        %2403 = vmatpush.msra.mxu0 0.0
        %2404 = vmatpush.msra.mxu0 0.0
        %2405 = vmatpush.msra.mxu0 0.0
        %2406 = vmatpush.msra.mxu0 0.0
        %2407 = vmatpush.msra.mxu0 0.0
        %2408 = vmatpush.msra.mxu0 %v2387
        %2409 = vmatpush.msra.mxu0 %v2386
        %2410 = vmatpush.msra.mxu0 %v2385
        %2411 = vmatpush.msra.mxu0 %v2384
        %2412 = vmatmul.f32.gmra.mxu0 %v2394
        %v2413 = vpop.f32.mrf.mxu0
        %v2414 = vadd.f32 %v2389, %v2413
        %2415 = vdwg.mxu0
        %v2417 = vrot.slane %v2414, 1
        %2419 = vst [vmem:[%s270] sm:$0x1] %v2414
        %2420 = vst [vmem:[%s270 + $0x1] sm:$0x1] %v2417
        %s2421 = smul.u32 2, %s19
        %p2422 = scmp.lt.s32.totalorder %s2421, 3
        %s2423 = scalar_select %p2422, %s2421, 3
        %s2424 = scalar_lea.vmem %s4, %s2423
        // Predicated region
        $region49: #{strats_forward.1} parent=35 // pred_check
          %p2425 = pneg %p131
        $region50: #{strats_forward.1} parent=35 // pred_check_branch
          %2427 = sbr.rel (%p2425) target = $region52
        $region51: #{strats_forward.1} parent=35 // pred_region
          %s2428 = smul.u32 2, %s19
        $region52: #{strats_forward.1} parent=35 // pred_fallthru
          _
      $region36: #{strats_forward.1} parent=5 // pred_fallthru
        _
      %p2429 = scmp.le.s32.totalorder 2, %s14
      // Predicated region
      $region53: #{strats_forward.1} parent=5 // pred_check
        %p2430 = pneg %p2429
      $region54: #{strats_forward.1} parent=5 // pred_check_branch
        %2432 = sbr.rel (%p2430) target = $region56
      $region55: #{strats_forward.1} parent=5 // pred_region
        %s2433 = ssub.s32 %s14, 2
        // Predicated region
        $region57: #{strats_forward.1} parent=55 // pred_check
          %p2434 = pneg %p137
        $region58: #{strats_forward.1} parent=55 // pred_check_branch
          %2436 = sbr.rel (%p2434) target = $region60
        $region59: #{strats_forward.1} parent=55 // pred_region
          %s2437 = smul.u32 2, %s20
          %p2438 = scmp.lt.s32.totalorder %s2437, 3
          %s2439 = scalar_select %p2438, %s2437, 3
          %s2440 = scalar_lea.vmem %s4, %s2439
        $region60: #{strats_forward.1} parent=55 // pred_fallthru
          _
      $region56: #{strats_forward.1} parent=5 // pred_fallthru
        _
    $region6: #{strats_forward.1} parent=1 // loop_footer
      %s18 = sadd.s32 1, %s14
    $region7: #{strats_forward.1} parent=1 // loop_footer_branch
      %13 = sbr.rel target = $region3
    $region8: #{strats_forward.1} parent=1 // loop_exit
      _
    %2441 = vsyncpa [#allocation3], 1
    %s2442 = scalar_lea.sflag [#allocation3], 1
    %2443 = vsyncpa %s2442, 1
    %2444 = vsyncpa [#allocation5], 1

</llo_original>
